<compile_context>
chip_gen: v5e
topology: v5e:2x2
jax: 0.10.0
libtpu: 0.0.40
codegen_flags: <defaults>
</compile_context>

<pallas_src>
import functools
import math

import jax
import jax.numpy as jnp
from jax import lax
from jax.experimental import pallas as pl
from jax.experimental.pallas import tpu as pltpu


# ----------------------------- Pallas kernel -------------------------------


def _netd_kernel(x_ref,
                 wi_e_ref, wh_e_ref, bgi_e_ref, bhn_e_ref,
                 wi_d_ref, wh_d_ref, bgi_d_ref, bhn_d_ref,
                 enc_ref, dec_ref, *, seq_len):
    """One batch-block of NetD: encoder GRU then decoder GRU over all T timesteps.

    x_ref:    (1, T*Bb, D)   time-major flattened input block (row = t*Bb + b)
    wi_e_ref: (3, D, H)      encoder input weights per gate [r, z, n] (pre-transposed)
    wh_e_ref: (3, H, H)      encoder hidden weights per gate
    bgi_e_ref:(3, 1, H)      encoder folded input biases [b_ir+b_hr, b_iz+b_hz, b_in]
    bhn_e_ref:(1, H)         encoder b_hn (kept separate for the n-gate)
    wi_d_ref/...             same for the decoder with (in=H, hid=D)
    enc_ref:  (Bb, T*H)      lane-dense encoder output slab (lanes [t*H:(t+1)*H] = step t)
    dec_ref:  (Bb, T*D)      lane-dense decoder output slab
    """
    T = seq_len
    TB, D = x_ref.shape[1], x_ref.shape[2]
    Bb = TB // T
    H = wh_e_ref.shape[1]
    f32 = jnp.float32

    def run_gru(gin, wh_ref, bhn_ref, hid):
        """GRU recurrence given precomputed time-major gate inputs.

        gin: list of 3 arrays (T*Bb, hid) = W_i x + folded bias (rows time-major).
        Returns list of T hidden states, each (Bb, hid).
        """
        # Hidden weights / bias hoisted out of the loop (no CSE inside the unrolled loop).
        w_hr, w_hz, w_hn = wh_ref[0], wh_ref[1], wh_ref[2]
        bhn = jnp.broadcast_to(bhn_ref[...], (Bb, hid))
        h = jnp.zeros((Bb, hid), f32)
        steps = []
        for t in range(T):                                  # T is small & static: unroll
            lo, hi = t * Bb, (t + 1) * Bb
            gh_r = jnp.dot(h, w_hr, preferred_element_type=f32)
            gh_z = jnp.dot(h, w_hz, preferred_element_type=f32)
            gh_n = jnp.dot(h, w_hn, preferred_element_type=f32) + bhn
            r = jax.nn.sigmoid(gin[0][lo:hi, :] + gh_r)
            z = jax.nn.sigmoid(gin[1][lo:hi, :] + gh_z)
            n = jnp.tanh(gin[2][lo:hi, :] + r * gh_n)
            h = (1.0 - z) * n + z * h
            steps.append(h)
        return steps

    # ---------------- encoder ----------------
    # Hoisted input projection: one matmul per gate over all T*Bb rows.
    x2d = x_ref[0]                                          # (T*Bb, D), no reshape needed
    gi_e = [jnp.dot(x2d, wi_e_ref[g], preferred_element_type=f32) + bgi_e_ref[g]
            for g in range(3)]
    enc_steps = run_gru(gi_e, wh_e_ref, bhn_e_ref, H)

    # Single lane-dense store of the whole encoder sequence.
    enc_ref[...] = jnp.concatenate(enc_steps, axis=1)       # (Bb, T*H)

    # ---------------- decoder ----------------
    # Hoisted input projection over the full encoder output (time-major stacking).
    enc_tm = jnp.concatenate(enc_steps, axis=0)             # (T*Bb, H), row = t*Bb + b
    gi_d = [jnp.dot(enc_tm, wi_d_ref[g], preferred_element_type=f32) + bgi_d_ref[g]
            for g in range(3)]
    dec_steps = run_gru(gi_d, wh_d_ref, bhn_d_ref, D)

    dec_ref[...] = jnp.concatenate(dec_steps, axis=1)       # (Bb, T*D)


# ----------------------------- wrapper --------------------------------------


def _prep_gru_gate_params(w_ih_t, w_hh_t, b_ih, b_hh, hid):
    """Split concatenated (PyTorch gate order r,z,n) params into per-gate, bias-folded form.

    w_ih_t: (in, 3*hid), w_hh_t: (hid, 3*hid), b_ih/b_hh: (1, 3*hid).
    Returns wi (3,in,hid), wh (3,hid,hid),
            b_gi (3,1,hid) = [b_ir+b_hr, b_iz+b_hz, b_in], b_hn (1,hid).
    """
    wi = jnp.stack([w_ih_t[:, g * hid:(g + 1) * hid] for g in range(3)], axis=0)
    wh = jnp.stack([w_hh_t[:, g * hid:(g + 1) * hid] for g in range(3)], axis=0)
    b_r = b_ih[:, 0:hid] + b_hh[:, 0:hid]
    b_z = b_ih[:, hid:2 * hid] + b_hh[:, hid:2 * hid]
    b_n_in = b_ih[:, 2 * hid:3 * hid]
    b_gi = jnp.stack([b_r, b_z, b_n_in], axis=0)
    b_hn = b_hh[:, 2 * hid:3 * hid]
    return wi, wh, b_gi, b_hn


def netd_forward(X, params, batch_block=None):
    """X: (B, T, var_dim) batch_first. Returns (X_enc (B,T,H), X_dec (B,T,D)).

    batch_block: optional batch tile (multiple of 8, or == B) to shard the batch across
    the grid ("parallel" axis -> two TensorCores on v7x). Default: one block.
    """
    B, T, D = X.shape
    H = params["w_hh_enc_t"].shape[0]
    X = X.astype(jnp.float32)

    bb = B if batch_block is None else batch_block
    assert B % bb == 0 and (bb == B or bb % 8 == 0), \
        "batch_block must divide B and be a multiple of 8 (or equal B)"
    nb = B // bb

    wi_e, wh_e, bgi_e, bhn_e = _prep_gru_gate_params(
        params["w_ih_enc_t"], params["w_hh_enc_t"], params["b_ih_enc"], params["b_hh_enc"], H)
    wi_d, wh_d, bgi_d, bhn_d = _prep_gru_gate_params(
        params["w_ih_dec_t"], params["w_hh_dec_t"], params["b_ih_dec"], params["b_hh_dec"], D)

    # Time-major, per-block-flattened layout: (nb, T*bb, D), row within a block = t*bb + b.
    x_tm = jnp.transpose(X, (1, 0, 2))                       # (T, B, D)
    x_blk = x_tm.reshape(T, nb, bb, D).transpose(1, 0, 2, 3).reshape(nb, T * bb, D)

    full3 = lambda shape: pl.BlockSpec(shape, lambda b: (0, 0, 0))
    full2 = lambda shape: pl.BlockSpec(shape, lambda b: (0, 0))

    kernel = functools.partial(_netd_kernel, seq_len=T)

    enc_slab, dec_slab = pl.pallas_call(
        kernel,
        out_shape=(
            jax.ShapeDtypeStruct((B, T * H), jnp.float32),
            jax.ShapeDtypeStruct((B, T * D), jnp.float32),
        ),
        grid=(nb,),
        in_specs=[
            pl.BlockSpec((1, T * bb, D), lambda b: (b, 0, 0)),   # x (time-major block)
            full3((3, D, H)),                                    # enc W_i per gate
            full3((3, H, H)),                                    # enc W_h per gate
            full3((3, 1, H)),                                    # enc folded gi biases
            full2((1, H)),                                       # enc b_hn
            full3((3, H, D)),                                    # dec W_i per gate
            full3((3, D, D)),                                    # dec W_h per gate
            full3((3, 1, D)),                                    # dec folded gi biases
            full2((1, D)),                                       # dec b_hn
        ],
        out_specs=(
            pl.BlockSpec((bb, T * H), lambda b: (b, 0)),
            pl.BlockSpec((bb, T * D), lambda b: (b, 0)),
        ),
        compiler_params=pltpu.CompilerParams(
            dimension_semantics=("parallel",),                   # batch blocks independent
        ),
    )(x_blk, wi_e, wh_e, bgi_e, bhn_e, wi_d, wh_d, bgi_d, bhn_d)

    # Free contiguous reshapes back to (B, T, feature).
    X_enc = enc_slab.reshape(B, T, H)
    X_dec = dec_slab.reshape(B, T, D)
    return X_enc, X_dec


# --------------------------- pure-JAX reference -----------------------------


def _gru_cell_ref(x, h, w_ih_t, w_hh_t, b_ih, b_hh, hid):
    """PyTorch-semantics GRU cell (concatenated weights, gate order r,z,n)."""
    hp = lax.Precision.HIGHEST
    gi = jnp.dot(x, w_ih_t, precision=hp) + b_ih
    gh = jnp.dot(h, w_hh_t, precision=hp) + b_hh
    r = jax.nn.sigmoid(gi[:, 0:hid] + gh[:, 0:hid])
    z = jax.nn.sigmoid(gi[:, hid:2 * hid] + gh[:, hid:2 * hid])
    n = jnp.tanh(gi[:, 2 * hid:3 * hid] + r * gh[:, 2 * hid:3 * hid])
    return (1.0 - z) * n + z * h


def _gru_ref(X, w_ih_t, w_hh_t, b_ih, b_hh, hid):
    B, T, _ = X.shape

    def step(h, x_t):
        h_new = _gru_cell_ref(x_t, h, w_ih_t, w_hh_t, b_ih, b_hh, hid)
        return h_new, h_new

    h0 = jnp.zeros((B, hid), jnp.float32)
    _, ys = lax.scan(step, h0, jnp.transpose(X, (1, 0, 2)))
    return jnp.transpose(ys, (1, 0, 2))


def netd_reference(X, params):
    H = params["w_hh_enc_t"].shape[0]
    D = params["w_hh_dec_t"].shape[0]
    X = X.astype(jnp.float32)
    X_enc = _gru_ref(X, params["w_ih_enc_t"], params["w_hh_enc_t"],
                     params["b_ih_enc"], params["b_hh_enc"], H)
    X_dec = _gru_ref(X_enc, params["w_ih_dec_t"], params["w_hh_dec_t"],
                     params["b_ih_dec"], params["b_hh_dec"], D)
    return X_enc, X_dec


# --------------------------------- params -----------------------------------


def init_params(key, var_dim, hid_dim):
    """Deterministic init mimicking PyTorch GRU's U(-1/sqrt(hid), 1/sqrt(hid))."""
    keys = jax.random.split(key, 8)

    def u(k, shape, bound):
        return jax.random.uniform(k, shape, jnp.float32, -bound, bound)

    be = 1.0 / math.sqrt(hid_dim)
    bd = 1.0 / math.sqrt(var_dim)
    # Stored pre-transposed: weight_ih (3H, in) -> (in, 3H); weight_hh (3H, H) -> (H, 3H).
    return {
        "w_ih_enc_t": u(keys[0], (var_dim, 3 * hid_dim), be),
        "w_hh_enc_t": u(keys[1], (hid_dim, 3 * hid_dim), be),
        "b_ih_enc":   u(keys[2], (1, 3 * hid_dim), be),
        "b_hh_enc":   u(keys[3], (1, 3 * hid_dim), be),
        "w_ih_dec_t": u(keys[4], (hid_dim, 3 * var_dim), bd),
        "w_hh_dec_t": u(keys[5], (var_dim, 3 * var_dim), bd),
        "b_ih_dec":   u(keys[6], (1, 3 * var_dim), bd),
        "b_hh_dec":   u(keys[7], (1, 3 * var_dim), bd),
    }


# ----------------------------------- main ------------------------------------


if __name__ == "__main__":
    # TODO(synk): num_layers > 1 not implemented (module default num_layers=1 is used).
    B, T, VAR_DIM, HID_DIM = 2, 8, 4, 32

    key = jax.random.PRNGKey(0)
    k_x, k_p = jax.random.split(key)
    X = jax.random.normal(k_x, (B, T, VAR_DIM), jnp.float32)
    params = init_params(k_p, VAR_DIM, HID_DIM)

    fwd = jax.jit(netd_forward)
    X_enc, X_dec = jax.block_until_ready(fwd(X, params))

    # Validate against a pure-JAX reference of the same (PyTorch-semantics) GRU math.
    ref_enc, ref_dec = netd_reference(X, params)
    assert X_enc.shape == (B, T, HID_DIM) and X_dec.shape == (B, T, VAR_DIM)
    assert jnp.allclose(X_enc, ref_enc, atol=2e-4, rtol=2e-4), \
        float(jnp.max(jnp.abs(X_enc - ref_enc)))
    assert jnp.allclose(X_dec, ref_dec, atol=2e-4, rtol=2e-4), \
        float(jnp.max(jnp.abs(X_dec - ref_dec)))

    print("KERNEL_OK")
</pallas_src>

<mosaic_0001>
module attributes {stable_mosaic.version = 11 : i64} {
  func.func @_netd_kernel(%arg0: i32, %arg1: memref<1x16x4xf32, #tpu.memory_space<vmem>>, %arg2: memref<3x4x32xf32, #tpu.memory_space<vmem>>, %arg3: memref<3x32x32xf32, #tpu.memory_space<vmem>>, %arg4: memref<3x1x32xf32, #tpu.memory_space<vmem>>, %arg5: memref<1x32xf32, #tpu.memory_space<vmem>>, %arg6: memref<3x32x4xf32, #tpu.memory_space<vmem>>, %arg7: memref<3x4x4xf32, #tpu.memory_space<vmem>>, %arg8: memref<3x1x4xf32, #tpu.memory_space<vmem>>, %arg9: memref<1x4xf32, #tpu.memory_space<vmem>>, %arg10: memref<2x256xf32, #tpu.memory_space<vmem>>, %arg11: memref<2x32xf32, #tpu.memory_space<vmem>>) attributes {dimension_semantics = [#tpu.dimension_semantics<parallel>], iteration_bounds = array<i64: 1>, scalar_prefetch = 0 : i64, scratch_operands = 0 : i64, tpu.core_type = #tpu.core_type<tc>, window_params = [{transform_indices = @transform_0, window_bounds = array<i64: 1, 16, 4>}, {pipeline_mode = #tpu.pipeline_mode<synchronous>, transform_indices = @transform_1, window_bounds = array<i64: 3, 4, 32>}, {pipeline_mode = #tpu.pipeline_mode<synchronous>, transform_indices = @transform_2, window_bounds = array<i64: 3, 32, 32>}, {pipeline_mode = #tpu.pipeline_mode<synchronous>, transform_indices = @transform_3, window_bounds = array<i64: 3, 1, 32>}, {pipeline_mode = #tpu.pipeline_mode<synchronous>, transform_indices = @transform_4, window_bounds = array<i64: 1, 32>}, {pipeline_mode = #tpu.pipeline_mode<synchronous>, transform_indices = @transform_5, window_bounds = array<i64: 3, 32, 4>}, {pipeline_mode = #tpu.pipeline_mode<synchronous>, transform_indices = @transform_6, window_bounds = array<i64: 3, 4, 4>}, {pipeline_mode = #tpu.pipeline_mode<synchronous>, transform_indices = @transform_7, window_bounds = array<i64: 3, 1, 4>}, {pipeline_mode = #tpu.pipeline_mode<synchronous>, transform_indices = @transform_8, window_bounds = array<i64: 1, 4>}, {transform_indices = @transform_9, window_bounds = array<i64: 2, 256>}, {transform_indices = @transform_10, window_bounds = array<i64: 2, 32>}]} {
    %c0 = arith.constant 0 : index
    %c0_0 = arith.constant 0 : index
    %c0_1 = arith.constant 0 : index
    %0 = vector.load %arg1[%c0, %c0_0, %c0_1] : memref<1x16x4xf32, #tpu.memory_space<vmem>>, vector<1x16x4xf32>
    %1 = vector.shape_cast %0 : vector<1x16x4xf32> to vector<16x4xf32>
    %c0_2 = arith.constant 0 : index
    %c0_3 = arith.constant 0 : index
    %c0_4 = arith.constant 0 : index
    %2 = vector.load %arg2[%c0_2, %c0_3, %c0_4] : memref<3x4x32xf32, #tpu.memory_space<vmem>>, vector<1x4x32xf32>
    %3 = vector.shape_cast %2 : vector<1x4x32xf32> to vector<4x32xf32>
    %cst = arith.constant dense<0.000000e+00> : vector<16x32xf32>
    %4 = tpu.matmul %1, %3, %cst {dimension_numbers = #tpu.dot_dimension_numbers<[1], [0], [0], [1], [0, 0, 1, 1], [], []>} : vector<16x4xf32>, vector<4x32xf32>, vector<16x32xf32> -> vector<16x32xf32>
    %c0_5 = arith.constant 0 : index
    %c0_6 = arith.constant 0 : index
    %c0_7 = arith.constant 0 : index
    %5 = vector.load %arg4[%c0_5, %c0_6, %c0_7] : memref<3x1x32xf32, #tpu.memory_space<vmem>>, vector<1x1x32xf32>
    %6 = vector.shape_cast %5 : vector<1x1x32xf32> to vector<1x32xf32>
    %7 = vector.broadcast %6 : vector<1x32xf32> to vector<16x32xf32>
    %8 = arith.addf %4, %7 : vector<16x32xf32>
    %c1 = arith.constant 1 : index
    %c0_8 = arith.constant 0 : index
    %c0_9 = arith.constant 0 : index
    %9 = vector.load %arg2[%c1, %c0_8, %c0_9] : memref<3x4x32xf32, #tpu.memory_space<vmem>>, vector<1x4x32xf32>
    %10 = vector.shape_cast %9 : vector<1x4x32xf32> to vector<4x32xf32>
    %cst_10 = arith.constant dense<0.000000e+00> : vector<16x32xf32>
    %11 = tpu.matmul %1, %10, %cst_10 {dimension_numbers = #tpu.dot_dimension_numbers<[1], [0], [0], [1], [0, 0, 1, 1], [], []>} : vector<16x4xf32>, vector<4x32xf32>, vector<16x32xf32> -> vector<16x32xf32>
    %c1_11 = arith.constant 1 : index
    %c0_12 = arith.constant 0 : index
    %c0_13 = arith.constant 0 : index
    %12 = vector.load %arg4[%c1_11, %c0_12, %c0_13] : memref<3x1x32xf32, #tpu.memory_space<vmem>>, vector<1x1x32xf32>
    %13 = vector.shape_cast %12 : vector<1x1x32xf32> to vector<1x32xf32>
    %14 = vector.broadcast %13 : vector<1x32xf32> to vector<16x32xf32>
    %15 = arith.addf %11, %14 : vector<16x32xf32>
    %c2 = arith.constant 2 : index
    %c0_14 = arith.constant 0 : index
    %c0_15 = arith.constant 0 : index
    %16 = vector.load %arg2[%c2, %c0_14, %c0_15] : memref<3x4x32xf32, #tpu.memory_space<vmem>>, vector<1x4x32xf32>
    %17 = vector.shape_cast %16 : vector<1x4x32xf32> to vector<4x32xf32>
    %cst_16 = arith.constant dense<0.000000e+00> : vector<16x32xf32>
    %18 = tpu.matmul %1, %17, %cst_16 {dimension_numbers = #tpu.dot_dimension_numbers<[1], [0], [0], [1], [0, 0, 1, 1], [], []>} : vector<16x4xf32>, vector<4x32xf32>, vector<16x32xf32> -> vector<16x32xf32>
    %c2_17 = arith.constant 2 : index
    %c0_18 = arith.constant 0 : index
    %c0_19 = arith.constant 0 : index
    %19 = vector.load %arg4[%c2_17, %c0_18, %c0_19] : memref<3x1x32xf32, #tpu.memory_space<vmem>>, vector<1x1x32xf32>
    %20 = vector.shape_cast %19 : vector<1x1x32xf32> to vector<1x32xf32>
    %21 = vector.broadcast %20 : vector<1x32xf32> to vector<16x32xf32>
    %22 = arith.addf %18, %21 : vector<16x32xf32>
    %c0_20 = arith.constant 0 : index
    %c0_21 = arith.constant 0 : index
    %c0_22 = arith.constant 0 : index
    %23 = vector.load %arg3[%c0_20, %c0_21, %c0_22] : memref<3x32x32xf32, #tpu.memory_space<vmem>>, vector<1x32x32xf32>
    %24 = vector.shape_cast %23 : vector<1x32x32xf32> to vector<32x32xf32>
    %c1_23 = arith.constant 1 : index
    %c0_24 = arith.constant 0 : index
    %c0_25 = arith.constant 0 : index
    %25 = vector.load %arg3[%c1_23, %c0_24, %c0_25] : memref<3x32x32xf32, #tpu.memory_space<vmem>>, vector<1x32x32xf32>
    %26 = vector.shape_cast %25 : vector<1x32x32xf32> to vector<32x32xf32>
    %c2_26 = arith.constant 2 : index
    %c0_27 = arith.constant 0 : index
    %c0_28 = arith.constant 0 : index
    %27 = vector.load %arg3[%c2_26, %c0_27, %c0_28] : memref<3x32x32xf32, #tpu.memory_space<vmem>>, vector<1x32x32xf32>
    %28 = vector.shape_cast %27 : vector<1x32x32xf32> to vector<32x32xf32>
    %c0_29 = arith.constant 0 : index
    %c0_30 = arith.constant 0 : index
    %29 = vector.load %arg5[%c0_29, %c0_30] : memref<1x32xf32, #tpu.memory_space<vmem>>, vector<1x32xf32>
    %30 = vector.shape_cast %29 : vector<1x32xf32> to vector<1x32xf32>
    %31 = vector.broadcast %30 : vector<1x32xf32> to vector<2x32xf32>
    %cst_31 = arith.constant 0.000000e+00 : f32
    %32 = vector.broadcast %cst_31 : f32 to vector<2x32xf32>
    %cst_32 = arith.constant dense<0.000000e+00> : vector<2x32xf32>
    %33 = tpu.matmul %32, %24, %cst_32 {dimension_numbers = #tpu.dot_dimension_numbers<[1], [0], [0], [1], [0, 0, 1, 1], [], []>} : vector<2x32xf32>, vector<32x32xf32>, vector<2x32xf32> -> vector<2x32xf32>
    %cst_33 = arith.constant dense<0.000000e+00> : vector<2x32xf32>
    %34 = tpu.matmul %32, %26, %cst_33 {dimension_numbers = #tpu.dot_dimension_numbers<[1], [0], [0], [1], [0, 0, 1, 1], [], []>} : vector<2x32xf32>, vector<32x32xf32>, vector<2x32xf32> -> vector<2x32xf32>
    %cst_34 = arith.constant dense<0.000000e+00> : vector<2x32xf32>
    %35 = tpu.matmul %32, %28, %cst_34 {dimension_numbers = #tpu.dot_dimension_numbers<[1], [0], [0], [1], [0, 0, 1, 1], [], []>} : vector<2x32xf32>, vector<32x32xf32>, vector<2x32xf32> -> vector<2x32xf32>
    %36 = arith.addf %35, %31 : vector<2x32xf32>
    %37 = vector.extract_strided_slice %8 {offsets = [0, 0], sizes = [2, 32], strides = [1, 1]} : vector<16x32xf32> to vector<2x32xf32>
    %38 = arith.addf %37, %33 : vector<2x32xf32>
    %39 = arith.negf %38 : vector<2x32xf32>
    %40 = math.exp %39 : vector<2x32xf32>
    %cst_35 = arith.constant 1.000000e+00 : f32
    %41 = vector.broadcast %cst_35 : f32 to vector<2x32xf32>
    %42 = arith.addf %41, %40 : vector<2x32xf32>
    %43 = arith.divf %41, %42 : vector<2x32xf32>
    %44 = vector.extract_strided_slice %15 {offsets = [0, 0], sizes = [2, 32], strides = [1, 1]} : vector<16x32xf32> to vector<2x32xf32>
    %45 = arith.addf %44, %34 : vector<2x32xf32>
    %46 = arith.negf %45 : vector<2x32xf32>
    %47 = math.exp %46 : vector<2x32xf32>
    %cst_36 = arith.constant 1.000000e+00 : f32
    %48 = vector.broadcast %cst_36 : f32 to vector<2x32xf32>
    %49 = arith.addf %48, %47 : vector<2x32xf32>
    %50 = arith.divf %48, %49 : vector<2x32xf32>
    %51 = vector.extract_strided_slice %22 {offsets = [0, 0], sizes = [2, 32], strides = [1, 1]} : vector<16x32xf32> to vector<2x32xf32>
    %52 = arith.mulf %43, %36 : vector<2x32xf32>
    %53 = arith.addf %51, %52 : vector<2x32xf32>
    %54 = math.tanh %53 : vector<2x32xf32>
    %cst_37 = arith.constant 1.000000e+00 : f32
    %55 = vector.broadcast %cst_37 : f32 to vector<2x32xf32>
    %56 = arith.subf %55, %50 : vector<2x32xf32>
    %57 = arith.mulf %56, %54 : vector<2x32xf32>
    %58 = arith.mulf %50, %32 : vector<2x32xf32>
    %59 = arith.addf %57, %58 : vector<2x32xf32>
    %cst_38 = arith.constant dense<0.000000e+00> : vector<2x32xf32>
    %60 = tpu.matmul %59, %24, %cst_38 {dimension_numbers = #tpu.dot_dimension_numbers<[1], [0], [0], [1], [0, 0, 1, 1], [], []>} : vector<2x32xf32>, vector<32x32xf32>, vector<2x32xf32> -> vector<2x32xf32>
    %cst_39 = arith.constant dense<0.000000e+00> : vector<2x32xf32>
    %61 = tpu.matmul %59, %26, %cst_39 {dimension_numbers = #tpu.dot_dimension_numbers<[1], [0], [0], [1], [0, 0, 1, 1], [], []>} : vector<2x32xf32>, vector<32x32xf32>, vector<2x32xf32> -> vector<2x32xf32>
    %cst_40 = arith.constant dense<0.000000e+00> : vector<2x32xf32>
    %62 = tpu.matmul %59, %28, %cst_40 {dimension_numbers = #tpu.dot_dimension_numbers<[1], [0], [0], [1], [0, 0, 1, 1], [], []>} : vector<2x32xf32>, vector<32x32xf32>, vector<2x32xf32> -> vector<2x32xf32>
    %63 = arith.addf %62, %31 : vector<2x32xf32>
    %64 = vector.extract_strided_slice %8 {offsets = [2, 0], sizes = [2, 32], strides = [1, 1]} : vector<16x32xf32> to vector<2x32xf32>
    %65 = arith.addf %64, %60 : vector<2x32xf32>
    %66 = arith.negf %65 : vector<2x32xf32>
    %67 = math.exp %66 : vector<2x32xf32>
    %cst_41 = arith.constant 1.000000e+00 : f32
    %68 = vector.broadcast %cst_41 : f32 to vector<2x32xf32>
    %69 = arith.addf %68, %67 : vector<2x32xf32>
    %70 = arith.divf %68, %69 : vector<2x32xf32>
    %71 = vector.extract_strided_slice %15 {offsets = [2, 0], sizes = [2, 32], strides = [1, 1]} : vector<16x32xf32> to vector<2x32xf32>
    %72 = arith.addf %71, %61 : vector<2x32xf32>
    %73 = arith.negf %72 : vector<2x32xf32>
    %74 = math.exp %73 : vector<2x32xf32>
    %cst_42 = arith.constant 1.000000e+00 : f32
    %75 = vector.broadcast %cst_42 : f32 to vector<2x32xf32>
    %76 = arith.addf %75, %74 : vector<2x32xf32>
    %77 = arith.divf %75, %76 : vector<2x32xf32>
    %78 = vector.extract_strided_slice %22 {offsets = [2, 0], sizes = [2, 32], strides = [1, 1]} : vector<16x32xf32> to vector<2x32xf32>
    %79 = arith.mulf %70, %63 : vector<2x32xf32>
    %80 = arith.addf %78, %79 : vector<2x32xf32>
    %81 = math.tanh %80 : vector<2x32xf32>
    %cst_43 = arith.constant 1.000000e+00 : f32
    %82 = vector.broadcast %cst_43 : f32 to vector<2x32xf32>
    %83 = arith.subf %82, %77 : vector<2x32xf32>
    %84 = arith.mulf %83, %81 : vector<2x32xf32>
    %85 = arith.mulf %77, %59 : vector<2x32xf32>
    %86 = arith.addf %84, %85 : vector<2x32xf32>
    %cst_44 = arith.constant dense<0.000000e+00> : vector<2x32xf32>
    %87 = tpu.matmul %86, %24, %cst_44 {dimension_numbers = #tpu.dot_dimension_numbers<[1], [0], [0], [1], [0, 0, 1, 1], [], []>} : vector<2x32xf32>, vector<32x32xf32>, vector<2x32xf32> -> vector<2x32xf32>
    %cst_45 = arith.constant dense<0.000000e+00> : vector<2x32xf32>
    %88 = tpu.matmul %86, %26, %cst_45 {dimension_numbers = #tpu.dot_dimension_numbers<[1], [0], [0], [1], [0, 0, 1, 1], [], []>} : vector<2x32xf32>, vector<32x32xf32>, vector<2x32xf32> -> vector<2x32xf32>
    %cst_46 = arith.constant dense<0.000000e+00> : vector<2x32xf32>
    %89 = tpu.matmul %86, %28, %cst_46 {dimension_numbers = #tpu.dot_dimension_numbers<[1], [0], [0], [1], [0, 0, 1, 1], [], []>} : vector<2x32xf32>, vector<32x32xf32>, vector<2x32xf32> -> vector<2x32xf32>
    %90 = arith.addf %89, %31 : vector<2x32xf32>
    %91 = vector.extract_strided_slice %8 {offsets = [4, 0], sizes = [2, 32], strides = [1, 1]} : vector<16x32xf32> to vector<2x32xf32>
    %92 = arith.addf %91, %87 : vector<2x32xf32>
    %93 = arith.negf %92 : vector<2x32xf32>
    %94 = math.exp %93 : vector<2x32xf32>
    %cst_47 = arith.constant 1.000000e+00 : f32
    %95 = vector.broadcast %cst_47 : f32 to vector<2x32xf32>
    %96 = arith.addf %95, %94 : vector<2x32xf32>
    %97 = arith.divf %95, %96 : vector<2x32xf32>
    %98 = vector.extract_strided_slice %15 {offsets = [4, 0], sizes = [2, 32], strides = [1, 1]} : vector<16x32xf32> to vector<2x32xf32>
    %99 = arith.addf %98, %88 : vector<2x32xf32>
    %100 = arith.negf %99 : vector<2x32xf32>
    %101 = math.exp %100 : vector<2x32xf32>
    %cst_48 = arith.constant 1.000000e+00 : f32
    %102 = vector.broadcast %cst_48 : f32 to vector<2x32xf32>
    %103 = arith.addf %102, %101 : vector<2x32xf32>
    %104 = arith.divf %102, %103 : vector<2x32xf32>
    %105 = vector.extract_strided_slice %22 {offsets = [4, 0], sizes = [2, 32], strides = [1, 1]} : vector<16x32xf32> to vector<2x32xf32>
    %106 = arith.mulf %97, %90 : vector<2x32xf32>
    %107 = arith.addf %105, %106 : vector<2x32xf32>
    %108 = math.tanh %107 : vector<2x32xf32>
    %cst_49 = arith.constant 1.000000e+00 : f32
    %109 = vector.broadcast %cst_49 : f32 to vector<2x32xf32>
    %110 = arith.subf %109, %104 : vector<2x32xf32>
    %111 = arith.mulf %110, %108 : vector<2x32xf32>
    %112 = arith.mulf %104, %86 : vector<2x32xf32>
    %113 = arith.addf %111, %112 : vector<2x32xf32>
    %cst_50 = arith.constant dense<0.000000e+00> : vector<2x32xf32>
    %114 = tpu.matmul %113, %24, %cst_50 {dimension_numbers = #tpu.dot_dimension_numbers<[1], [0], [0], [1], [0, 0, 1, 1], [], []>} : vector<2x32xf32>, vector<32x32xf32>, vector<2x32xf32> -> vector<2x32xf32>
    %cst_51 = arith.constant dense<0.000000e+00> : vector<2x32xf32>
    %115 = tpu.matmul %113, %26, %cst_51 {dimension_numbers = #tpu.dot_dimension_numbers<[1], [0], [0], [1], [0, 0, 1, 1], [], []>} : vector<2x32xf32>, vector<32x32xf32>, vector<2x32xf32> -> vector<2x32xf32>
    %cst_52 = arith.constant dense<0.000000e+00> : vector<2x32xf32>
    %116 = tpu.matmul %113, %28, %cst_52 {dimension_numbers = #tpu.dot_dimension_numbers<[1], [0], [0], [1], [0, 0, 1, 1], [], []>} : vector<2x32xf32>, vector<32x32xf32>, vector<2x32xf32> -> vector<2x32xf32>
    %117 = arith.addf %116, %31 : vector<2x32xf32>
    %118 = vector.extract_strided_slice %8 {offsets = [6, 0], sizes = [2, 32], strides = [1, 1]} : vector<16x32xf32> to vector<2x32xf32>
    %119 = arith.addf %118, %114 : vector<2x32xf32>
    %120 = arith.negf %119 : vector<2x32xf32>
    %121 = math.exp %120 : vector<2x32xf32>
    %cst_53 = arith.constant 1.000000e+00 : f32
    %122 = vector.broadcast %cst_53 : f32 to vector<2x32xf32>
    %123 = arith.addf %122, %121 : vector<2x32xf32>
    %124 = arith.divf %122, %123 : vector<2x32xf32>
    %125 = vector.extract_strided_slice %15 {offsets = [6, 0], sizes = [2, 32], strides = [1, 1]} : vector<16x32xf32> to vector<2x32xf32>
    %126 = arith.addf %125, %115 : vector<2x32xf32>
    %127 = arith.negf %126 : vector<2x32xf32>
    %128 = math.exp %127 : vector<2x32xf32>
    %cst_54 = arith.constant 1.000000e+00 : f32
    %129 = vector.broadcast %cst_54 : f32 to vector<2x32xf32>
    %130 = arith.addf %129, %128 : vector<2x32xf32>
    %131 = arith.divf %129, %130 : vector<2x32xf32>
    %132 = vector.extract_strided_slice %22 {offsets = [6, 0], sizes = [2, 32], strides = [1, 1]} : vector<16x32xf32> to vector<2x32xf32>
    %133 = arith.mulf %124, %117 : vector<2x32xf32>
    %134 = arith.addf %132, %133 : vector<2x32xf32>
    %135 = math.tanh %134 : vector<2x32xf32>
    %cst_55 = arith.constant 1.000000e+00 : f32
    %136 = vector.broadcast %cst_55 : f32 to vector<2x32xf32>
    %137 = arith.subf %136, %131 : vector<2x32xf32>
    %138 = arith.mulf %137, %135 : vector<2x32xf32>
    %139 = arith.mulf %131, %113 : vector<2x32xf32>
    %140 = arith.addf %138, %139 : vector<2x32xf32>
    %cst_56 = arith.constant dense<0.000000e+00> : vector<2x32xf32>
    %141 = tpu.matmul %140, %24, %cst_56 {dimension_numbers = #tpu.dot_dimension_numbers<[1], [0], [0], [1], [0, 0, 1, 1], [], []>} : vector<2x32xf32>, vector<32x32xf32>, vector<2x32xf32> -> vector<2x32xf32>
    %cst_57 = arith.constant dense<0.000000e+00> : vector<2x32xf32>
    %142 = tpu.matmul %140, %26, %cst_57 {dimension_numbers = #tpu.dot_dimension_numbers<[1], [0], [0], [1], [0, 0, 1, 1], [], []>} : vector<2x32xf32>, vector<32x32xf32>, vector<2x32xf32> -> vector<2x32xf32>
    %cst_58 = arith.constant dense<0.000000e+00> : vector<2x32xf32>
    %143 = tpu.matmul %140, %28, %cst_58 {dimension_numbers = #tpu.dot_dimension_numbers<[1], [0], [0], [1], [0, 0, 1, 1], [], []>} : vector<2x32xf32>, vector<32x32xf32>, vector<2x32xf32> -> vector<2x32xf32>
    %144 = arith.addf %143, %31 : vector<2x32xf32>
    %145 = vector.extract_strided_slice %8 {offsets = [8, 0], sizes = [2, 32], strides = [1, 1]} : vector<16x32xf32> to vector<2x32xf32>
    %146 = arith.addf %145, %141 : vector<2x32xf32>
    %147 = arith.negf %146 : vector<2x32xf32>
    %148 = math.exp %147 : vector<2x32xf32>
    %cst_59 = arith.constant 1.000000e+00 : f32
    %149 = vector.broadcast %cst_59 : f32 to vector<2x32xf32>
    %150 = arith.addf %149, %148 : vector<2x32xf32>
    %151 = arith.divf %149, %150 : vector<2x32xf32>
    %152 = vector.extract_strided_slice %15 {offsets = [8, 0], sizes = [2, 32], strides = [1, 1]} : vector<16x32xf32> to vector<2x32xf32>
    %153 = arith.addf %152, %142 : vector<2x32xf32>
    %154 = arith.negf %153 : vector<2x32xf32>
    %155 = math.exp %154 : vector<2x32xf32>
    %cst_60 = arith.constant 1.000000e+00 : f32
    %156 = vector.broadcast %cst_60 : f32 to vector<2x32xf32>
    %157 = arith.addf %156, %155 : vector<2x32xf32>
    %158 = arith.divf %156, %157 : vector<2x32xf32>
    %159 = vector.extract_strided_slice %22 {offsets = [8, 0], sizes = [2, 32], strides = [1, 1]} : vector<16x32xf32> to vector<2x32xf32>
    %160 = arith.mulf %151, %144 : vector<2x32xf32>
    %161 = arith.addf %159, %160 : vector<2x32xf32>
    %162 = math.tanh %161 : vector<2x32xf32>
    %cst_61 = arith.constant 1.000000e+00 : f32
    %163 = vector.broadcast %cst_61 : f32 to vector<2x32xf32>
    %164 = arith.subf %163, %158 : vector<2x32xf32>
    %165 = arith.mulf %164, %162 : vector<2x32xf32>
    %166 = arith.mulf %158, %140 : vector<2x32xf32>
    %167 = arith.addf %165, %166 : vector<2x32xf32>
    %cst_62 = arith.constant dense<0.000000e+00> : vector<2x32xf32>
    %168 = tpu.matmul %167, %24, %cst_62 {dimension_numbers = #tpu.dot_dimension_numbers<[1], [0], [0], [1], [0, 0, 1, 1], [], []>} : vector<2x32xf32>, vector<32x32xf32>, vector<2x32xf32> -> vector<2x32xf32>
    %cst_63 = arith.constant dense<0.000000e+00> : vector<2x32xf32>
    %169 = tpu.matmul %167, %26, %cst_63 {dimension_numbers = #tpu.dot_dimension_numbers<[1], [0], [0], [1], [0, 0, 1, 1], [], []>} : vector<2x32xf32>, vector<32x32xf32>, vector<2x32xf32> -> vector<2x32xf32>
    %cst_64 = arith.constant dense<0.000000e+00> : vector<2x32xf32>
    %170 = tpu.matmul %167, %28, %cst_64 {dimension_numbers = #tpu.dot_dimension_numbers<[1], [0], [0], [1], [0, 0, 1, 1], [], []>} : vector<2x32xf32>, vector<32x32xf32>, vector<2x32xf32> -> vector<2x32xf32>
    %171 = arith.addf %170, %31 : vector<2x32xf32>
    %172 = vector.extract_strided_slice %8 {offsets = [10, 0], sizes = [2, 32], strides = [1, 1]} : vector<16x32xf32> to vector<2x32xf32>
    %173 = arith.addf %172, %168 : vector<2x32xf32>
    %174 = arith.negf %173 : vector<2x32xf32>
    %175 = math.exp %174 : vector<2x32xf32>
    %cst_65 = arith.constant 1.000000e+00 : f32
    %176 = vector.broadcast %cst_65 : f32 to vector<2x32xf32>
    %177 = arith.addf %176, %175 : vector<2x32xf32>
    %178 = arith.divf %176, %177 : vector<2x32xf32>
    %179 = vector.extract_strided_slice %15 {offsets = [10, 0], sizes = [2, 32], strides = [1, 1]} : vector<16x32xf32> to vector<2x32xf32>
    %180 = arith.addf %179, %169 : vector<2x32xf32>
    %181 = arith.negf %180 : vector<2x32xf32>
    %182 = math.exp %181 : vector<2x32xf32>
    %cst_66 = arith.constant 1.000000e+00 : f32
    %183 = vector.broadcast %cst_66 : f32 to vector<2x32xf32>
    %184 = arith.addf %183, %182 : vector<2x32xf32>
    %185 = arith.divf %183, %184 : vector<2x32xf32>
    %186 = vector.extract_strided_slice %22 {offsets = [10, 0], sizes = [2, 32], strides = [1, 1]} : vector<16x32xf32> to vector<2x32xf32>
    %187 = arith.mulf %178, %171 : vector<2x32xf32>
    %188 = arith.addf %186, %187 : vector<2x32xf32>
    %189 = math.tanh %188 : vector<2x32xf32>
    %cst_67 = arith.constant 1.000000e+00 : f32
    %190 = vector.broadcast %cst_67 : f32 to vector<2x32xf32>
    %191 = arith.subf %190, %185 : vector<2x32xf32>
    %192 = arith.mulf %191, %189 : vector<2x32xf32>
    %193 = arith.mulf %185, %167 : vector<2x32xf32>
    %194 = arith.addf %192, %193 : vector<2x32xf32>
    %cst_68 = arith.constant dense<0.000000e+00> : vector<2x32xf32>
    %195 = tpu.matmul %194, %24, %cst_68 {dimension_numbers = #tpu.dot_dimension_numbers<[1], [0], [0], [1], [0, 0, 1, 1], [], []>} : vector<2x32xf32>, vector<32x32xf32>, vector<2x32xf32> -> vector<2x32xf32>
    %cst_69 = arith.constant dense<0.000000e+00> : vector<2x32xf32>
    %196 = tpu.matmul %194, %26, %cst_69 {dimension_numbers = #tpu.dot_dimension_numbers<[1], [0], [0], [1], [0, 0, 1, 1], [], []>} : vector<2x32xf32>, vector<32x32xf32>, vector<2x32xf32> -> vector<2x32xf32>
    %cst_70 = arith.constant dense<0.000000e+00> : vector<2x32xf32>
    %197 = tpu.matmul %194, %28, %cst_70 {dimension_numbers = #tpu.dot_dimension_numbers<[1], [0], [0], [1], [0, 0, 1, 1], [], []>} : vector<2x32xf32>, vector<32x32xf32>, vector<2x32xf32> -> vector<2x32xf32>
    %198 = arith.addf %197, %31 : vector<2x32xf32>
    %199 = vector.extract_strided_slice %8 {offsets = [12, 0], sizes = [2, 32], strides = [1, 1]} : vector<16x32xf32> to vector<2x32xf32>
    %200 = arith.addf %199, %195 : vector<2x32xf32>
    %201 = arith.negf %200 : vector<2x32xf32>
    %202 = math.exp %201 : vector<2x32xf32>
    %cst_71 = arith.constant 1.000000e+00 : f32
    %203 = vector.broadcast %cst_71 : f32 to vector<2x32xf32>
    %204 = arith.addf %203, %202 : vector<2x32xf32>
    %205 = arith.divf %203, %204 : vector<2x32xf32>
    %206 = vector.extract_strided_slice %15 {offsets = [12, 0], sizes = [2, 32], strides = [1, 1]} : vector<16x32xf32> to vector<2x32xf32>
    %207 = arith.addf %206, %196 : vector<2x32xf32>
    %208 = arith.negf %207 : vector<2x32xf32>
    %209 = math.exp %208 : vector<2x32xf32>
    %cst_72 = arith.constant 1.000000e+00 : f32
    %210 = vector.broadcast %cst_72 : f32 to vector<2x32xf32>
    %211 = arith.addf %210, %209 : vector<2x32xf32>
    %212 = arith.divf %210, %211 : vector<2x32xf32>
    %213 = vector.extract_strided_slice %22 {offsets = [12, 0], sizes = [2, 32], strides = [1, 1]} : vector<16x32xf32> to vector<2x32xf32>
    %214 = arith.mulf %205, %198 : vector<2x32xf32>
    %215 = arith.addf %213, %214 : vector<2x32xf32>
    %216 = math.tanh %215 : vector<2x32xf32>
    %cst_73 = arith.constant 1.000000e+00 : f32
    %217 = vector.broadcast %cst_73 : f32 to vector<2x32xf32>
    %218 = arith.subf %217, %212 : vector<2x32xf32>
    %219 = arith.mulf %218, %216 : vector<2x32xf32>
    %220 = arith.mulf %212, %194 : vector<2x32xf32>
    %221 = arith.addf %219, %220 : vector<2x32xf32>
    %cst_74 = arith.constant dense<0.000000e+00> : vector<2x32xf32>
    %222 = tpu.matmul %221, %24, %cst_74 {dimension_numbers = #tpu.dot_dimension_numbers<[1], [0], [0], [1], [0, 0, 1, 1], [], []>} : vector<2x32xf32>, vector<32x32xf32>, vector<2x32xf32> -> vector<2x32xf32>
    %cst_75 = arith.constant dense<0.000000e+00> : vector<2x32xf32>
    %223 = tpu.matmul %221, %26, %cst_75 {dimension_numbers = #tpu.dot_dimension_numbers<[1], [0], [0], [1], [0, 0, 1, 1], [], []>} : vector<2x32xf32>, vector<32x32xf32>, vector<2x32xf32> -> vector<2x32xf32>
    %cst_76 = arith.constant dense<0.000000e+00> : vector<2x32xf32>
    %224 = tpu.matmul %221, %28, %cst_76 {dimension_numbers = #tpu.dot_dimension_numbers<[1], [0], [0], [1], [0, 0, 1, 1], [], []>} : vector<2x32xf32>, vector<32x32xf32>, vector<2x32xf32> -> vector<2x32xf32>
    %225 = arith.addf %224, %31 : vector<2x32xf32>
    %226 = vector.extract_strided_slice %8 {offsets = [14, 0], sizes = [2, 32], strides = [1, 1]} : vector<16x32xf32> to vector<2x32xf32>
    %227 = arith.addf %226, %222 : vector<2x32xf32>
    %228 = arith.negf %227 : vector<2x32xf32>
    %229 = math.exp %228 : vector<2x32xf32>
    %cst_77 = arith.constant 1.000000e+00 : f32
    %230 = vector.broadcast %cst_77 : f32 to vector<2x32xf32>
    %231 = arith.addf %230, %229 : vector<2x32xf32>
    %232 = arith.divf %230, %231 : vector<2x32xf32>
    %233 = vector.extract_strided_slice %15 {offsets = [14, 0], sizes = [2, 32], strides = [1, 1]} : vector<16x32xf32> to vector<2x32xf32>
    %234 = arith.addf %233, %223 : vector<2x32xf32>
    %235 = arith.negf %234 : vector<2x32xf32>
    %236 = math.exp %235 : vector<2x32xf32>
    %cst_78 = arith.constant 1.000000e+00 : f32
    %237 = vector.broadcast %cst_78 : f32 to vector<2x32xf32>
    %238 = arith.addf %237, %236 : vector<2x32xf32>
    %239 = arith.divf %237, %238 : vector<2x32xf32>
    %240 = vector.extract_strided_slice %22 {offsets = [14, 0], sizes = [2, 32], strides = [1, 1]} : vector<16x32xf32> to vector<2x32xf32>
    %241 = arith.mulf %232, %225 : vector<2x32xf32>
    %242 = arith.addf %240, %241 : vector<2x32xf32>
    %243 = math.tanh %242 : vector<2x32xf32>
    %cst_79 = arith.constant 1.000000e+00 : f32
    %244 = vector.broadcast %cst_79 : f32 to vector<2x32xf32>
    %245 = arith.subf %244, %239 : vector<2x32xf32>
    %246 = arith.mulf %245, %243 : vector<2x32xf32>
    %247 = arith.mulf %239, %221 : vector<2x32xf32>
    %248 = arith.addf %246, %247 : vector<2x32xf32>
    %249 = tpu.concatenate %59, %86, %113, %140, %167, %194, %221, %248 in 1 : vector<2x32xf32>, vector<2x32xf32>, vector<2x32xf32>, vector<2x32xf32>, vector<2x32xf32>, vector<2x32xf32>, vector<2x32xf32>, vector<2x32xf32> -> vector<2x256xf32>
    %c0_80 = arith.constant 0 : index
    %c0_81 = arith.constant 0 : index
    %250 = vector.load %arg10[%c0_80, %c0_81] : memref<2x256xf32, #tpu.memory_space<vmem>>, vector<2x256xf32>
    tpu.vector_store %arg10[%c0_80, %c0_81], %249 {strides = array<i32>} : memref<2x256xf32, #tpu.memory_space<vmem>>, vector<2x256xf32>,
    %251 = tpu.concatenate %59, %86, %113, %140, %167, %194, %221, %248 in 0 : vector<2x32xf32>, vector<2x32xf32>, vector<2x32xf32>, vector<2x32xf32>, vector<2x32xf32>, vector<2x32xf32>, vector<2x32xf32>, vector<2x32xf32> -> vector<16x32xf32>
    %c0_82 = arith.constant 0 : index
    %c0_83 = arith.constant 0 : index
    %c0_84 = arith.constant 0 : index
    %252 = vector.load %arg6[%c0_82, %c0_83, %c0_84] : memref<3x32x4xf32, #tpu.memory_space<vmem>>, vector<1x32x4xf32>
    %253 = vector.shape_cast %252 : vector<1x32x4xf32> to vector<32x4xf32>
    %cst_85 = arith.constant dense<0.000000e+00> : vector<16x4xf32>
    %254 = tpu.matmul %251, %253, %cst_85 {dimension_numbers = #tpu.dot_dimension_numbers<[1], [0], [0], [1], [0, 0, 1, 1], [], []>} : vector<16x32xf32>, vector<32x4xf32>, vector<16x4xf32> -> vector<16x4xf32>
    %c0_86 = arith.constant 0 : index
    %c0_87 = arith.constant 0 : index
    %c0_88 = arith.constant 0 : index
    %255 = vector.load %arg8[%c0_86, %c0_87, %c0_88] : memref<3x1x4xf32, #tpu.memory_space<vmem>>, vector<1x1x4xf32>
    %256 = vector.shape_cast %255 : vector<1x1x4xf32> to vector<1x4xf32>
    %257 = vector.broadcast %256 : vector<1x4xf32> to vector<16x4xf32>
    %258 = arith.addf %254, %257 : vector<16x4xf32>
    %c1_89 = arith.constant 1 : index
    %c0_90 = arith.constant 0 : index
    %c0_91 = arith.constant 0 : index
    %259 = vector.load %arg6[%c1_89, %c0_90, %c0_91] : memref<3x32x4xf32, #tpu.memory_space<vmem>>, vector<1x32x4xf32>
    %260 = vector.shape_cast %259 : vector<1x32x4xf32> to vector<32x4xf32>
    %cst_92 = arith.constant dense<0.000000e+00> : vector<16x4xf32>
    %261 = tpu.matmul %251, %260, %cst_92 {dimension_numbers = #tpu.dot_dimension_numbers<[1], [0], [0], [1], [0, 0, 1, 1], [], []>} : vector<16x32xf32>, vector<32x4xf32>, vector<16x4xf32> -> vector<16x4xf32>
    %c1_93 = arith.constant 1 : index
    %c0_94 = arith.constant 0 : index
    %c0_95 = arith.constant 0 : index
    %262 = vector.load %arg8[%c1_93, %c0_94, %c0_95] : memref<3x1x4xf32, #tpu.memory_space<vmem>>, vector<1x1x4xf32>
    %263 = vector.shape_cast %262 : vector<1x1x4xf32> to vector<1x4xf32>
    %264 = vector.broadcast %263 : vector<1x4xf32> to vector<16x4xf32>
    %265 = arith.addf %261, %264 : vector<16x4xf32>
    %c2_96 = arith.constant 2 : index
    %c0_97 = arith.constant 0 : index
    %c0_98 = arith.constant 0 : index
    %266 = vector.load %arg6[%c2_96, %c0_97, %c0_98] : memref<3x32x4xf32, #tpu.memory_space<vmem>>, vector<1x32x4xf32>
    %267 = vector.shape_cast %266 : vector<1x32x4xf32> to vector<32x4xf32>
    %cst_99 = arith.constant dense<0.000000e+00> : vector<16x4xf32>
    %268 = tpu.matmul %251, %267, %cst_99 {dimension_numbers = #tpu.dot_dimension_numbers<[1], [0], [0], [1], [0, 0, 1, 1], [], []>} : vector<16x32xf32>, vector<32x4xf32>, vector<16x4xf32> -> vector<16x4xf32>
    %c2_100 = arith.constant 2 : index
    %c0_101 = arith.constant 0 : index
    %c0_102 = arith.constant 0 : index
    %269 = vector.load %arg8[%c2_100, %c0_101, %c0_102] : memref<3x1x4xf32, #tpu.memory_space<vmem>>, vector<1x1x4xf32>
    %270 = vector.shape_cast %269 : vector<1x1x4xf32> to vector<1x4xf32>
    %271 = vector.broadcast %270 : vector<1x4xf32> to vector<16x4xf32>
    %272 = arith.addf %268, %271 : vector<16x4xf32>
    %c0_103 = arith.constant 0 : index
    %c0_104 = arith.constant 0 : index
    %c0_105 = arith.constant 0 : index
    %273 = vector.load %arg7[%c0_103, %c0_104, %c0_105] : memref<3x4x4xf32, #tpu.memory_space<vmem>>, vector<1x4x4xf32>
    %274 = vector.shape_cast %273 : vector<1x4x4xf32> to vector<4x4xf32>
    %c1_106 = arith.constant 1 : index
    %c0_107 = arith.constant 0 : index
    %c0_108 = arith.constant 0 : index
    %275 = vector.load %arg7[%c1_106, %c0_107, %c0_108] : memref<3x4x4xf32, #tpu.memory_space<vmem>>, vector<1x4x4xf32>
    %276 = vector.shape_cast %275 : vector<1x4x4xf32> to vector<4x4xf32>
    %c2_109 = arith.constant 2 : index
    %c0_110 = arith.constant 0 : index
    %c0_111 = arith.constant 0 : index
    %277 = vector.load %arg7[%c2_109, %c0_110, %c0_111] : memref<3x4x4xf32, #tpu.memory_space<vmem>>, vector<1x4x4xf32>
    %278 = vector.shape_cast %277 : vector<1x4x4xf32> to vector<4x4xf32>
    %c0_112 = arith.constant 0 : index
    %c0_113 = arith.constant 0 : index
    %279 = vector.load %arg9[%c0_112, %c0_113] : memref<1x4xf32, #tpu.memory_space<vmem>>, vector<1x4xf32>
    %280 = vector.shape_cast %279 : vector<1x4xf32> to vector<1x4xf32>
    %281 = vector.broadcast %280 : vector<1x4xf32> to vector<2x4xf32>
    %cst_114 = arith.constant 0.000000e+00 : f32
    %282 = vector.broadcast %cst_114 : f32 to vector<2x4xf32>
    %cst_115 = arith.constant dense<0.000000e+00> : vector<2x4xf32>
    %283 = tpu.matmul %282, %274, %cst_115 {dimension_numbers = #tpu.dot_dimension_numbers<[1], [0], [0], [1], [0, 0, 1, 1], [], []>} : vector<2x4xf32>, vector<4x4xf32>, vector<2x4xf32> -> vector<2x4xf32>
    %cst_116 = arith.constant dense<0.000000e+00> : vector<2x4xf32>
    %284 = tpu.matmul %282, %276, %cst_116 {dimension_numbers = #tpu.dot_dimension_numbers<[1], [0], [0], [1], [0, 0, 1, 1], [], []>} : vector<2x4xf32>, vector<4x4xf32>, vector<2x4xf32> -> vector<2x4xf32>
    %cst_117 = arith.constant dense<0.000000e+00> : vector<2x4xf32>
    %285 = tpu.matmul %282, %278, %cst_117 {dimension_numbers = #tpu.dot_dimension_numbers<[1], [0], [0], [1], [0, 0, 1, 1], [], []>} : vector<2x4xf32>, vector<4x4xf32>, vector<2x4xf32> -> vector<2x4xf32>
    %286 = arith.addf %285, %281 : vector<2x4xf32>
    %287 = vector.extract_strided_slice %258 {offsets = [0, 0], sizes = [2, 4], strides = [1, 1]} : vector<16x4xf32> to vector<2x4xf32>
    %288 = arith.addf %287, %283 : vector<2x4xf32>
    %289 = arith.negf %288 : vector<2x4xf32>
    %290 = math.exp %289 : vector<2x4xf32>
    %cst_118 = arith.constant 1.000000e+00 : f32
    %291 = vector.broadcast %cst_118 : f32 to vector<2x4xf32>
    %292 = arith.addf %291, %290 : vector<2x4xf32>
    %293 = arith.divf %291, %292 : vector<2x4xf32>
    %294 = vector.extract_strided_slice %265 {offsets = [0, 0], sizes = [2, 4], strides = [1, 1]} : vector<16x4xf32> to vector<2x4xf32>
    %295 = arith.addf %294, %284 : vector<2x4xf32>
    %296 = arith.negf %295 : vector<2x4xf32>
    %297 = math.exp %296 : vector<2x4xf32>
    %cst_119 = arith.constant 1.000000e+00 : f32
    %298 = vector.broadcast %cst_119 : f32 to vector<2x4xf32>
    %299 = arith.addf %298, %297 : vector<2x4xf32>
    %300 = arith.divf %298, %299 : vector<2x4xf32>
    %301 = vector.extract_strided_slice %272 {offsets = [0, 0], sizes = [2, 4], strides = [1, 1]} : vector<16x4xf32> to vector<2x4xf32>
    %302 = arith.mulf %293, %286 : vector<2x4xf32>
    %303 = arith.addf %301, %302 : vector<2x4xf32>
    %304 = math.tanh %303 : vector<2x4xf32>
    %cst_120 = arith.constant 1.000000e+00 : f32
    %305 = vector.broadcast %cst_120 : f32 to vector<2x4xf32>
    %306 = arith.subf %305, %300 : vector<2x4xf32>
    %307 = arith.mulf %306, %304 : vector<2x4xf32>
    %308 = arith.mulf %300, %282 : vector<2x4xf32>
    %309 = arith.addf %307, %308 : vector<2x4xf32>
    %cst_121 = arith.constant dense<0.000000e+00> : vector<2x4xf32>
    %310 = tpu.matmul %309, %274, %cst_121 {dimension_numbers = #tpu.dot_dimension_numbers<[1], [0], [0], [1], [0, 0, 1, 1], [], []>} : vector<2x4xf32>, vector<4x4xf32>, vector<2x4xf32> -> vector<2x4xf32>
    %cst_122 = arith.constant dense<0.000000e+00> : vector<2x4xf32>
    %311 = tpu.matmul %309, %276, %cst_122 {dimension_numbers = #tpu.dot_dimension_numbers<[1], [0], [0], [1], [0, 0, 1, 1], [], []>} : vector<2x4xf32>, vector<4x4xf32>, vector<2x4xf32> -> vector<2x4xf32>
    %cst_123 = arith.constant dense<0.000000e+00> : vector<2x4xf32>
    %312 = tpu.matmul %309, %278, %cst_123 {dimension_numbers = #tpu.dot_dimension_numbers<[1], [0], [0], [1], [0, 0, 1, 1], [], []>} : vector<2x4xf32>, vector<4x4xf32>, vector<2x4xf32> -> vector<2x4xf32>
    %313 = arith.addf %312, %281 : vector<2x4xf32>
    %314 = vector.extract_strided_slice %258 {offsets = [2, 0], sizes = [2, 4], strides = [1, 1]} : vector<16x4xf32> to vector<2x4xf32>
    %315 = arith.addf %314, %310 : vector<2x4xf32>
    %316 = arith.negf %315 : vector<2x4xf32>
    %317 = math.exp %316 : vector<2x4xf32>
    %cst_124 = arith.constant 1.000000e+00 : f32
    %318 = vector.broadcast %cst_124 : f32 to vector<2x4xf32>
    %319 = arith.addf %318, %317 : vector<2x4xf32>
    %320 = arith.divf %318, %319 : vector<2x4xf32>
    %321 = vector.extract_strided_slice %265 {offsets = [2, 0], sizes = [2, 4], strides = [1, 1]} : vector<16x4xf32> to vector<2x4xf32>
    %322 = arith.addf %321, %311 : vector<2x4xf32>
    %323 = arith.negf %322 : vector<2x4xf32>
    %324 = math.exp %323 : vector<2x4xf32>
    %cst_125 = arith.constant 1.000000e+00 : f32
    %325 = vector.broadcast %cst_125 : f32 to vector<2x4xf32>
    %326 = arith.addf %325, %324 : vector<2x4xf32>
    %327 = arith.divf %325, %326 : vector<2x4xf32>
    %328 = vector.extract_strided_slice %272 {offsets = [2, 0], sizes = [2, 4], strides = [1, 1]} : vector<16x4xf32> to vector<2x4xf32>
    %329 = arith.mulf %320, %313 : vector<2x4xf32>
    %330 = arith.addf %328, %329 : vector<2x4xf32>
    %331 = math.tanh %330 : vector<2x4xf32>
    %cst_126 = arith.constant 1.000000e+00 : f32
    %332 = vector.broadcast %cst_126 : f32 to vector<2x4xf32>
    %333 = arith.subf %332, %327 : vector<2x4xf32>
    %334 = arith.mulf %333, %331 : vector<2x4xf32>
    %335 = arith.mulf %327, %309 : vector<2x4xf32>
    %336 = arith.addf %334, %335 : vector<2x4xf32>
    %cst_127 = arith.constant dense<0.000000e+00> : vector<2x4xf32>
    %337 = tpu.matmul %336, %274, %cst_127 {dimension_numbers = #tpu.dot_dimension_numbers<[1], [0], [0], [1], [0, 0, 1, 1], [], []>} : vector<2x4xf32>, vector<4x4xf32>, vector<2x4xf32> -> vector<2x4xf32>
    %cst_128 = arith.constant dense<0.000000e+00> : vector<2x4xf32>
    %338 = tpu.matmul %336, %276, %cst_128 {dimension_numbers = #tpu.dot_dimension_numbers<[1], [0], [0], [1], [0, 0, 1, 1], [], []>} : vector<2x4xf32>, vector<4x4xf32>, vector<2x4xf32> -> vector<2x4xf32>
    %cst_129 = arith.constant dense<0.000000e+00> : vector<2x4xf32>
    %339 = tpu.matmul %336, %278, %cst_129 {dimension_numbers = #tpu.dot_dimension_numbers<[1], [0], [0], [1], [0, 0, 1, 1], [], []>} : vector<2x4xf32>, vector<4x4xf32>, vector<2x4xf32> -> vector<2x4xf32>
    %340 = arith.addf %339, %281 : vector<2x4xf32>
    %341 = vector.extract_strided_slice %258 {offsets = [4, 0], sizes = [2, 4], strides = [1, 1]} : vector<16x4xf32> to vector<2x4xf32>
    %342 = arith.addf %341, %337 : vector<2x4xf32>
    %343 = arith.negf %342 : vector<2x4xf32>
    %344 = math.exp %343 : vector<2x4xf32>
    %cst_130 = arith.constant 1.000000e+00 : f32
    %345 = vector.broadcast %cst_130 : f32 to vector<2x4xf32>
    %346 = arith.addf %345, %344 : vector<2x4xf32>
    %347 = arith.divf %345, %346 : vector<2x4xf32>
    %348 = vector.extract_strided_slice %265 {offsets = [4, 0], sizes = [2, 4], strides = [1, 1]} : vector<16x4xf32> to vector<2x4xf32>
    %349 = arith.addf %348, %338 : vector<2x4xf32>
    %350 = arith.negf %349 : vector<2x4xf32>
    %351 = math.exp %350 : vector<2x4xf32>
    %cst_131 = arith.constant 1.000000e+00 : f32
    %352 = vector.broadcast %cst_131 : f32 to vector<2x4xf32>
    %353 = arith.addf %352, %351 : vector<2x4xf32>
    %354 = arith.divf %352, %353 : vector<2x4xf32>
    %355 = vector.extract_strided_slice %272 {offsets = [4, 0], sizes = [2, 4], strides = [1, 1]} : vector<16x4xf32> to vector<2x4xf32>
    %356 = arith.mulf %347, %340 : vector<2x4xf32>
    %357 = arith.addf %355, %356 : vector<2x4xf32>
    %358 = math.tanh %357 : vector<2x4xf32>
    %cst_132 = arith.constant 1.000000e+00 : f32
    %359 = vector.broadcast %cst_132 : f32 to vector<2x4xf32>
    %360 = arith.subf %359, %354 : vector<2x4xf32>
    %361 = arith.mulf %360, %358 : vector<2x4xf32>
    %362 = arith.mulf %354, %336 : vector<2x4xf32>
    %363 = arith.addf %361, %362 : vector<2x4xf32>
    %cst_133 = arith.constant dense<0.000000e+00> : vector<2x4xf32>
    %364 = tpu.matmul %363, %274, %cst_133 {dimension_numbers = #tpu.dot_dimension_numbers<[1], [0], [0], [1], [0, 0, 1, 1], [], []>} : vector<2x4xf32>, vector<4x4xf32>, vector<2x4xf32> -> vector<2x4xf32>
    %cst_134 = arith.constant dense<0.000000e+00> : vector<2x4xf32>
    %365 = tpu.matmul %363, %276, %cst_134 {dimension_numbers = #tpu.dot_dimension_numbers<[1], [0], [0], [1], [0, 0, 1, 1], [], []>} : vector<2x4xf32>, vector<4x4xf32>, vector<2x4xf32> -> vector<2x4xf32>
    %cst_135 = arith.constant dense<0.000000e+00> : vector<2x4xf32>
    %366 = tpu.matmul %363, %278, %cst_135 {dimension_numbers = #tpu.dot_dimension_numbers<[1], [0], [0], [1], [0, 0, 1, 1], [], []>} : vector<2x4xf32>, vector<4x4xf32>, vector<2x4xf32> -> vector<2x4xf32>
    %367 = arith.addf %366, %281 : vector<2x4xf32>
    %368 = vector.extract_strided_slice %258 {offsets = [6, 0], sizes = [2, 4], strides = [1, 1]} : vector<16x4xf32> to vector<2x4xf32>
    %369 = arith.addf %368, %364 : vector<2x4xf32>
    %370 = arith.negf %369 : vector<2x4xf32>
    %371 = math.exp %370 : vector<2x4xf32>
    %cst_136 = arith.constant 1.000000e+00 : f32
    %372 = vector.broadcast %cst_136 : f32 to vector<2x4xf32>
    %373 = arith.addf %372, %371 : vector<2x4xf32>
    %374 = arith.divf %372, %373 : vector<2x4xf32>
    %375 = vector.extract_strided_slice %265 {offsets = [6, 0], sizes = [2, 4], strides = [1, 1]} : vector<16x4xf32> to vector<2x4xf32>
    %376 = arith.addf %375, %365 : vector<2x4xf32>
    %377 = arith.negf %376 : vector<2x4xf32>
    %378 = math.exp %377 : vector<2x4xf32>
    %cst_137 = arith.constant 1.000000e+00 : f32
    %379 = vector.broadcast %cst_137 : f32 to vector<2x4xf32>
    %380 = arith.addf %379, %378 : vector<2x4xf32>
    %381 = arith.divf %379, %380 : vector<2x4xf32>
    %382 = vector.extract_strided_slice %272 {offsets = [6, 0], sizes = [2, 4], strides = [1, 1]} : vector<16x4xf32> to vector<2x4xf32>
    %383 = arith.mulf %374, %367 : vector<2x4xf32>
    %384 = arith.addf %382, %383 : vector<2x4xf32>
    %385 = math.tanh %384 : vector<2x4xf32>
    %cst_138 = arith.constant 1.000000e+00 : f32
    %386 = vector.broadcast %cst_138 : f32 to vector<2x4xf32>
    %387 = arith.subf %386, %381 : vector<2x4xf32>
    %388 = arith.mulf %387, %385 : vector<2x4xf32>
    %389 = arith.mulf %381, %363 : vector<2x4xf32>
    %390 = arith.addf %388, %389 : vector<2x4xf32>
    %cst_139 = arith.constant dense<0.000000e+00> : vector<2x4xf32>
    %391 = tpu.matmul %390, %274, %cst_139 {dimension_numbers = #tpu.dot_dimension_numbers<[1], [0], [0], [1], [0, 0, 1, 1], [], []>} : vector<2x4xf32>, vector<4x4xf32>, vector<2x4xf32> -> vector<2x4xf32>
    %cst_140 = arith.constant dense<0.000000e+00> : vector<2x4xf32>
    %392 = tpu.matmul %390, %276, %cst_140 {dimension_numbers = #tpu.dot_dimension_numbers<[1], [0], [0], [1], [0, 0, 1, 1], [], []>} : vector<2x4xf32>, vector<4x4xf32>, vector<2x4xf32> -> vector<2x4xf32>
    %cst_141 = arith.constant dense<0.000000e+00> : vector<2x4xf32>
    %393 = tpu.matmul %390, %278, %cst_141 {dimension_numbers = #tpu.dot_dimension_numbers<[1], [0], [0], [1], [0, 0, 1, 1], [], []>} : vector<2x4xf32>, vector<4x4xf32>, vector<2x4xf32> -> vector<2x4xf32>
    %394 = arith.addf %393, %281 : vector<2x4xf32>
    %395 = vector.extract_strided_slice %258 {offsets = [8, 0], sizes = [2, 4], strides = [1, 1]} : vector<16x4xf32> to vector<2x4xf32>
    %396 = arith.addf %395, %391 : vector<2x4xf32>
    %397 = arith.negf %396 : vector<2x4xf32>
    %398 = math.exp %397 : vector<2x4xf32>
    %cst_142 = arith.constant 1.000000e+00 : f32
    %399 = vector.broadcast %cst_142 : f32 to vector<2x4xf32>
    %400 = arith.addf %399, %398 : vector<2x4xf32>
    %401 = arith.divf %399, %400 : vector<2x4xf32>
    %402 = vector.extract_strided_slice %265 {offsets = [8, 0], sizes = [2, 4], strides = [1, 1]} : vector<16x4xf32> to vector<2x4xf32>
    %403 = arith.addf %402, %392 : vector<2x4xf32>
    %404 = arith.negf %403 : vector<2x4xf32>
    %405 = math.exp %404 : vector<2x4xf32>
    %cst_143 = arith.constant 1.000000e+00 : f32
    %406 = vector.broadcast %cst_143 : f32 to vector<2x4xf32>
    %407 = arith.addf %406, %405 : vector<2x4xf32>
    %408 = arith.divf %406, %407 : vector<2x4xf32>
    %409 = vector.extract_strided_slice %272 {offsets = [8, 0], sizes = [2, 4], strides = [1, 1]} : vector<16x4xf32> to vector<2x4xf32>
    %410 = arith.mulf %401, %394 : vector<2x4xf32>
    %411 = arith.addf %409, %410 : vector<2x4xf32>
    %412 = math.tanh %411 : vector<2x4xf32>
    %cst_144 = arith.constant 1.000000e+00 : f32
    %413 = vector.broadcast %cst_144 : f32 to vector<2x4xf32>
    %414 = arith.subf %413, %408 : vector<2x4xf32>
    %415 = arith.mulf %414, %412 : vector<2x4xf32>
    %416 = arith.mulf %408, %390 : vector<2x4xf32>
    %417 = arith.addf %415, %416 : vector<2x4xf32>
    %cst_145 = arith.constant dense<0.000000e+00> : vector<2x4xf32>
    %418 = tpu.matmul %417, %274, %cst_145 {dimension_numbers = #tpu.dot_dimension_numbers<[1], [0], [0], [1], [0, 0, 1, 1], [], []>} : vector<2x4xf32>, vector<4x4xf32>, vector<2x4xf32> -> vector<2x4xf32>
    %cst_146 = arith.constant dense<0.000000e+00> : vector<2x4xf32>
    %419 = tpu.matmul %417, %276, %cst_146 {dimension_numbers = #tpu.dot_dimension_numbers<[1], [0], [0], [1], [0, 0, 1, 1], [], []>} : vector<2x4xf32>, vector<4x4xf32>, vector<2x4xf32> -> vector<2x4xf32>
    %cst_147 = arith.constant dense<0.000000e+00> : vector<2x4xf32>
    %420 = tpu.matmul %417, %278, %cst_147 {dimension_numbers = #tpu.dot_dimension_numbers<[1], [0], [0], [1], [0, 0, 1, 1], [], []>} : vector<2x4xf32>, vector<4x4xf32>, vector<2x4xf32> -> vector<2x4xf32>
    %421 = arith.addf %420, %281 : vector<2x4xf32>
    %422 = vector.extract_strided_slice %258 {offsets = [10, 0], sizes = [2, 4], strides = [1, 1]} : vector<16x4xf32> to vector<2x4xf32>
    %423 = arith.addf %422, %418 : vector<2x4xf32>
    %424 = arith.negf %423 : vector<2x4xf32>
    %425 = math.exp %424 : vector<2x4xf32>
    %cst_148 = arith.constant 1.000000e+00 : f32
    %426 = vector.broadcast %cst_148 : f32 to vector<2x4xf32>
    %427 = arith.addf %426, %425 : vector<2x4xf32>
    %428 = arith.divf %426, %427 : vector<2x4xf32>
    %429 = vector.extract_strided_slice %265 {offsets = [10, 0], sizes = [2, 4], strides = [1, 1]} : vector<16x4xf32> to vector<2x4xf32>
    %430 = arith.addf %429, %419 : vector<2x4xf32>
    %431 = arith.negf %430 : vector<2x4xf32>
    %432 = math.exp %431 : vector<2x4xf32>
    %cst_149 = arith.constant 1.000000e+00 : f32
    %433 = vector.broadcast %cst_149 : f32 to vector<2x4xf32>
    %434 = arith.addf %433, %432 : vector<2x4xf32>
    %435 = arith.divf %433, %434 : vector<2x4xf32>
    %436 = vector.extract_strided_slice %272 {offsets = [10, 0], sizes = [2, 4], strides = [1, 1]} : vector<16x4xf32> to vector<2x4xf32>
    %437 = arith.mulf %428, %421 : vector<2x4xf32>
    %438 = arith.addf %436, %437 : vector<2x4xf32>
    %439 = math.tanh %438 : vector<2x4xf32>
    %cst_150 = arith.constant 1.000000e+00 : f32
    %440 = vector.broadcast %cst_150 : f32 to vector<2x4xf32>
    %441 = arith.subf %440, %435 : vector<2x4xf32>
    %442 = arith.mulf %441, %439 : vector<2x4xf32>
    %443 = arith.mulf %435, %417 : vector<2x4xf32>
    %444 = arith.addf %442, %443 : vector<2x4xf32>
    %cst_151 = arith.constant dense<0.000000e+00> : vector<2x4xf32>
    %445 = tpu.matmul %444, %274, %cst_151 {dimension_numbers = #tpu.dot_dimension_numbers<[1], [0], [0], [1], [0, 0, 1, 1], [], []>} : vector<2x4xf32>, vector<4x4xf32>, vector<2x4xf32> -> vector<2x4xf32>
    %cst_152 = arith.constant dense<0.000000e+00> : vector<2x4xf32>
    %446 = tpu.matmul %444, %276, %cst_152 {dimension_numbers = #tpu.dot_dimension_numbers<[1], [0], [0], [1], [0, 0, 1, 1], [], []>} : vector<2x4xf32>, vector<4x4xf32>, vector<2x4xf32> -> vector<2x4xf32>
    %cst_153 = arith.constant dense<0.000000e+00> : vector<2x4xf32>
    %447 = tpu.matmul %444, %278, %cst_153 {dimension_numbers = #tpu.dot_dimension_numbers<[1], [0], [0], [1], [0, 0, 1, 1], [], []>} : vector<2x4xf32>, vector<4x4xf32>, vector<2x4xf32> -> vector<2x4xf32>
    %448 = arith.addf %447, %281 : vector<2x4xf32>
    %449 = vector.extract_strided_slice %258 {offsets = [12, 0], sizes = [2, 4], strides = [1, 1]} : vector<16x4xf32> to vector<2x4xf32>
    %450 = arith.addf %449, %445 : vector<2x4xf32>
    %451 = arith.negf %450 : vector<2x4xf32>
    %452 = math.exp %451 : vector<2x4xf32>
    %cst_154 = arith.constant 1.000000e+00 : f32
    %453 = vector.broadcast %cst_154 : f32 to vector<2x4xf32>
    %454 = arith.addf %453, %452 : vector<2x4xf32>
    %455 = arith.divf %453, %454 : vector<2x4xf32>
    %456 = vector.extract_strided_slice %265 {offsets = [12, 0], sizes = [2, 4], strides = [1, 1]} : vector<16x4xf32> to vector<2x4xf32>
    %457 = arith.addf %456, %446 : vector<2x4xf32>
    %458 = arith.negf %457 : vector<2x4xf32>
    %459 = math.exp %458 : vector<2x4xf32>
    %cst_155 = arith.constant 1.000000e+00 : f32
    %460 = vector.broadcast %cst_155 : f32 to vector<2x4xf32>
    %461 = arith.addf %460, %459 : vector<2x4xf32>
    %462 = arith.divf %460, %461 : vector<2x4xf32>
    %463 = vector.extract_strided_slice %272 {offsets = [12, 0], sizes = [2, 4], strides = [1, 1]} : vector<16x4xf32> to vector<2x4xf32>
    %464 = arith.mulf %455, %448 : vector<2x4xf32>
    %465 = arith.addf %463, %464 : vector<2x4xf32>
    %466 = math.tanh %465 : vector<2x4xf32>
    %cst_156 = arith.constant 1.000000e+00 : f32
    %467 = vector.broadcast %cst_156 : f32 to vector<2x4xf32>
    %468 = arith.subf %467, %462 : vector<2x4xf32>
    %469 = arith.mulf %468, %466 : vector<2x4xf32>
    %470 = arith.mulf %462, %444 : vector<2x4xf32>
    %471 = arith.addf %469, %470 : vector<2x4xf32>
    %cst_157 = arith.constant dense<0.000000e+00> : vector<2x4xf32>
    %472 = tpu.matmul %471, %274, %cst_157 {dimension_numbers = #tpu.dot_dimension_numbers<[1], [0], [0], [1], [0, 0, 1, 1], [], []>} : vector<2x4xf32>, vector<4x4xf32>, vector<2x4xf32> -> vector<2x4xf32>
    %cst_158 = arith.constant dense<0.000000e+00> : vector<2x4xf32>
    %473 = tpu.matmul %471, %276, %cst_158 {dimension_numbers = #tpu.dot_dimension_numbers<[1], [0], [0], [1], [0, 0, 1, 1], [], []>} : vector<2x4xf32>, vector<4x4xf32>, vector<2x4xf32> -> vector<2x4xf32>
    %cst_159 = arith.constant dense<0.000000e+00> : vector<2x4xf32>
    %474 = tpu.matmul %471, %278, %cst_159 {dimension_numbers = #tpu.dot_dimension_numbers<[1], [0], [0], [1], [0, 0, 1, 1], [], []>} : vector<2x4xf32>, vector<4x4xf32>, vector<2x4xf32> -> vector<2x4xf32>
    %475 = arith.addf %474, %281 : vector<2x4xf32>
    %476 = vector.extract_strided_slice %258 {offsets = [14, 0], sizes = [2, 4], strides = [1, 1]} : vector<16x4xf32> to vector<2x4xf32>
    %477 = arith.addf %476, %472 : vector<2x4xf32>
    %478 = arith.negf %477 : vector<2x4xf32>
    %479 = math.exp %478 : vector<2x4xf32>
    %cst_160 = arith.constant 1.000000e+00 : f32
    %480 = vector.broadcast %cst_160 : f32 to vector<2x4xf32>
    %481 = arith.addf %480, %479 : vector<2x4xf32>
    %482 = arith.divf %480, %481 : vector<2x4xf32>
    %483 = vector.extract_strided_slice %265 {offsets = [14, 0], sizes = [2, 4], strides = [1, 1]} : vector<16x4xf32> to vector<2x4xf32>
    %484 = arith.addf %483, %473 : vector<2x4xf32>
    %485 = arith.negf %484 : vector<2x4xf32>
    %486 = math.exp %485 : vector<2x4xf32>
    %cst_161 = arith.constant 1.000000e+00 : f32
    %487 = vector.broadcast %cst_161 : f32 to vector<2x4xf32>
    %488 = arith.addf %487, %486 : vector<2x4xf32>
    %489 = arith.divf %487, %488 : vector<2x4xf32>
    %490 = vector.extract_strided_slice %272 {offsets = [14, 0], sizes = [2, 4], strides = [1, 1]} : vector<16x4xf32> to vector<2x4xf32>
    %491 = arith.mulf %482, %475 : vector<2x4xf32>
    %492 = arith.addf %490, %491 : vector<2x4xf32>
    %493 = math.tanh %492 : vector<2x4xf32>
    %cst_162 = arith.constant 1.000000e+00 : f32
    %494 = vector.broadcast %cst_162 : f32 to vector<2x4xf32>
    %495 = arith.subf %494, %489 : vector<2x4xf32>
    %496 = arith.mulf %495, %493 : vector<2x4xf32>
    %497 = arith.mulf %489, %471 : vector<2x4xf32>
    %498 = arith.addf %496, %497 : vector<2x4xf32>
    %499 = tpu.concatenate %309, %336, %363, %390, %417, %444, %471, %498 in 1 : vector<2x4xf32>, vector<2x4xf32>, vector<2x4xf32>, vector<2x4xf32>, vector<2x4xf32>, vector<2x4xf32>, vector<2x4xf32>, vector<2x4xf32> -> vector<2x32xf32>
    %c0_163 = arith.constant 0 : index
    %c0_164 = arith.constant 0 : index
    %500 = vector.load %arg11[%c0_163, %c0_164] : memref<2x32xf32, #tpu.memory_space<vmem>>, vector<2x32xf32>
    tpu.vector_store %arg11[%c0_163, %c0_164], %499 {strides = array<i32>} : memref<2x32xf32, #tpu.memory_space<vmem>>, vector<2x32xf32>,
    return
  }
  func.func @transform_0(%arg0: i32) -> (i32, i32, i32) {
    %c0_i32 = arith.constant 0 : i32
    %c0_i32_0 = arith.constant 0 : i32
    %c0_i32_1 = arith.constant 0 : i32
    return %arg0, %c0_i32, %c0_i32_0 : i32, i32, i32
  }
  func.func @transform_1(%arg0: i32) -> (i32, i32, i32) {
    %c0_i32 = arith.constant 0 : i32
    %c0_i32_0 = arith.constant 0 : i32
    %c0_i32_1 = arith.constant 0 : i32
    %c0_i32_2 = arith.constant 0 : i32
    return %c0_i32, %c0_i32_0, %c0_i32_1 : i32, i32, i32
  }
  func.func @transform_2(%arg0: i32) -> (i32, i32, i32) {
    %c0_i32 = arith.constant 0 : i32
    %c0_i32_0 = arith.constant 0 : i32
    %c0_i32_1 = arith.constant 0 : i32
    %c0_i32_2 = arith.constant 0 : i32
    return %c0_i32, %c0_i32_0, %c0_i32_1 : i32, i32, i32
  }
  func.func @transform_3(%arg0: i32) -> (i32, i32, i32) {
    %c0_i32 = arith.constant 0 : i32
    %c0_i32_0 = arith.constant 0 : i32
    %c0_i32_1 = arith.constant 0 : i32
    %c0_i32_2 = arith.constant 0 : i32
    return %c0_i32, %c0_i32_0, %c0_i32_1 : i32, i32, i32
  }
  func.func @transform_4(%arg0: i32) -> (i32, i32) {
    %c0_i32 = arith.constant 0 : i32
    %c0_i32_0 = arith.constant 0 : i32
    %c0_i32_1 = arith.constant 0 : i32
    return %c0_i32, %c0_i32_0 : i32, i32
  }
  func.func @transform_5(%arg0: i32) -> (i32, i32, i32) {
    %c0_i32 = arith.constant 0 : i32
    %c0_i32_0 = arith.constant 0 : i32
    %c0_i32_1 = arith.constant 0 : i32
    %c0_i32_2 = arith.constant 0 : i32
    return %c0_i32, %c0_i32_0, %c0_i32_1 : i32, i32, i32
  }
  func.func @transform_6(%arg0: i32) -> (i32, i32, i32) {
    %c0_i32 = arith.constant 0 : i32
    %c0_i32_0 = arith.constant 0 : i32
    %c0_i32_1 = arith.constant 0 : i32
    %c0_i32_2 = arith.constant 0 : i32
    return %c0_i32, %c0_i32_0, %c0_i32_1 : i32, i32, i32
  }
  func.func @transform_7(%arg0: i32) -> (i32, i32, i32) {
    %c0_i32 = arith.constant 0 : i32
    %c0_i32_0 = arith.constant 0 : i32
    %c0_i32_1 = arith.constant 0 : i32
    %c0_i32_2 = arith.constant 0 : i32
    return %c0_i32, %c0_i32_0, %c0_i32_1 : i32, i32, i32
  }
  func.func @transform_8(%arg0: i32) -> (i32, i32) {
    %c0_i32 = arith.constant 0 : i32
    %c0_i32_0 = arith.constant 0 : i32
    %c0_i32_1 = arith.constant 0 : i32
    return %c0_i32, %c0_i32_0 : i32, i32
  }
  func.func @transform_9(%arg0: i32) -> (i32, i32) {
    %c0_i32 = arith.constant 0 : i32
    %c0_i32_0 = arith.constant 0 : i32
    return %arg0, %c0_i32 : i32, i32
  }
  func.func @transform_10(%arg0: i32) -> (i32, i32) {
    %c0_i32 = arith.constant 0 : i32
    %c0_i32_0 = arith.constant 0 : i32
    return %arg0, %c0_i32 : i32, i32
  }
}

</mosaic_0001>

<llo_original>
// kernel: netd_forward.1
$region0: #{netd_forward.1}
  #allocation0 [shape = 'u32[]', space=smem, size = 0x4, offset = 0x4, fixed_abs, tag = 'smem constant byte address 0x4 - core index']
  #allocation1 [shape = 'u32[72,128]{1,0:T(1,128)}', space=vmem, size = 0x9000, scoped, tag = 'internal scratch']
  %s0 = inlined_call_operand.vmem [shape: f32[1,16,4], index: 0, kind: input, shape index: {}]
  %s1 = inlined_call_operand.vmem [shape: f32[3,4,32], index: 1, kind: input, shape index: {}]
  %s2 = inlined_call_operand.vmem [shape: f32[3,32,32], index: 2, kind: input, shape index: {}]
  %s3 = inlined_call_operand.vmem [shape: f32[3,1,32], index: 3, kind: input, shape index: {}]
  %s4 = inlined_call_operand.vmem [shape: f32[1,32], index: 4, kind: input, shape index: {}]
  %s5 = inlined_call_operand.vmem [shape: f32[3,32,4], index: 5, kind: input, shape index: {}]
  %s6 = inlined_call_operand.vmem [shape: f32[3,4,4], index: 6, kind: input, shape index: {}]
  %s7 = inlined_call_operand.vmem [shape: f32[3,1,4], index: 7, kind: input, shape index: {}]
  %s8 = inlined_call_operand.vmem [shape: f32[1,4], index: 8, kind: input, shape index: {}]
  %s9 = inlined_call_operand.vmem [shape: f32[2,256], index: 9, kind: output, shape index: {0}]
  %s10 = inlined_call_operand.vmem [shape: f32[2,32], index: 10, kind: output, shape index: {1}]
  %11 = xla_tuple %s9, %s10
  %s12 = sld [smem:[#allocation0]]
  $region54: #{netd_forward.1} parent=0
    _
  %s14 = ssub.s32 1, %s12
  %s15 = scalar_select 0, %s14, %s12
  // Predicated region
  $region2: #{netd_forward.1} parent=0 // pred_check
    _
  $region3: #{netd_forward.1} parent=0 // pred_check_branch
    %17 = sbr.rel (0) target = $region5
  $region4: #{netd_forward.1} parent=0 // pred_region
    _
  $region5: #{netd_forward.1} parent=0 // pred_fallthru
    _
  // Predicated region
  $region6: #{netd_forward.1} parent=0 // pred_check
    _
  $region7: #{netd_forward.1} parent=0 // pred_check_branch
    %19 = sbr.rel (0) target = $region9
  $region8: #{netd_forward.1} parent=0 // pred_region
    _
  $region9: #{netd_forward.1} parent=0 // pred_fallthru
    _
  // Predicated region
  $region10: #{netd_forward.1} parent=0 // pred_check
    _
  $region11: #{netd_forward.1} parent=0 // pred_check_branch
    %21 = sbr.rel (0) target = $region13
  $region12: #{netd_forward.1} parent=0 // pred_region
    _
  $region13: #{netd_forward.1} parent=0 // pred_fallthru
    _
  // Predicated region
  $region14: #{netd_forward.1} parent=0 // pred_check
    _
  $region15: #{netd_forward.1} parent=0 // pred_check_branch
    %23 = sbr.rel (0) target = $region17
  $region16: #{netd_forward.1} parent=0 // pred_region
    _
  $region17: #{netd_forward.1} parent=0 // pred_fallthru
    _
  // Predicated region
  $region18: #{netd_forward.1} parent=0 // pred_check
    _
  $region19: #{netd_forward.1} parent=0 // pred_check_branch
    %25 = sbr.rel (0) target = $region21
  $region20: #{netd_forward.1} parent=0 // pred_region
    _
  $region21: #{netd_forward.1} parent=0 // pred_fallthru
    _
  // Predicated region
  $region22: #{netd_forward.1} parent=0 // pred_check
    _
  $region23: #{netd_forward.1} parent=0 // pred_check_branch
    %27 = sbr.rel (0) target = $region25
  $region24: #{netd_forward.1} parent=0 // pred_region
    _
  $region25: #{netd_forward.1} parent=0 // pred_fallthru
    _
  // Predicated region
  $region26: #{netd_forward.1} parent=0 // pred_check
    _
  $region27: #{netd_forward.1} parent=0 // pred_check_branch
    %29 = sbr.rel (0) target = $region29
  $region28: #{netd_forward.1} parent=0 // pred_region
    _
  $region29: #{netd_forward.1} parent=0 // pred_fallthru
    _
  // Predicated region
  $region30: #{netd_forward.1} parent=0 // pred_check
    _
  $region31: #{netd_forward.1} parent=0 // pred_check_branch
    %31 = sbr.rel (0) target = $region33
  $region32: #{netd_forward.1} parent=0 // pred_region
    _
  $region33: #{netd_forward.1} parent=0 // pred_fallthru
    _
  // Predicated region
  $region34: #{netd_forward.1} parent=0 // pred_check
    _
  $region35: #{netd_forward.1} parent=0 // pred_check_branch
    %33 = sbr.rel (0) target = $region37
  $region36: #{netd_forward.1} parent=0 // pred_region
    _
  $region37: #{netd_forward.1} parent=0 // pred_fallthru
    _
  %v34 = vld [vmem:[%s0] sm:$0xff]
  %v35 = vld [vmem:[%s0 + $0x8] sm:$0xff]
  %v36 = vld [vmem:[%s1] sm:$0xf]
  %v37 = vld [vmem:[%s3] sm:$0x1]
  %v39 = vperm.slane %v37, 0
  %vm41 = vcmask 31744
  %v43 = vsel %vm41, %v34, 0
  %v46 = vsel %vm41, %v35, 0
  %vm48 = vcmask 1043456
  %v50 = vsel %vm48, %v36, 0
  %52 = vmatpush.msra.mxu0 0.0
  %53 = vmatpush.msra.mxu0 0.0
  %54 = vmatpush.msra.mxu0 0.0
  %55 = vmatpush.msra.mxu0 0.0
  %56 = vmatpush.msra.mxu0 0.0
  %57 = vmatpush.msra.mxu0 0.0
  %58 = vmatpush.msra.mxu0 0.0
  %59 = vmatpush.msra.mxu0 0.0
  %60 = vmatpush.msra.mxu0 0.0
  %61 = vmatpush.msra.mxu0 0.0
  %62 = vmatpush.msra.mxu0 0.0
  %63 = vmatpush.msra.mxu0 0.0
  %64 = vmatpush.msra.mxu0 0.0
  %65 = vmatpush.msra.mxu0 0.0
  %66 = vmatpush.msra.mxu0 0.0
  %67 = vmatpush.msra.mxu0 %v50
  %68 = vmatmul.f32.gmra.mxu0 %v43
  %v69 = vpop.f32.mrf.mxu0
  %v70 = vadd.f32 %v39, %v69
  %71 = vmatmul.f32.gmra.mxu0 %v46
  %v72 = vpop.f32.mrf.mxu0
  %v73 = vadd.f32 %v39, %v72
  %74 = vdwg.mxu0
  %s75 = scalar_lea.vmem %s1, 4
  %v76 = vld [vmem:[%s75] sm:$0xf]
  %s77 = scalar_lea.vmem %s3, 1
  %v78 = vld [vmem:[%s77] sm:$0x1]
  %v80 = vperm.slane %v78, 0
  %v83 = vsel %vm48, %v76, 0
  %85 = vmatpush.msra.mxu0 0.0
  %86 = vmatpush.msra.mxu0 0.0
  %87 = vmatpush.msra.mxu0 0.0
  %88 = vmatpush.msra.mxu0 0.0
  %89 = vmatpush.msra.mxu0 0.0
  %90 = vmatpush.msra.mxu0 0.0
  %91 = vmatpush.msra.mxu0 0.0
  %92 = vmatpush.msra.mxu0 0.0
  %93 = vmatpush.msra.mxu0 0.0
  %94 = vmatpush.msra.mxu0 0.0
  %95 = vmatpush.msra.mxu0 0.0
  %96 = vmatpush.msra.mxu0 0.0
  %97 = vmatpush.msra.mxu0 0.0
  %98 = vmatpush.msra.mxu0 0.0
  %99 = vmatpush.msra.mxu0 0.0
  %100 = vmatpush.msra.mxu0 %v83
  %101 = vmatmul.f32.gmra.mxu0 %v43
  %v102 = vpop.f32.mrf.mxu0
  %v103 = vadd.f32 %v80, %v102
  %104 = vmatmul.f32.gmra.mxu0 %v46
  %v105 = vpop.f32.mrf.mxu0
  %v106 = vadd.f32 %v80, %v105
  %107 = vdwg.mxu0
  %s108 = scalar_lea.vmem %s1, 8
  %v109 = vld [vmem:[%s108] sm:$0xf]
  %s110 = scalar_lea.vmem %s3, 2
  %v111 = vld [vmem:[%s110] sm:$0x1]
  %v113 = vperm.slane %v111, 0
  %v116 = vsel %vm48, %v109, 0
  %118 = vmatpush.msra.mxu0 0.0
  %119 = vmatpush.msra.mxu0 0.0
  %120 = vmatpush.msra.mxu0 0.0
  %121 = vmatpush.msra.mxu0 0.0
  %122 = vmatpush.msra.mxu0 0.0
  %123 = vmatpush.msra.mxu0 0.0
  %124 = vmatpush.msra.mxu0 0.0
  %125 = vmatpush.msra.mxu0 0.0
  %126 = vmatpush.msra.mxu0 0.0
  %127 = vmatpush.msra.mxu0 0.0
  %128 = vmatpush.msra.mxu0 0.0
  %129 = vmatpush.msra.mxu0 0.0
  %130 = vmatpush.msra.mxu0 0.0
  %131 = vmatpush.msra.mxu0 0.0
  %132 = vmatpush.msra.mxu0 0.0
  %133 = vmatpush.msra.mxu0 %v116
  %134 = vmatmul.f32.gmra.mxu0 %v43
  %v135 = vpop.f32.mrf.mxu0
  %v136 = vadd.f32 %v113, %v135
  %137 = vmatmul.f32.gmra.mxu0 %v46
  %v138 = vpop.f32.mrf.mxu0
  %v139 = vadd.f32 %v113, %v138
  %140 = vdwg.mxu0
  %v141 = vld [vmem:[%s2] sm:$0xff]
  %v142 = vld [vmem:[%s2 + $0x8] sm:$0xff]
  %v143 = vld [vmem:[%s2 + $0x10] sm:$0xff]
  %v144 = vld [vmem:[%s2 + $0x18] sm:$0xff]
  %s145 = scalar_lea.vmem %s2, 32
  %v146 = vld [vmem:[%s145] sm:$0xff]
  %v147 = vld [vmem:[%s145 + $0x8] sm:$0xff]
  %v148 = vld [vmem:[%s145 + $0x10] sm:$0xff]
  %v149 = vld [vmem:[%s145 + $0x18] sm:$0xff]
  %s150 = scalar_lea.vmem %s2, 64
  %v151 = vld [vmem:[%s150] sm:$0xff]
  %v152 = vld [vmem:[%s150 + $0x8] sm:$0xff]
  %v153 = vld [vmem:[%s150 + $0x10] sm:$0xff]
  %v154 = vld [vmem:[%s150 + $0x18] sm:$0xff]
  %v155 = vld [vmem:[%s4] sm:$0x1]
  %v157 = vperm.slane %v155, 0
  %vm159 = vcmask 261120
  %v161 = vsel %vm159, 0.0, 0
  %163 = vmatpush.msra.mxu0 0.0
  %164 = vmatpush.msra.mxu0 0.0
  %165 = vmatpush.msra.mxu0 0.0
  %166 = vmatpush.msra.mxu0 0.0
  %167 = vmatpush.msra.mxu0 0.0
  %168 = vmatpush.msra.mxu0 0.0
  %169 = vmatpush.msra.mxu0 0.0
  %170 = vmatpush.msra.mxu0 0.0
  %171 = vmatpush.msra.mxu0 0.0
  %172 = vmatpush.msra.mxu0 0.0
  %173 = vmatpush.msra.mxu0 0.0
  %174 = vmatpush.msra.mxu0 0.0
  %175 = vmatpush.msra.mxu0 %v144
  %176 = vmatpush.msra.mxu0 %v143
  %177 = vmatpush.msra.mxu0 %v142
  %178 = vmatpush.msra.mxu0 %v141
  %179 = vmatmul.f32.gmra.mxu0 %v161
  %v180 = vpop.f32.mrf.mxu0
  %v181 = vadd.f32 0.0, %v180
  %182 = vdwg.mxu0
  %183 = vmatpush.msra.mxu0 0.0
  %184 = vmatpush.msra.mxu0 0.0
  %185 = vmatpush.msra.mxu0 0.0
  %186 = vmatpush.msra.mxu0 0.0
  %187 = vmatpush.msra.mxu0 0.0
  %188 = vmatpush.msra.mxu0 0.0
  %189 = vmatpush.msra.mxu0 0.0
  %190 = vmatpush.msra.mxu0 0.0
  %191 = vmatpush.msra.mxu0 0.0
  %192 = vmatpush.msra.mxu0 0.0
  %193 = vmatpush.msra.mxu0 0.0
  %194 = vmatpush.msra.mxu0 0.0
  %195 = vmatpush.msra.mxu0 %v149
  %196 = vmatpush.msra.mxu0 %v148
  %197 = vmatpush.msra.mxu0 %v147
  %198 = vmatpush.msra.mxu0 %v146
  %199 = vmatmul.f32.gmra.mxu0 %v161
  %v200 = vpop.f32.mrf.mxu0
  %v201 = vadd.f32 0.0, %v200
  %202 = vdwg.mxu0
  %203 = vmatpush.msra.mxu0 0.0
  %204 = vmatpush.msra.mxu0 0.0
  %205 = vmatpush.msra.mxu0 0.0
  %206 = vmatpush.msra.mxu0 0.0
  %207 = vmatpush.msra.mxu0 0.0
  %208 = vmatpush.msra.mxu0 0.0
  %209 = vmatpush.msra.mxu0 0.0
  %210 = vmatpush.msra.mxu0 0.0
  %211 = vmatpush.msra.mxu0 0.0
  %212 = vmatpush.msra.mxu0 0.0
  %213 = vmatpush.msra.mxu0 0.0
  %214 = vmatpush.msra.mxu0 0.0
  %215 = vmatpush.msra.mxu0 %v154
  %216 = vmatpush.msra.mxu0 %v153
  %217 = vmatpush.msra.mxu0 %v152
  %218 = vmatpush.msra.mxu0 %v151
  %219 = vmatmul.f32.gmra.mxu0 %v161
  %v220 = vpop.f32.mrf.mxu0
  %v221 = vadd.f32 %v157, %v220
  %222 = vdwg.mxu0
  %v223 = vadd.f32 %v70, %v181
  %v224 = vxor.u32 %v223, 2147483648
  %v225 = vmul.f32 %v224, 1.442695
  %v226 = vpow.pop %v225
  %v227 = vadd.f32 %v226, 1.0
  %v228 = vrcp.pop %v227
  %v229 = vmul.f32 %v227, %v228
  %v230 = vsub.f32 1.0, %v229
  %v231 = vmul.f32 %v228, %v230
  %v232 = vadd.f32 %v228, %v231
  %vm233 = vweird.f32 %v227
  %vm234 = vweird.f32 %v228
  %vm235 = vmor %vm233, %vm234
  %v236 = vsel %vm235, %v228, %v232
  %v237 = vand.u32 2147483647, %v227
  %vm238 = vcmp.eq.f32.partialorder %v237, 8.507059e+37
  %v239 = vand.u32 %v227, 2147483648
  %v240 = vor.u32 1.1754944e-38, %v239
  %v241 = vsel %vm238, %v240, %v236
  %v242 = vmul.f32 1.0, %v241
  %v243 = vadd.f32 %v103, %v201
  %v244 = vxor.u32 %v243, 2147483648
  %v245 = vmul.f32 %v244, 1.442695
  %v246 = vpow.pop %v245
  %v247 = vadd.f32 %v246, 1.0
  %v248 = vrcp.pop %v247
  %v249 = vmul.f32 %v247, %v248
  %v250 = vsub.f32 1.0, %v249
  %v251 = vmul.f32 %v248, %v250
  %v252 = vadd.f32 %v248, %v251
  %vm253 = vweird.f32 %v247
  %vm254 = vweird.f32 %v248
  %vm255 = vmor %vm253, %vm254
  %v256 = vsel %vm255, %v248, %v252
  %v257 = vand.u32 2147483647, %v247
  %vm258 = vcmp.eq.f32.partialorder %v257, 8.507059e+37
  %v259 = vand.u32 %v247, 2147483648
  %v260 = vor.u32 1.1754944e-38, %v259
  %v261 = vsel %vm258, %v260, %v256
  %v262 = vmul.f32 1.0, %v261
  %v263 = vmul.f32 %v242, %v221
  %v264 = vadd.f32 %v136, %v263
  %v265 = vtanh.pop %v264
  %v266 = vsub.f32 1.0, %v262
  %v267 = vmul.f32 %v266, %v265
  %v268 = vmul.f32 %v262, 0.0
  %v269 = vadd.f32 %v267, %v268
  %v271 = vsel %vm159, %v269, 0
  %273 = vmatpush.msra.mxu0 0.0
  %274 = vmatpush.msra.mxu0 0.0
  %275 = vmatpush.msra.mxu0 0.0
  %276 = vmatpush.msra.mxu0 0.0
  %277 = vmatpush.msra.mxu0 0.0
  %278 = vmatpush.msra.mxu0 0.0
  %279 = vmatpush.msra.mxu0 0.0
  %280 = vmatpush.msra.mxu0 0.0
  %281 = vmatpush.msra.mxu0 0.0
  %282 = vmatpush.msra.mxu0 0.0
  %283 = vmatpush.msra.mxu0 0.0
  %284 = vmatpush.msra.mxu0 0.0
  %285 = vmatpush.msra.mxu0 %v144
  %286 = vmatpush.msra.mxu0 %v143
  %287 = vmatpush.msra.mxu0 %v142
  %288 = vmatpush.msra.mxu0 %v141
  %289 = vmatmul.f32.gmra.mxu0 %v271
  %v290 = vpop.f32.mrf.mxu0
  %v291 = vadd.f32 0.0, %v290
  %292 = vdwg.mxu0
  %293 = vmatpush.msra.mxu0 0.0
  %294 = vmatpush.msra.mxu0 0.0
  %295 = vmatpush.msra.mxu0 0.0
  %296 = vmatpush.msra.mxu0 0.0
  %297 = vmatpush.msra.mxu0 0.0
  %298 = vmatpush.msra.mxu0 0.0
  %299 = vmatpush.msra.mxu0 0.0
  %300 = vmatpush.msra.mxu0 0.0
  %301 = vmatpush.msra.mxu0 0.0
  %302 = vmatpush.msra.mxu0 0.0
  %303 = vmatpush.msra.mxu0 0.0
  %304 = vmatpush.msra.mxu0 0.0
  %305 = vmatpush.msra.mxu0 %v149
  %306 = vmatpush.msra.mxu0 %v148
  %307 = vmatpush.msra.mxu0 %v147
  %308 = vmatpush.msra.mxu0 %v146
  %309 = vmatmul.f32.gmra.mxu0 %v271
  %v310 = vpop.f32.mrf.mxu0
  %v311 = vadd.f32 0.0, %v310
  %312 = vdwg.mxu0
  %313 = vmatpush.msra.mxu0 0.0
  %314 = vmatpush.msra.mxu0 0.0
  %315 = vmatpush.msra.mxu0 0.0
  %316 = vmatpush.msra.mxu0 0.0
  %317 = vmatpush.msra.mxu0 0.0
  %318 = vmatpush.msra.mxu0 0.0
  %319 = vmatpush.msra.mxu0 0.0
  %320 = vmatpush.msra.mxu0 0.0
  %321 = vmatpush.msra.mxu0 0.0
  %322 = vmatpush.msra.mxu0 0.0
  %323 = vmatpush.msra.mxu0 0.0
  %324 = vmatpush.msra.mxu0 0.0
  %325 = vmatpush.msra.mxu0 %v154
  %326 = vmatpush.msra.mxu0 %v153
  %327 = vmatpush.msra.mxu0 %v152
  %328 = vmatpush.msra.mxu0 %v151
  %329 = vmatmul.f32.gmra.mxu0 %v271
  %v330 = vpop.f32.mrf.mxu0
  %v331 = vadd.f32 %v157, %v330
  %332 = vdwg.mxu0
  %v334 = vrot.slane %v291, 6
  %v336 = vadd.f32 %v70, %v334
  %v337 = vxor.u32 %v336, 2147483648
  %v338 = vmul.f32 %v337, 1.442695
  %v339 = vpow.pop %v338
  %v340 = vadd.f32 %v339, 1.0
  %v341 = vrcp.pop %v340
  %v342 = vmul.f32 %v340, %v341
  %v343 = vsub.f32 1.0, %v342
  %v344 = vmul.f32 %v341, %v343
  %v345 = vadd.f32 %v341, %v344
  %vm346 = vweird.f32 %v340
  %vm347 = vweird.f32 %v341
  %vm348 = vmor %vm346, %vm347
  %v349 = vsel %vm348, %v341, %v345
  %v350 = vand.u32 2147483647, %v340
  %vm351 = vcmp.eq.f32.partialorder %v350, 8.507059e+37
  %v352 = vand.u32 %v340, 2147483648
  %v353 = vor.u32 1.1754944e-38, %v352
  %v354 = vsel %vm351, %v353, %v349
  %v355 = vmul.f32 1.0, %v354
  %v357 = vrot.slane %v311, 6
  %v359 = vadd.f32 %v103, %v357
  %v360 = vxor.u32 %v359, 2147483648
  %v361 = vmul.f32 %v360, 1.442695
  %v362 = vpow.pop %v361
  %v363 = vadd.f32 %v362, 1.0
  %v364 = vrcp.pop %v363
  %v365 = vmul.f32 %v363, %v364
  %v366 = vsub.f32 1.0, %v365
  %v367 = vmul.f32 %v364, %v366
  %v368 = vadd.f32 %v364, %v367
  %vm369 = vweird.f32 %v363
  %vm370 = vweird.f32 %v364
  %vm371 = vmor %vm369, %vm370
  %v372 = vsel %vm371, %v364, %v368
  %v373 = vand.u32 2147483647, %v363
  %vm374 = vcmp.eq.f32.partialorder %v373, 8.507059e+37
  %v375 = vand.u32 %v363, 2147483648
  %v376 = vor.u32 1.1754944e-38, %v375
  %v377 = vsel %vm374, %v376, %v372
  %v378 = vmul.f32 1.0, %v377
  %v380 = vrot.slane %v331, 6
  %v382 = vmul.f32 %v355, %v380
  %v383 = vadd.f32 %v136, %v382
  %v384 = vtanh.pop %v383
  %v385 = vsub.f32 1.0, %v378
  %v386 = vmul.f32 %v385, %v384
  %v387 = vrot.slane %v269, 6
  %v389 = vmul.f32 %v378, %v387
  %v390 = vadd.f32 %v386, %v389
  %v392 = vrot.slane %v390, 2
  %v393 = vsel %vm159, %v392, 0
  %395 = vmatpush.msra.mxu0 0.0
  %396 = vmatpush.msra.mxu0 0.0
  %397 = vmatpush.msra.mxu0 0.0
  %398 = vmatpush.msra.mxu0 0.0
  %399 = vmatpush.msra.mxu0 0.0
  %400 = vmatpush.msra.mxu0 0.0
  %401 = vmatpush.msra.mxu0 0.0
  %402 = vmatpush.msra.mxu0 0.0
  %403 = vmatpush.msra.mxu0 0.0
  %404 = vmatpush.msra.mxu0 0.0
  %405 = vmatpush.msra.mxu0 0.0
  %406 = vmatpush.msra.mxu0 0.0
  %407 = vmatpush.msra.mxu0 %v144
  %408 = vmatpush.msra.mxu0 %v143
  %409 = vmatpush.msra.mxu0 %v142
  %410 = vmatpush.msra.mxu0 %v141
  %411 = vmatmul.f32.gmra.mxu0 %v393
  %v412 = vpop.f32.mrf.mxu0
  %v413 = vadd.f32 0.0, %v412
  %414 = vdwg.mxu0
  %415 = vmatpush.msra.mxu0 0.0
  %416 = vmatpush.msra.mxu0 0.0
  %417 = vmatpush.msra.mxu0 0.0
  %418 = vmatpush.msra.mxu0 0.0
  %419 = vmatpush.msra.mxu0 0.0
  %420 = vmatpush.msra.mxu0 0.0
  %421 = vmatpush.msra.mxu0 0.0
  %422 = vmatpush.msra.mxu0 0.0
  %423 = vmatpush.msra.mxu0 0.0
  %424 = vmatpush.msra.mxu0 0.0
  %425 = vmatpush.msra.mxu0 0.0
  %426 = vmatpush.msra.mxu0 0.0
  %427 = vmatpush.msra.mxu0 %v149
  %428 = vmatpush.msra.mxu0 %v148
  %429 = vmatpush.msra.mxu0 %v147
  %430 = vmatpush.msra.mxu0 %v146
  %431 = vmatmul.f32.gmra.mxu0 %v393
  %v432 = vpop.f32.mrf.mxu0
  %v433 = vadd.f32 0.0, %v432
  %434 = vdwg.mxu0
  %435 = vmatpush.msra.mxu0 0.0
  %436 = vmatpush.msra.mxu0 0.0
  %437 = vmatpush.msra.mxu0 0.0
  %438 = vmatpush.msra.mxu0 0.0
  %439 = vmatpush.msra.mxu0 0.0
  %440 = vmatpush.msra.mxu0 0.0
  %441 = vmatpush.msra.mxu0 0.0
  %442 = vmatpush.msra.mxu0 0.0
  %443 = vmatpush.msra.mxu0 0.0
  %444 = vmatpush.msra.mxu0 0.0
  %445 = vmatpush.msra.mxu0 0.0
  %446 = vmatpush.msra.mxu0 0.0
  %447 = vmatpush.msra.mxu0 %v154
  %448 = vmatpush.msra.mxu0 %v153
  %449 = vmatpush.msra.mxu0 %v152
  %450 = vmatpush.msra.mxu0 %v151
  %451 = vmatmul.f32.gmra.mxu0 %v393
  %v452 = vpop.f32.mrf.mxu0
  %v453 = vadd.f32 %v157, %v452
  %454 = vdwg.mxu0
  %v456 = vrot.slane %v413, 4
  %v458 = vadd.f32 %v70, %v456
  %v459 = vxor.u32 %v458, 2147483648
  %v460 = vmul.f32 %v459, 1.442695
  %v461 = vpow.pop %v460
  %v462 = vadd.f32 %v461, 1.0
  %v463 = vrcp.pop %v462
  %v464 = vmul.f32 %v462, %v463
  %v465 = vsub.f32 1.0, %v464
  %v466 = vmul.f32 %v463, %v465
  %v467 = vadd.f32 %v463, %v466
  %vm468 = vweird.f32 %v462
  %vm469 = vweird.f32 %v463
  %vm470 = vmor %vm468, %vm469
  %v471 = vsel %vm470, %v463, %v467
  %v472 = vand.u32 2147483647, %v462
  %vm473 = vcmp.eq.f32.partialorder %v472, 8.507059e+37
  %v474 = vand.u32 %v462, 2147483648
  %v475 = vor.u32 1.1754944e-38, %v474
  %v476 = vsel %vm473, %v475, %v471
  %v477 = vmul.f32 1.0, %v476
  %v479 = vrot.slane %v433, 4
  %v481 = vadd.f32 %v103, %v479
  %v482 = vxor.u32 %v481, 2147483648
  %v483 = vmul.f32 %v482, 1.442695
  %v484 = vpow.pop %v483
  %v485 = vadd.f32 %v484, 1.0
  %v486 = vrcp.pop %v485
  %v487 = vmul.f32 %v485, %v486
  %v488 = vsub.f32 1.0, %v487
  %v489 = vmul.f32 %v486, %v488
  %v490 = vadd.f32 %v486, %v489
  %vm491 = vweird.f32 %v485
  %vm492 = vweird.f32 %v486
  %vm493 = vmor %vm491, %vm492
  %v494 = vsel %vm493, %v486, %v490
  %v495 = vand.u32 2147483647, %v485
  %vm496 = vcmp.eq.f32.partialorder %v495, 8.507059e+37
  %v497 = vand.u32 %v485, 2147483648
  %v498 = vor.u32 1.1754944e-38, %v497
  %v499 = vsel %vm496, %v498, %v494
  %v500 = vmul.f32 1.0, %v499
  %v502 = vrot.slane %v453, 4
  %v504 = vmul.f32 %v477, %v502
  %v505 = vadd.f32 %v136, %v504
  %v506 = vtanh.pop %v505
  %v507 = vsub.f32 1.0, %v500
  %v508 = vmul.f32 %v507, %v506
  %v509 = vrot.slane %v390, 6
  %v511 = vmul.f32 %v500, %v509
  %v512 = vadd.f32 %v508, %v511
  %v514 = vrot.slane %v512, 4
  %v515 = vsel %vm159, %v514, 0
  %517 = vmatpush.msra.mxu0 0.0
  %518 = vmatpush.msra.mxu0 0.0
  %519 = vmatpush.msra.mxu0 0.0
  %520 = vmatpush.msra.mxu0 0.0
  %521 = vmatpush.msra.mxu0 0.0
  %522 = vmatpush.msra.mxu0 0.0
  %523 = vmatpush.msra.mxu0 0.0
  %524 = vmatpush.msra.mxu0 0.0
  %525 = vmatpush.msra.mxu0 0.0
  %526 = vmatpush.msra.mxu0 0.0
  %527 = vmatpush.msra.mxu0 0.0
  %528 = vmatpush.msra.mxu0 0.0
  %529 = vmatpush.msra.mxu0 %v144
  %530 = vmatpush.msra.mxu0 %v143
  %531 = vmatpush.msra.mxu0 %v142
  %532 = vmatpush.msra.mxu0 %v141
  %533 = vmatmul.f32.gmra.mxu0 %v515
  %v534 = vpop.f32.mrf.mxu0
  %v535 = vadd.f32 0.0, %v534
  %536 = vdwg.mxu0
  %537 = vmatpush.msra.mxu0 0.0
  %538 = vmatpush.msra.mxu0 0.0
  %539 = vmatpush.msra.mxu0 0.0
  %540 = vmatpush.msra.mxu0 0.0
  %541 = vmatpush.msra.mxu0 0.0
  %542 = vmatpush.msra.mxu0 0.0
  %543 = vmatpush.msra.mxu0 0.0
  %544 = vmatpush.msra.mxu0 0.0
  %545 = vmatpush.msra.mxu0 0.0
  %546 = vmatpush.msra.mxu0 0.0
  %547 = vmatpush.msra.mxu0 0.0
  %548 = vmatpush.msra.mxu0 0.0
  %549 = vmatpush.msra.mxu0 %v149
  %550 = vmatpush.msra.mxu0 %v148
  %551 = vmatpush.msra.mxu0 %v147
  %552 = vmatpush.msra.mxu0 %v146
  %553 = vmatmul.f32.gmra.mxu0 %v515
  %v554 = vpop.f32.mrf.mxu0
  %v555 = vadd.f32 0.0, %v554
  %556 = vdwg.mxu0
  %557 = vmatpush.msra.mxu0 0.0
  %558 = vmatpush.msra.mxu0 0.0
  %559 = vmatpush.msra.mxu0 0.0
  %560 = vmatpush.msra.mxu0 0.0
  %561 = vmatpush.msra.mxu0 0.0
  %562 = vmatpush.msra.mxu0 0.0
  %563 = vmatpush.msra.mxu0 0.0
  %564 = vmatpush.msra.mxu0 0.0
  %565 = vmatpush.msra.mxu0 0.0
  %566 = vmatpush.msra.mxu0 0.0
  %567 = vmatpush.msra.mxu0 0.0
  %568 = vmatpush.msra.mxu0 0.0
  %569 = vmatpush.msra.mxu0 %v154
  %570 = vmatpush.msra.mxu0 %v153
  %571 = vmatpush.msra.mxu0 %v152
  %572 = vmatpush.msra.mxu0 %v151
  %573 = vmatmul.f32.gmra.mxu0 %v515
  %v574 = vpop.f32.mrf.mxu0
  %v575 = vadd.f32 %v157, %v574
  %576 = vdwg.mxu0
  %v578 = vrot.slane %v535, 2
  %v580 = vadd.f32 %v70, %v578
  %v581 = vxor.u32 %v580, 2147483648
  %v582 = vmul.f32 %v581, 1.442695
  %v583 = vpow.pop %v582
  %v584 = vadd.f32 %v583, 1.0
  %v585 = vrcp.pop %v584
  %v586 = vmul.f32 %v584, %v585
  %v587 = vsub.f32 1.0, %v586
  %v588 = vmul.f32 %v585, %v587
  %v589 = vadd.f32 %v585, %v588
  %vm590 = vweird.f32 %v584
  %vm591 = vweird.f32 %v585
  %vm592 = vmor %vm590, %vm591
  %v593 = vsel %vm592, %v585, %v589
  %v594 = vand.u32 2147483647, %v584
  %vm595 = vcmp.eq.f32.partialorder %v594, 8.507059e+37
  %v596 = vand.u32 %v584, 2147483648
  %v597 = vor.u32 1.1754944e-38, %v596
  %v598 = vsel %vm595, %v597, %v593
  %v599 = vmul.f32 1.0, %v598
  %v601 = vrot.slane %v555, 2
  %v603 = vadd.f32 %v103, %v601
  %v604 = vxor.u32 %v603, 2147483648
  %v605 = vmul.f32 %v604, 1.442695
  %v606 = vpow.pop %v605
  %v607 = vadd.f32 %v606, 1.0
  %v608 = vrcp.pop %v607
  %v609 = vmul.f32 %v607, %v608
  %v610 = vsub.f32 1.0, %v609
  %v611 = vmul.f32 %v608, %v610
  %v612 = vadd.f32 %v608, %v611
  %vm613 = vweird.f32 %v607
  %vm614 = vweird.f32 %v608
  %vm615 = vmor %vm613, %vm614
  %v616 = vsel %vm615, %v608, %v612
  %v617 = vand.u32 2147483647, %v607
  %vm618 = vcmp.eq.f32.partialorder %v617, 8.507059e+37
  %v619 = vand.u32 %v607, 2147483648
  %v620 = vor.u32 1.1754944e-38, %v619
  %v621 = vsel %vm618, %v620, %v616
  %v622 = vmul.f32 1.0, %v621
  %v624 = vrot.slane %v575, 2
  %v626 = vmul.f32 %v599, %v624
  %v627 = vadd.f32 %v136, %v626
  %v628 = vtanh.pop %v627
  %v629 = vsub.f32 1.0, %v622
  %v630 = vmul.f32 %v629, %v628
  %v631 = vrot.slane %v512, 6
  %v633 = vmul.f32 %v622, %v631
  %v634 = vadd.f32 %v630, %v633
  %v636 = vrot.slane %v634, 6
  %v637 = vsel %vm159, %v636, 0
  %639 = vmatpush.msra.mxu0 0.0
  %640 = vmatpush.msra.mxu0 0.0
  %641 = vmatpush.msra.mxu0 0.0
  %642 = vmatpush.msra.mxu0 0.0
  %643 = vmatpush.msra.mxu0 0.0
  %644 = vmatpush.msra.mxu0 0.0
  %645 = vmatpush.msra.mxu0 0.0
  %646 = vmatpush.msra.mxu0 0.0
  %647 = vmatpush.msra.mxu0 0.0
  %648 = vmatpush.msra.mxu0 0.0
  %649 = vmatpush.msra.mxu0 0.0
  %650 = vmatpush.msra.mxu0 0.0
  %651 = vmatpush.msra.mxu0 %v144
  %652 = vmatpush.msra.mxu0 %v143
  %653 = vmatpush.msra.mxu0 %v142
  %654 = vmatpush.msra.mxu0 %v141
  %655 = vmatmul.f32.gmra.mxu0 %v637
  %v656 = vpop.f32.mrf.mxu0
  %v657 = vadd.f32 0.0, %v656
  %658 = vdwg.mxu0
  %659 = vmatpush.msra.mxu0 0.0
  %660 = vmatpush.msra.mxu0 0.0
  %661 = vmatpush.msra.mxu0 0.0
  %662 = vmatpush.msra.mxu0 0.0
  %663 = vmatpush.msra.mxu0 0.0
  %664 = vmatpush.msra.mxu0 0.0
  %665 = vmatpush.msra.mxu0 0.0
  %666 = vmatpush.msra.mxu0 0.0
  %667 = vmatpush.msra.mxu0 0.0
  %668 = vmatpush.msra.mxu0 0.0
  %669 = vmatpush.msra.mxu0 0.0
  %670 = vmatpush.msra.mxu0 0.0
  %671 = vmatpush.msra.mxu0 %v149
  %672 = vmatpush.msra.mxu0 %v148
  %673 = vmatpush.msra.mxu0 %v147
  %674 = vmatpush.msra.mxu0 %v146
  %675 = vmatmul.f32.gmra.mxu0 %v637
  %v676 = vpop.f32.mrf.mxu0
  %v677 = vadd.f32 0.0, %v676
  %678 = vdwg.mxu0
  %679 = vmatpush.msra.mxu0 0.0
  %680 = vmatpush.msra.mxu0 0.0
  %681 = vmatpush.msra.mxu0 0.0
  %682 = vmatpush.msra.mxu0 0.0
  %683 = vmatpush.msra.mxu0 0.0
  %684 = vmatpush.msra.mxu0 0.0
  %685 = vmatpush.msra.mxu0 0.0
  %686 = vmatpush.msra.mxu0 0.0
  %687 = vmatpush.msra.mxu0 0.0
  %688 = vmatpush.msra.mxu0 0.0
  %689 = vmatpush.msra.mxu0 0.0
  %690 = vmatpush.msra.mxu0 0.0
  %691 = vmatpush.msra.mxu0 %v154
  %692 = vmatpush.msra.mxu0 %v153
  %693 = vmatpush.msra.mxu0 %v152
  %694 = vmatpush.msra.mxu0 %v151
  %695 = vmatmul.f32.gmra.mxu0 %v637
  %v696 = vpop.f32.mrf.mxu0
  %v697 = vadd.f32 %v157, %v696
  %698 = vdwg.mxu0
  %v699 = vadd.f32 %v73, %v657
  %v700 = vxor.u32 %v699, 2147483648
  %v701 = vmul.f32 %v700, 1.442695
  %v702 = vpow.pop %v701
  %v703 = vadd.f32 %v702, 1.0
  %v704 = vrcp.pop %v703
  %v705 = vmul.f32 %v703, %v704
  %v706 = vsub.f32 1.0, %v705
  %v707 = vmul.f32 %v704, %v706
  %v708 = vadd.f32 %v704, %v707
  %vm709 = vweird.f32 %v703
  %vm710 = vweird.f32 %v704
  %vm711 = vmor %vm709, %vm710
  %v712 = vsel %vm711, %v704, %v708
  %v713 = vand.u32 2147483647, %v703
  %vm714 = vcmp.eq.f32.partialorder %v713, 8.507059e+37
  %v715 = vand.u32 %v703, 2147483648
  %v716 = vor.u32 1.1754944e-38, %v715
  %v717 = vsel %vm714, %v716, %v712
  %v718 = vmul.f32 1.0, %v717
  %v719 = vadd.f32 %v106, %v677
  %v720 = vxor.u32 %v719, 2147483648
  %v721 = vmul.f32 %v720, 1.442695
  %v722 = vpow.pop %v721
  %v723 = vadd.f32 %v722, 1.0
  %v724 = vrcp.pop %v723
  %v725 = vmul.f32 %v723, %v724
  %v726 = vsub.f32 1.0, %v725
  %v727 = vmul.f32 %v724, %v726
  %v728 = vadd.f32 %v724, %v727
  %vm729 = vweird.f32 %v723
  %vm730 = vweird.f32 %v724
  %vm731 = vmor %vm729, %vm730
  %v732 = vsel %vm731, %v724, %v728
  %v733 = vand.u32 2147483647, %v723
  %vm734 = vcmp.eq.f32.partialorder %v733, 8.507059e+37
  %v735 = vand.u32 %v723, 2147483648
  %v736 = vor.u32 1.1754944e-38, %v735
  %v737 = vsel %vm734, %v736, %v732
  %v738 = vmul.f32 1.0, %v737
  %v739 = vmul.f32 %v718, %v697
  %v740 = vadd.f32 %v139, %v739
  %v741 = vtanh.pop %v740
  %v742 = vsub.f32 1.0, %v738
  %v743 = vmul.f32 %v742, %v741
  %v745 = vmul.f32 %v738, %v636
  %v746 = vadd.f32 %v743, %v745
  %v748 = vsel %vm159, %v746, 0
  %750 = vmatpush.msra.mxu0 0.0
  %751 = vmatpush.msra.mxu0 0.0
  %752 = vmatpush.msra.mxu0 0.0
  %753 = vmatpush.msra.mxu0 0.0
  %754 = vmatpush.msra.mxu0 0.0
  %755 = vmatpush.msra.mxu0 0.0
  %756 = vmatpush.msra.mxu0 0.0
  %757 = vmatpush.msra.mxu0 0.0
  %758 = vmatpush.msra.mxu0 0.0
  %759 = vmatpush.msra.mxu0 0.0
  %760 = vmatpush.msra.mxu0 0.0
  %761 = vmatpush.msra.mxu0 0.0
  %762 = vmatpush.msra.mxu0 %v144
  %763 = vmatpush.msra.mxu0 %v143
  %764 = vmatpush.msra.mxu0 %v142
  %765 = vmatpush.msra.mxu0 %v141
  %766 = vmatmul.f32.gmra.mxu0 %v748
  %v767 = vpop.f32.mrf.mxu0
  %v768 = vadd.f32 0.0, %v767
  %769 = vdwg.mxu0
  %770 = vmatpush.msra.mxu0 0.0
  %771 = vmatpush.msra.mxu0 0.0
  %772 = vmatpush.msra.mxu0 0.0
  %773 = vmatpush.msra.mxu0 0.0
  %774 = vmatpush.msra.mxu0 0.0
  %775 = vmatpush.msra.mxu0 0.0
  %776 = vmatpush.msra.mxu0 0.0
  %777 = vmatpush.msra.mxu0 0.0
  %778 = vmatpush.msra.mxu0 0.0
  %779 = vmatpush.msra.mxu0 0.0
  %780 = vmatpush.msra.mxu0 0.0
  %781 = vmatpush.msra.mxu0 0.0
  %782 = vmatpush.msra.mxu0 %v149
  %783 = vmatpush.msra.mxu0 %v148
  %784 = vmatpush.msra.mxu0 %v147
  %785 = vmatpush.msra.mxu0 %v146
  %786 = vmatmul.f32.gmra.mxu0 %v748
  %v787 = vpop.f32.mrf.mxu0
  %v788 = vadd.f32 0.0, %v787
  %789 = vdwg.mxu0
  %790 = vmatpush.msra.mxu0 0.0
  %791 = vmatpush.msra.mxu0 0.0
  %792 = vmatpush.msra.mxu0 0.0
  %793 = vmatpush.msra.mxu0 0.0
  %794 = vmatpush.msra.mxu0 0.0
  %795 = vmatpush.msra.mxu0 0.0
  %796 = vmatpush.msra.mxu0 0.0
  %797 = vmatpush.msra.mxu0 0.0
  %798 = vmatpush.msra.mxu0 0.0
  %799 = vmatpush.msra.mxu0 0.0
  %800 = vmatpush.msra.mxu0 0.0
  %801 = vmatpush.msra.mxu0 0.0
  %802 = vmatpush.msra.mxu0 %v154
  %803 = vmatpush.msra.mxu0 %v153
  %804 = vmatpush.msra.mxu0 %v152
  %805 = vmatpush.msra.mxu0 %v151
  %806 = vmatmul.f32.gmra.mxu0 %v748
  %v807 = vpop.f32.mrf.mxu0
  %v808 = vadd.f32 %v157, %v807
  %809 = vdwg.mxu0
  %v811 = vrot.slane %v768, 6
  %v813 = vadd.f32 %v73, %v811
  %v814 = vxor.u32 %v813, 2147483648
  %v815 = vmul.f32 %v814, 1.442695
  %v816 = vpow.pop %v815
  %v817 = vadd.f32 %v816, 1.0
  %v818 = vrcp.pop %v817
  %v819 = vmul.f32 %v817, %v818
  %v820 = vsub.f32 1.0, %v819
  %v821 = vmul.f32 %v818, %v820
  %v822 = vadd.f32 %v818, %v821
  %vm823 = vweird.f32 %v817
  %vm824 = vweird.f32 %v818
  %vm825 = vmor %vm823, %vm824
  %v826 = vsel %vm825, %v818, %v822
  %v827 = vand.u32 2147483647, %v817
  %vm828 = vcmp.eq.f32.partialorder %v827, 8.507059e+37
  %v829 = vand.u32 %v817, 2147483648
  %v830 = vor.u32 1.1754944e-38, %v829
  %v831 = vsel %vm828, %v830, %v826
  %v832 = vmul.f32 1.0, %v831
  %v834 = vrot.slane %v788, 6
  %v836 = vadd.f32 %v106, %v834
  %v837 = vxor.u32 %v836, 2147483648
  %v838 = vmul.f32 %v837, 1.442695
  %v839 = vpow.pop %v838
  %v840 = vadd.f32 %v839, 1.0
  %v841 = vrcp.pop %v840
  %v842 = vmul.f32 %v840, %v841
  %v843 = vsub.f32 1.0, %v842
  %v844 = vmul.f32 %v841, %v843
  %v845 = vadd.f32 %v841, %v844
  %vm846 = vweird.f32 %v840
  %vm847 = vweird.f32 %v841
  %vm848 = vmor %vm846, %vm847
  %v849 = vsel %vm848, %v841, %v845
  %v850 = vand.u32 2147483647, %v840
  %vm851 = vcmp.eq.f32.partialorder %v850, 8.507059e+37
  %v852 = vand.u32 %v840, 2147483648
  %v853 = vor.u32 1.1754944e-38, %v852
  %v854 = vsel %vm851, %v853, %v849
  %v855 = vmul.f32 1.0, %v854
  %v857 = vrot.slane %v808, 6
  %v859 = vmul.f32 %v832, %v857
  %v860 = vadd.f32 %v139, %v859
  %v861 = vtanh.pop %v860
  %v862 = vsub.f32 1.0, %v855
  %v863 = vmul.f32 %v862, %v861
  %v864 = vrot.slane %v746, 6
  %v866 = vmul.f32 %v855, %v864
  %v867 = vadd.f32 %v863, %v866
  %v869 = vrot.slane %v867, 2
  %v870 = vsel %vm159, %v869, 0
  %872 = vmatpush.msra.mxu0 0.0
  %873 = vmatpush.msra.mxu0 0.0
  %874 = vmatpush.msra.mxu0 0.0
  %875 = vmatpush.msra.mxu0 0.0
  %876 = vmatpush.msra.mxu0 0.0
  %877 = vmatpush.msra.mxu0 0.0
  %878 = vmatpush.msra.mxu0 0.0
  %879 = vmatpush.msra.mxu0 0.0
  %880 = vmatpush.msra.mxu0 0.0
  %881 = vmatpush.msra.mxu0 0.0
  %882 = vmatpush.msra.mxu0 0.0
  %883 = vmatpush.msra.mxu0 0.0
  %884 = vmatpush.msra.mxu0 %v144
  %885 = vmatpush.msra.mxu0 %v143
  %886 = vmatpush.msra.mxu0 %v142
  %887 = vmatpush.msra.mxu0 %v141
  %888 = vmatmul.f32.gmra.mxu0 %v870
  %v889 = vpop.f32.mrf.mxu0
  %v890 = vadd.f32 0.0, %v889
  %891 = vdwg.mxu0
  %892 = vmatpush.msra.mxu0 0.0
  %893 = vmatpush.msra.mxu0 0.0
  %894 = vmatpush.msra.mxu0 0.0
  %895 = vmatpush.msra.mxu0 0.0
  %896 = vmatpush.msra.mxu0 0.0
  %897 = vmatpush.msra.mxu0 0.0
  %898 = vmatpush.msra.mxu0 0.0
  %899 = vmatpush.msra.mxu0 0.0
  %900 = vmatpush.msra.mxu0 0.0
  %901 = vmatpush.msra.mxu0 0.0
  %902 = vmatpush.msra.mxu0 0.0
  %903 = vmatpush.msra.mxu0 0.0
  %904 = vmatpush.msra.mxu0 %v149
  %905 = vmatpush.msra.mxu0 %v148
  %906 = vmatpush.msra.mxu0 %v147
  %907 = vmatpush.msra.mxu0 %v146
  %908 = vmatmul.f32.gmra.mxu0 %v870
  %v909 = vpop.f32.mrf.mxu0
  %v910 = vadd.f32 0.0, %v909
  %911 = vdwg.mxu0
  %912 = vmatpush.msra.mxu0 0.0
  %913 = vmatpush.msra.mxu0 0.0
  %914 = vmatpush.msra.mxu0 0.0
  %915 = vmatpush.msra.mxu0 0.0
  %916 = vmatpush.msra.mxu0 0.0
  %917 = vmatpush.msra.mxu0 0.0
  %918 = vmatpush.msra.mxu0 0.0
  %919 = vmatpush.msra.mxu0 0.0
  %920 = vmatpush.msra.mxu0 0.0
  %921 = vmatpush.msra.mxu0 0.0
  %922 = vmatpush.msra.mxu0 0.0
  %923 = vmatpush.msra.mxu0 0.0
  %924 = vmatpush.msra.mxu0 %v154
  %925 = vmatpush.msra.mxu0 %v153
  %926 = vmatpush.msra.mxu0 %v152
  %927 = vmatpush.msra.mxu0 %v151
  %928 = vmatmul.f32.gmra.mxu0 %v870
  %v929 = vpop.f32.mrf.mxu0
  %v930 = vadd.f32 %v157, %v929
  %931 = vdwg.mxu0
  %v933 = vrot.slane %v890, 4
  %v935 = vadd.f32 %v73, %v933
  %v936 = vxor.u32 %v935, 2147483648
  %v937 = vmul.f32 %v936, 1.442695
  %v938 = vpow.pop %v937
  %v939 = vadd.f32 %v938, 1.0
  %v940 = vrcp.pop %v939
  %v941 = vmul.f32 %v939, %v940
  %v942 = vsub.f32 1.0, %v941
  %v943 = vmul.f32 %v940, %v942
  %v944 = vadd.f32 %v940, %v943
  %vm945 = vweird.f32 %v939
  %vm946 = vweird.f32 %v940
  %vm947 = vmor %vm945, %vm946
  %v948 = vsel %vm947, %v940, %v944
  %v949 = vand.u32 2147483647, %v939
  %vm950 = vcmp.eq.f32.partialorder %v949, 8.507059e+37
  %v951 = vand.u32 %v939, 2147483648
  %v952 = vor.u32 1.1754944e-38, %v951
  %v953 = vsel %vm950, %v952, %v948
  %v954 = vmul.f32 1.0, %v953
  %v956 = vrot.slane %v910, 4
  %v958 = vadd.f32 %v106, %v956
  %v959 = vxor.u32 %v958, 2147483648
  %v960 = vmul.f32 %v959, 1.442695
  %v961 = vpow.pop %v960
  %v962 = vadd.f32 %v961, 1.0
  %v963 = vrcp.pop %v962
  %v964 = vmul.f32 %v962, %v963
  %v965 = vsub.f32 1.0, %v964
  %v966 = vmul.f32 %v963, %v965
  %v967 = vadd.f32 %v963, %v966
  %vm968 = vweird.f32 %v962
  %vm969 = vweird.f32 %v963
  %vm970 = vmor %vm968, %vm969
  %v971 = vsel %vm970, %v963, %v967
  %v972 = vand.u32 2147483647, %v962
  %vm973 = vcmp.eq.f32.partialorder %v972, 8.507059e+37
  %v974 = vand.u32 %v962, 2147483648
  %v975 = vor.u32 1.1754944e-38, %v974
  %v976 = vsel %vm973, %v975, %v971
  %v977 = vmul.f32 1.0, %v976
  %v979 = vrot.slane %v930, 4
  %v981 = vmul.f32 %v954, %v979
  %v982 = vadd.f32 %v139, %v981
  %v983 = vtanh.pop %v982
  %v984 = vsub.f32 1.0, %v977
  %v985 = vmul.f32 %v984, %v983
  %v986 = vrot.slane %v867, 6
  %v988 = vmul.f32 %v977, %v986
  %v989 = vadd.f32 %v985, %v988
  %v991 = vrot.slane %v989, 4
  %v992 = vsel %vm159, %v991, 0
  %994 = vmatpush.msra.mxu0 0.0
  %995 = vmatpush.msra.mxu0 0.0
  %996 = vmatpush.msra.mxu0 0.0
  %997 = vmatpush.msra.mxu0 0.0
  %998 = vmatpush.msra.mxu0 0.0
  %999 = vmatpush.msra.mxu0 0.0
  %1000 = vmatpush.msra.mxu0 0.0
  %1001 = vmatpush.msra.mxu0 0.0
  %1002 = vmatpush.msra.mxu0 0.0
  %1003 = vmatpush.msra.mxu0 0.0
  %1004 = vmatpush.msra.mxu0 0.0
  %1005 = vmatpush.msra.mxu0 0.0
  %1006 = vmatpush.msra.mxu0 %v144
  %1007 = vmatpush.msra.mxu0 %v143
  %1008 = vmatpush.msra.mxu0 %v142
  %1009 = vmatpush.msra.mxu0 %v141
  %1010 = vmatmul.f32.gmra.mxu0 %v992
  %v1011 = vpop.f32.mrf.mxu0
  %v1012 = vadd.f32 0.0, %v1011
  %1013 = vdwg.mxu0
  %1014 = vmatpush.msra.mxu0 0.0
  %1015 = vmatpush.msra.mxu0 0.0
  %1016 = vmatpush.msra.mxu0 0.0
  %1017 = vmatpush.msra.mxu0 0.0
  %1018 = vmatpush.msra.mxu0 0.0
  %1019 = vmatpush.msra.mxu0 0.0
  %1020 = vmatpush.msra.mxu0 0.0
  %1021 = vmatpush.msra.mxu0 0.0
  %1022 = vmatpush.msra.mxu0 0.0
  %1023 = vmatpush.msra.mxu0 0.0
  %1024 = vmatpush.msra.mxu0 0.0
  %1025 = vmatpush.msra.mxu0 0.0
  %1026 = vmatpush.msra.mxu0 %v149
  %1027 = vmatpush.msra.mxu0 %v148
  %1028 = vmatpush.msra.mxu0 %v147
  %1029 = vmatpush.msra.mxu0 %v146
  %1030 = vmatmul.f32.gmra.mxu0 %v992
  %v1031 = vpop.f32.mrf.mxu0
  %v1032 = vadd.f32 0.0, %v1031
  %1033 = vdwg.mxu0
  %1034 = vmatpush.msra.mxu0 0.0
  %1035 = vmatpush.msra.mxu0 0.0
  %1036 = vmatpush.msra.mxu0 0.0
  %1037 = vmatpush.msra.mxu0 0.0
  %1038 = vmatpush.msra.mxu0 0.0
  %1039 = vmatpush.msra.mxu0 0.0
  %1040 = vmatpush.msra.mxu0 0.0
  %1041 = vmatpush.msra.mxu0 0.0
  %1042 = vmatpush.msra.mxu0 0.0
  %1043 = vmatpush.msra.mxu0 0.0
  %1044 = vmatpush.msra.mxu0 0.0
  %1045 = vmatpush.msra.mxu0 0.0
  %1046 = vmatpush.msra.mxu0 %v154
  %1047 = vmatpush.msra.mxu0 %v153
  %1048 = vmatpush.msra.mxu0 %v152
  %1049 = vmatpush.msra.mxu0 %v151
  %1050 = vmatmul.f32.gmra.mxu0 %v992
  %v1051 = vpop.f32.mrf.mxu0
  %v1052 = vadd.f32 %v157, %v1051
  %1053 = vdwg.mxu0
  %v1055 = vrot.slane %v1012, 2
  %v1057 = vadd.f32 %v73, %v1055
  %v1058 = vxor.u32 %v1057, 2147483648
  %v1059 = vmul.f32 %v1058, 1.442695
  %v1060 = vpow.pop %v1059
  %v1061 = vadd.f32 %v1060, 1.0
  %v1062 = vrcp.pop %v1061
  %v1063 = vmul.f32 %v1061, %v1062
  %v1064 = vsub.f32 1.0, %v1063
  %v1065 = vmul.f32 %v1062, %v1064
  %v1066 = vadd.f32 %v1062, %v1065
  %vm1067 = vweird.f32 %v1061
  %vm1068 = vweird.f32 %v1062
  %vm1069 = vmor %vm1067, %vm1068
  %v1070 = vsel %vm1069, %v1062, %v1066
  %v1071 = vand.u32 2147483647, %v1061
  %vm1072 = vcmp.eq.f32.partialorder %v1071, 8.507059e+37
  %v1073 = vand.u32 %v1061, 2147483648
  %v1074 = vor.u32 1.1754944e-38, %v1073
  %v1075 = vsel %vm1072, %v1074, %v1070
  %v1076 = vmul.f32 1.0, %v1075
  %v1078 = vrot.slane %v1032, 2
  %v1080 = vadd.f32 %v106, %v1078
  %v1081 = vxor.u32 %v1080, 2147483648
  %v1082 = vmul.f32 %v1081, 1.442695
  %v1083 = vpow.pop %v1082
  %v1084 = vadd.f32 %v1083, 1.0
  %v1085 = vrcp.pop %v1084
  %v1086 = vmul.f32 %v1084, %v1085
  %v1087 = vsub.f32 1.0, %v1086
  %v1088 = vmul.f32 %v1085, %v1087
  %v1089 = vadd.f32 %v1085, %v1088
  %vm1090 = vweird.f32 %v1084
  %vm1091 = vweird.f32 %v1085
  %vm1092 = vmor %vm1090, %vm1091
  %v1093 = vsel %vm1092, %v1085, %v1089
  %v1094 = vand.u32 2147483647, %v1084
  %vm1095 = vcmp.eq.f32.partialorder %v1094, 8.507059e+37
  %v1096 = vand.u32 %v1084, 2147483648
  %v1097 = vor.u32 1.1754944e-38, %v1096
  %v1098 = vsel %vm1095, %v1097, %v1093
  %v1099 = vmul.f32 1.0, %v1098
  %v1101 = vrot.slane %v1052, 2
  %v1103 = vmul.f32 %v1076, %v1101
  %v1104 = vadd.f32 %v139, %v1103
  %v1105 = vtanh.pop %v1104
  %v1106 = vsub.f32 1.0, %v1099
  %v1107 = vmul.f32 %v1106, %v1105
  %v1108 = vrot.slane %v989, 6
  %v1110 = vmul.f32 %v1099, %v1108
  %v1111 = vadd.f32 %v1107, %v1110
  %1112 = vrot.lane.b32.xlu0 %v392, 32
  %v1113 = vpop.permute.xlu0 %1112
  %1115 = vrot.lane.b32.xlu0 %v514, 64
  %v1116 = vpop.permute.xlu0 %1115
  %1118 = vrot.lane.b32.xlu0 %v636, 96
  %v1119 = vpop.permute.xlu0 %1118
  %1121 = vrot.lane.b32.xlu0 %v869, 32
  %v1122 = vpop.permute.xlu0 %1121
  %1124 = vrot.lane.b32.xlu0 %v991, 64
  %v1125 = vpop.permute.xlu0 %1124
  %v1128 = vrot.slane %v1111, 6
  %1129 = vrot.lane.b32.xlu0 %v1128, 96
  %v1130 = vpop.permute.xlu0 %1129
  %v1132 = vsel %vm159, %v269, %v1113
  %vm1133 = vcmask 523264
  %v1134 = vsel %vm1133, %v1132, %v1116
  %vm1135 = vcmask 785408
  %v1136 = vsel %vm1135, %v1134, %v1119
  %v1137 = vsel %vm159, %v746, %v1122
  %v1138 = vsel %vm1133, %v1137, %v1125
  %v1139 = vsel %vm1135, %v1138, %v1130
  %v1142 = vrot.slane %v1139, 6
  %vm1143 = vcmask 1041408
  %v1144 = vsel %vm1143, %v1136, %v1142
  %1146 = vst [vmem:[%s9] sm:$0xf] %v1144
  %v1147 = vsel %vm1143, %v269, %v390
  %v1148 = vsel %vm48, %v1147, %v512
  %vm1149 = vcmask 1045504
  %v1150 = vsel %vm1149, %v1148, %v634
  %v1151 = vsel %vm1143, %v746, %v867
  %v1152 = vsel %vm48, %v1151, %v989
  %v1153 = vsel %vm1149, %v1152, %v1111
  %v1154 = vld [vmem:[%s5] sm:$0xff]
  %v1155 = vld [vmem:[%s5 + $0x8] sm:$0xff]
  %v1156 = vld [vmem:[%s5 + $0x10] sm:$0xff]
  %v1157 = vld [vmem:[%s5 + $0x18] sm:$0xff]
  %v1158 = vld [vmem:[%s7] sm:$0x1]
  %v1160 = vperm.slane %v1158, 0
  %v1163 = vsel %vm159, %v1150, 0
  %v1166 = vsel %vm159, %v1153, 0
  %1168 = vmatpush.msra.mxu0 0.0
  %1169 = vmatpush.msra.mxu0 0.0
  %1170 = vmatpush.msra.mxu0 0.0
  %1171 = vmatpush.msra.mxu0 0.0
  %1172 = vmatpush.msra.mxu0 0.0
  %1173 = vmatpush.msra.mxu0 0.0
  %1174 = vmatpush.msra.mxu0 0.0
  %1175 = vmatpush.msra.mxu0 0.0
  %1176 = vmatpush.msra.mxu0 0.0
  %1177 = vmatpush.msra.mxu0 0.0
  %1178 = vmatpush.msra.mxu0 0.0
  %1179 = vmatpush.msra.mxu0 0.0
  %1180 = vmatpush.msra.mxu0 %v1157
  %1181 = vmatpush.msra.mxu0 %v1156
  %1182 = vmatpush.msra.mxu0 %v1155
  %1183 = vmatpush.msra.mxu0 %v1154
  %1184 = vmatmul.f32.gmra.mxu0 %v1163
  %v1185 = vpop.f32.mrf.mxu0
  %v1186 = vadd.f32 %v1160, %v1185
  %1187 = vmatmul.f32.gmra.mxu0 %v1166
  %v1188 = vpop.f32.mrf.mxu0
  %v1189 = vadd.f32 %v1160, %v1188
  %1190 = vdwg.mxu0
  %s1191 = scalar_lea.vmem %s5, 32
  %v1192 = vld [vmem:[%s1191] sm:$0xff]
  %v1193 = vld [vmem:[%s1191 + $0x8] sm:$0xff]
  %v1194 = vld [vmem:[%s1191 + $0x10] sm:$0xff]
  %v1195 = vld [vmem:[%s1191 + $0x18] sm:$0xff]
  %s1196 = scalar_lea.vmem %s7, 1
  %v1197 = vld [vmem:[%s1196] sm:$0x1]
  %v1199 = vperm.slane %v1197, 0
  %1201 = vmatpush.msra.mxu0 0.0
  %1202 = vmatpush.msra.mxu0 0.0
  %1203 = vmatpush.msra.mxu0 0.0
  %1204 = vmatpush.msra.mxu0 0.0
  %1205 = vmatpush.msra.mxu0 0.0
  %1206 = vmatpush.msra.mxu0 0.0
  %1207 = vmatpush.msra.mxu0 0.0
  %1208 = vmatpush.msra.mxu0 0.0
  %1209 = vmatpush.msra.mxu0 0.0
  %1210 = vmatpush.msra.mxu0 0.0
  %1211 = vmatpush.msra.mxu0 0.0
  %1212 = vmatpush.msra.mxu0 0.0
  %1213 = vmatpush.msra.mxu0 %v1195
  %1214 = vmatpush.msra.mxu0 %v1194
  %1215 = vmatpush.msra.mxu0 %v1193
  %1216 = vmatpush.msra.mxu0 %v1192
  %1217 = vmatmul.f32.gmra.mxu0 %v1163
  %v1218 = vpop.f32.mrf.mxu0
  %v1219 = vadd.f32 %v1199, %v1218
  %1220 = vmatmul.f32.gmra.mxu0 %v1166
  %v1221 = vpop.f32.mrf.mxu0
  %v1222 = vadd.f32 %v1199, %v1221
  %1223 = vdwg.mxu0
  %s1224 = scalar_lea.vmem %s5, 64
  %v1225 = vld [vmem:[%s1224] sm:$0xff]
  %v1226 = vld [vmem:[%s1224 + $0x8] sm:$0xff]
  %v1227 = vld [vmem:[%s1224 + $0x10] sm:$0xff]
  %v1228 = vld [vmem:[%s1224 + $0x18] sm:$0xff]
  %s1229 = scalar_lea.vmem %s7, 2
  %v1230 = vld [vmem:[%s1229] sm:$0x1]
  %v1232 = vperm.slane %v1230, 0
  %1234 = vmatpush.msra.mxu0 0.0
  %1235 = vmatpush.msra.mxu0 0.0
  %1236 = vmatpush.msra.mxu0 0.0
  %1237 = vmatpush.msra.mxu0 0.0
  %1238 = vmatpush.msra.mxu0 0.0
  %1239 = vmatpush.msra.mxu0 0.0
  %1240 = vmatpush.msra.mxu0 0.0
  %1241 = vmatpush.msra.mxu0 0.0
  %1242 = vmatpush.msra.mxu0 0.0
  %1243 = vmatpush.msra.mxu0 0.0
  %1244 = vmatpush.msra.mxu0 0.0
  %1245 = vmatpush.msra.mxu0 0.0
  %1246 = vmatpush.msra.mxu0 %v1228
  %1247 = vmatpush.msra.mxu0 %v1227
  %1248 = vmatpush.msra.mxu0 %v1226
  %1249 = vmatpush.msra.mxu0 %v1225
  %1250 = vmatmul.f32.gmra.mxu0 %v1163
  %v1251 = vpop.f32.mrf.mxu0
  %v1252 = vadd.f32 %v1232, %v1251
  %1253 = vmatmul.f32.gmra.mxu0 %v1166
  %v1254 = vpop.f32.mrf.mxu0
  %v1255 = vadd.f32 %v1232, %v1254
  %1256 = vdwg.mxu0
  %v1257 = vld [vmem:[%s6] sm:$0xf]
  %s1258 = scalar_lea.vmem %s6, 4
  %v1259 = vld [vmem:[%s1258] sm:$0xf]
  %s1260 = scalar_lea.vmem %s6, 8
  %v1261 = vld [vmem:[%s1260] sm:$0xf]
  %v1262 = vld [vmem:[%s8] sm:$0x1]
  %v1264 = vperm.slane %v1262, 0
  %v1266 = vsel %vm41, 0.0, 0
  %v1269 = vsel %vm48, %v1257, 0
  %1271 = vmatpush.msra.mxu0 0.0
  %1272 = vmatpush.msra.mxu0 0.0
  %1273 = vmatpush.msra.mxu0 0.0
  %1274 = vmatpush.msra.mxu0 0.0
  %1275 = vmatpush.msra.mxu0 0.0
  %1276 = vmatpush.msra.mxu0 0.0
  %1277 = vmatpush.msra.mxu0 0.0
  %1278 = vmatpush.msra.mxu0 0.0
  %1279 = vmatpush.msra.mxu0 0.0
  %1280 = vmatpush.msra.mxu0 0.0
  %1281 = vmatpush.msra.mxu0 0.0
  %1282 = vmatpush.msra.mxu0 0.0
  %1283 = vmatpush.msra.mxu0 0.0
  %1284 = vmatpush.msra.mxu0 0.0
  %1285 = vmatpush.msra.mxu0 0.0
  %1286 = vmatpush.msra.mxu0 %v1269
  %1287 = vmatmul.f32.gmra.mxu0 %v1266
  %v1288 = vpop.f32.mrf.mxu0
  %v1289 = vadd.f32 0.0, %v1288
  %1290 = vdwg.mxu0
  %v1292 = vsel %vm48, %v1259, 0
  %1294 = vmatpush.msra.mxu0 0.0
  %1295 = vmatpush.msra.mxu0 0.0
  %1296 = vmatpush.msra.mxu0 0.0
  %1297 = vmatpush.msra.mxu0 0.0
  %1298 = vmatpush.msra.mxu0 0.0
  %1299 = vmatpush.msra.mxu0 0.0
  %1300 = vmatpush.msra.mxu0 0.0
  %1301 = vmatpush.msra.mxu0 0.0
  %1302 = vmatpush.msra.mxu0 0.0
  %1303 = vmatpush.msra.mxu0 0.0
  %1304 = vmatpush.msra.mxu0 0.0
  %1305 = vmatpush.msra.mxu0 0.0
  %1306 = vmatpush.msra.mxu0 0.0
  %1307 = vmatpush.msra.mxu0 0.0
  %1308 = vmatpush.msra.mxu0 0.0
  %1309 = vmatpush.msra.mxu0 %v1292
  %1310 = vmatmul.f32.gmra.mxu0 %v1266
  %v1311 = vpop.f32.mrf.mxu0
  %v1312 = vadd.f32 0.0, %v1311
  %1313 = vdwg.mxu0
  %v1315 = vsel %vm48, %v1261, 0
  %1317 = vmatpush.msra.mxu0 0.0
  %1318 = vmatpush.msra.mxu0 0.0
  %1319 = vmatpush.msra.mxu0 0.0
  %1320 = vmatpush.msra.mxu0 0.0
  %1321 = vmatpush.msra.mxu0 0.0
  %1322 = vmatpush.msra.mxu0 0.0
  %1323 = vmatpush.msra.mxu0 0.0
  %1324 = vmatpush.msra.mxu0 0.0
  %1325 = vmatpush.msra.mxu0 0.0
  %1326 = vmatpush.msra.mxu0 0.0
  %1327 = vmatpush.msra.mxu0 0.0
  %1328 = vmatpush.msra.mxu0 0.0
  %1329 = vmatpush.msra.mxu0 0.0
  %1330 = vmatpush.msra.mxu0 0.0
  %1331 = vmatpush.msra.mxu0 0.0
  %1332 = vmatpush.msra.mxu0 %v1315
  %1333 = vmatmul.f32.gmra.mxu0 %v1266
  %v1334 = vpop.f32.mrf.mxu0
  %v1335 = vadd.f32 %v1264, %v1334
  %1336 = vdwg.mxu0
  %v1337 = vadd.f32 %v1186, %v1289
  %v1338 = vxor.u32 %v1337, 2147483648
  %v1339 = vmul.f32 %v1338, 1.442695
  %v1340 = vpow.pop %v1339
  %v1341 = vadd.f32 %v1340, 1.0
  %v1342 = vrcp.pop %v1341
  %v1343 = vmul.f32 %v1341, %v1342
  %v1344 = vsub.f32 1.0, %v1343
  %v1345 = vmul.f32 %v1342, %v1344
  %v1346 = vadd.f32 %v1342, %v1345
  %vm1347 = vweird.f32 %v1341
  %vm1348 = vweird.f32 %v1342
  %vm1349 = vmor %vm1347, %vm1348
  %v1350 = vsel %vm1349, %v1342, %v1346
  %v1351 = vand.u32 2147483647, %v1341
  %vm1352 = vcmp.eq.f32.partialorder %v1351, 8.507059e+37
  %v1353 = vand.u32 %v1341, 2147483648
  %v1354 = vor.u32 1.1754944e-38, %v1353
  %v1355 = vsel %vm1352, %v1354, %v1350
  %v1356 = vmul.f32 1.0, %v1355
  %v1357 = vadd.f32 %v1219, %v1312
  %v1358 = vxor.u32 %v1357, 2147483648
  %v1359 = vmul.f32 %v1358, 1.442695
  %v1360 = vpow.pop %v1359
  %v1361 = vadd.f32 %v1360, 1.0
  %v1362 = vrcp.pop %v1361
  %v1363 = vmul.f32 %v1361, %v1362
  %v1364 = vsub.f32 1.0, %v1363
  %v1365 = vmul.f32 %v1362, %v1364
  %v1366 = vadd.f32 %v1362, %v1365
  %vm1367 = vweird.f32 %v1361
  %vm1368 = vweird.f32 %v1362
  %vm1369 = vmor %vm1367, %vm1368
  %v1370 = vsel %vm1369, %v1362, %v1366
  %v1371 = vand.u32 2147483647, %v1361
  %vm1372 = vcmp.eq.f32.partialorder %v1371, 8.507059e+37
  %v1373 = vand.u32 %v1361, 2147483648
  %v1374 = vor.u32 1.1754944e-38, %v1373
  %v1375 = vsel %vm1372, %v1374, %v1370
  %v1376 = vmul.f32 1.0, %v1375
  %v1377 = vmul.f32 %v1356, %v1335
  %v1378 = vadd.f32 %v1252, %v1377
  %v1379 = vtanh.pop %v1378
  %v1380 = vsub.f32 1.0, %v1376
  %v1381 = vmul.f32 %v1380, %v1379
  %v1382 = vmul.f32 %v1376, 0.0
  %v1383 = vadd.f32 %v1381, %v1382
  %v1385 = vsel %vm41, %v1383, 0
  %1387 = vmatpush.msra.mxu0 0.0
  %1388 = vmatpush.msra.mxu0 0.0
  %1389 = vmatpush.msra.mxu0 0.0
  %1390 = vmatpush.msra.mxu0 0.0
  %1391 = vmatpush.msra.mxu0 0.0
  %1392 = vmatpush.msra.mxu0 0.0
  %1393 = vmatpush.msra.mxu0 0.0
  %1394 = vmatpush.msra.mxu0 0.0
  %1395 = vmatpush.msra.mxu0 0.0
  %1396 = vmatpush.msra.mxu0 0.0
  %1397 = vmatpush.msra.mxu0 0.0
  %1398 = vmatpush.msra.mxu0 0.0
  %1399 = vmatpush.msra.mxu0 0.0
  %1400 = vmatpush.msra.mxu0 0.0
  %1401 = vmatpush.msra.mxu0 0.0
  %1402 = vmatpush.msra.mxu0 %v1269
  %1403 = vmatmul.f32.gmra.mxu0 %v1385
  %v1404 = vpop.f32.mrf.mxu0
  %v1405 = vadd.f32 0.0, %v1404
  %1406 = vdwg.mxu0
  %1407 = vmatpush.msra.mxu0 0.0
  %1408 = vmatpush.msra.mxu0 0.0
  %1409 = vmatpush.msra.mxu0 0.0
  %1410 = vmatpush.msra.mxu0 0.0
  %1411 = vmatpush.msra.mxu0 0.0
  %1412 = vmatpush.msra.mxu0 0.0
  %1413 = vmatpush.msra.mxu0 0.0
  %1414 = vmatpush.msra.mxu0 0.0
  %1415 = vmatpush.msra.mxu0 0.0
  %1416 = vmatpush.msra.mxu0 0.0
  %1417 = vmatpush.msra.mxu0 0.0
  %1418 = vmatpush.msra.mxu0 0.0
  %1419 = vmatpush.msra.mxu0 0.0
  %1420 = vmatpush.msra.mxu0 0.0
  %1421 = vmatpush.msra.mxu0 0.0
  %1422 = vmatpush.msra.mxu0 %v1292
  %1423 = vmatmul.f32.gmra.mxu0 %v1385
  %v1424 = vpop.f32.mrf.mxu0
  %v1425 = vadd.f32 0.0, %v1424
  %1426 = vdwg.mxu0
  %1427 = vmatpush.msra.mxu0 0.0
  %1428 = vmatpush.msra.mxu0 0.0
  %1429 = vmatpush.msra.mxu0 0.0
  %1430 = vmatpush.msra.mxu0 0.0
  %1431 = vmatpush.msra.mxu0 0.0
  %1432 = vmatpush.msra.mxu0 0.0
  %1433 = vmatpush.msra.mxu0 0.0
  %1434 = vmatpush.msra.mxu0 0.0
  %1435 = vmatpush.msra.mxu0 0.0
  %1436 = vmatpush.msra.mxu0 0.0
  %1437 = vmatpush.msra.mxu0 0.0
  %1438 = vmatpush.msra.mxu0 0.0
  %1439 = vmatpush.msra.mxu0 0.0
  %1440 = vmatpush.msra.mxu0 0.0
  %1441 = vmatpush.msra.mxu0 0.0
  %1442 = vmatpush.msra.mxu0 %v1315
  %1443 = vmatmul.f32.gmra.mxu0 %v1385
  %v1444 = vpop.f32.mrf.mxu0
  %v1445 = vadd.f32 %v1264, %v1444
  %1446 = vdwg.mxu0
  %v1448 = vrot.slane %v1405, 6
  %v1450 = vadd.f32 %v1186, %v1448
  %v1451 = vxor.u32 %v1450, 2147483648
  %v1452 = vmul.f32 %v1451, 1.442695
  %v1453 = vpow.pop %v1452
  %v1454 = vadd.f32 %v1453, 1.0
  %v1455 = vrcp.pop %v1454
  %v1456 = vmul.f32 %v1454, %v1455
  %v1457 = vsub.f32 1.0, %v1456
  %v1458 = vmul.f32 %v1455, %v1457
  %v1459 = vadd.f32 %v1455, %v1458
  %vm1460 = vweird.f32 %v1454
  %vm1461 = vweird.f32 %v1455
  %vm1462 = vmor %vm1460, %vm1461
  %v1463 = vsel %vm1462, %v1455, %v1459
  %v1464 = vand.u32 2147483647, %v1454
  %vm1465 = vcmp.eq.f32.partialorder %v1464, 8.507059e+37
  %v1466 = vand.u32 %v1454, 2147483648
  %v1467 = vor.u32 1.1754944e-38, %v1466
  %v1468 = vsel %vm1465, %v1467, %v1463
  %v1469 = vmul.f32 1.0, %v1468
  %v1471 = vrot.slane %v1425, 6
  %v1473 = vadd.f32 %v1219, %v1471
  %v1474 = vxor.u32 %v1473, 2147483648
  %v1475 = vmul.f32 %v1474, 1.442695
  %v1476 = vpow.pop %v1475
  %v1477 = vadd.f32 %v1476, 1.0
  %v1478 = vrcp.pop %v1477
  %v1479 = vmul.f32 %v1477, %v1478
  %v1480 = vsub.f32 1.0, %v1479
  %v1481 = vmul.f32 %v1478, %v1480
  %v1482 = vadd.f32 %v1478, %v1481
  %vm1483 = vweird.f32 %v1477
  %vm1484 = vweird.f32 %v1478
  %vm1485 = vmor %vm1483, %vm1484
  %v1486 = vsel %vm1485, %v1478, %v1482
  %v1487 = vand.u32 2147483647, %v1477
  %vm1488 = vcmp.eq.f32.partialorder %v1487, 8.507059e+37
  %v1489 = vand.u32 %v1477, 2147483648
  %v1490 = vor.u32 1.1754944e-38, %v1489
  %v1491 = vsel %vm1488, %v1490, %v1486
  %v1492 = vmul.f32 1.0, %v1491
  %v1494 = vrot.slane %v1445, 6
  %v1496 = vmul.f32 %v1469, %v1494
  %v1497 = vadd.f32 %v1252, %v1496
  %v1498 = vtanh.pop %v1497
  %v1499 = vsub.f32 1.0, %v1492
  %v1500 = vmul.f32 %v1499, %v1498
  %v1501 = vrot.slane %v1383, 6
  %v1503 = vmul.f32 %v1492, %v1501
  %v1504 = vadd.f32 %v1500, %v1503
  %v1506 = vrot.slane %v1504, 2
  %v1507 = vsel %vm41, %v1506, 0
  %1509 = vmatpush.msra.mxu0 0.0
  %1510 = vmatpush.msra.mxu0 0.0
  %1511 = vmatpush.msra.mxu0 0.0
  %1512 = vmatpush.msra.mxu0 0.0
  %1513 = vmatpush.msra.mxu0 0.0
  %1514 = vmatpush.msra.mxu0 0.0
  %1515 = vmatpush.msra.mxu0 0.0
  %1516 = vmatpush.msra.mxu0 0.0
  %1517 = vmatpush.msra.mxu0 0.0
  %1518 = vmatpush.msra.mxu0 0.0
  %1519 = vmatpush.msra.mxu0 0.0
  %1520 = vmatpush.msra.mxu0 0.0
  %1521 = vmatpush.msra.mxu0 0.0
  %1522 = vmatpush.msra.mxu0 0.0
  %1523 = vmatpush.msra.mxu0 0.0
  %1524 = vmatpush.msra.mxu0 %v1269
  %1525 = vmatmul.f32.gmra.mxu0 %v1507
  %v1526 = vpop.f32.mrf.mxu0
  %v1527 = vadd.f32 0.0, %v1526
  %1528 = vdwg.mxu0
  %1529 = vmatpush.msra.mxu0 0.0
  %1530 = vmatpush.msra.mxu0 0.0
  %1531 = vmatpush.msra.mxu0 0.0
  %1532 = vmatpush.msra.mxu0 0.0
  %1533 = vmatpush.msra.mxu0 0.0
  %1534 = vmatpush.msra.mxu0 0.0
  %1535 = vmatpush.msra.mxu0 0.0
  %1536 = vmatpush.msra.mxu0 0.0
  %1537 = vmatpush.msra.mxu0 0.0
  %1538 = vmatpush.msra.mxu0 0.0
  %1539 = vmatpush.msra.mxu0 0.0
  %1540 = vmatpush.msra.mxu0 0.0
  %1541 = vmatpush.msra.mxu0 0.0
  %1542 = vmatpush.msra.mxu0 0.0
  %1543 = vmatpush.msra.mxu0 0.0
  %1544 = vmatpush.msra.mxu0 %v1292
  %1545 = vmatmul.f32.gmra.mxu0 %v1507
  %v1546 = vpop.f32.mrf.mxu0
  %v1547 = vadd.f32 0.0, %v1546
  %1548 = vdwg.mxu0
  %1549 = vmatpush.msra.mxu0 0.0
  %1550 = vmatpush.msra.mxu0 0.0
  %1551 = vmatpush.msra.mxu0 0.0
  %1552 = vmatpush.msra.mxu0 0.0
  %1553 = vmatpush.msra.mxu0 0.0
  %1554 = vmatpush.msra.mxu0 0.0
  %1555 = vmatpush.msra.mxu0 0.0
  %1556 = vmatpush.msra.mxu0 0.0
  %1557 = vmatpush.msra.mxu0 0.0
  %1558 = vmatpush.msra.mxu0 0.0
  %1559 = vmatpush.msra.mxu0 0.0
  %1560 = vmatpush.msra.mxu0 0.0
  %1561 = vmatpush.msra.mxu0 0.0
  %1562 = vmatpush.msra.mxu0 0.0
  %1563 = vmatpush.msra.mxu0 0.0
  %1564 = vmatpush.msra.mxu0 %v1315
  %1565 = vmatmul.f32.gmra.mxu0 %v1507
  %v1566 = vpop.f32.mrf.mxu0
  %v1567 = vadd.f32 %v1264, %v1566
  %1568 = vdwg.mxu0
  %v1570 = vrot.slane %v1527, 4
  %v1572 = vadd.f32 %v1186, %v1570
  %v1573 = vxor.u32 %v1572, 2147483648
  %v1574 = vmul.f32 %v1573, 1.442695
  %v1575 = vpow.pop %v1574
  %v1576 = vadd.f32 %v1575, 1.0
  %v1577 = vrcp.pop %v1576
  %v1578 = vmul.f32 %v1576, %v1577
  %v1579 = vsub.f32 1.0, %v1578
  %v1580 = vmul.f32 %v1577, %v1579
  %v1581 = vadd.f32 %v1577, %v1580
  %vm1582 = vweird.f32 %v1576
  %vm1583 = vweird.f32 %v1577
  %vm1584 = vmor %vm1582, %vm1583
  %v1585 = vsel %vm1584, %v1577, %v1581
  %v1586 = vand.u32 2147483647, %v1576
  %vm1587 = vcmp.eq.f32.partialorder %v1586, 8.507059e+37
  %v1588 = vand.u32 %v1576, 2147483648
  %v1589 = vor.u32 1.1754944e-38, %v1588
  %v1590 = vsel %vm1587, %v1589, %v1585
  %v1591 = vmul.f32 1.0, %v1590
  %v1593 = vrot.slane %v1547, 4
  %v1595 = vadd.f32 %v1219, %v1593
  %v1596 = vxor.u32 %v1595, 2147483648
  %v1597 = vmul.f32 %v1596, 1.442695
  %v1598 = vpow.pop %v1597
  %v1599 = vadd.f32 %v1598, 1.0
  %v1600 = vrcp.pop %v1599
  %v1601 = vmul.f32 %v1599, %v1600
  %v1602 = vsub.f32 1.0, %v1601
  %v1603 = vmul.f32 %v1600, %v1602
  %v1604 = vadd.f32 %v1600, %v1603
  %vm1605 = vweird.f32 %v1599
  %vm1606 = vweird.f32 %v1600
  %vm1607 = vmor %vm1605, %vm1606
  %v1608 = vsel %vm1607, %v1600, %v1604
  %v1609 = vand.u32 2147483647, %v1599
  %vm1610 = vcmp.eq.f32.partialorder %v1609, 8.507059e+37
  %v1611 = vand.u32 %v1599, 2147483648
  %v1612 = vor.u32 1.1754944e-38, %v1611
  %v1613 = vsel %vm1610, %v1612, %v1608
  %v1614 = vmul.f32 1.0, %v1613
  %v1616 = vrot.slane %v1567, 4
  %v1618 = vmul.f32 %v1591, %v1616
  %v1619 = vadd.f32 %v1252, %v1618
  %v1620 = vtanh.pop %v1619
  %v1621 = vsub.f32 1.0, %v1614
  %v1622 = vmul.f32 %v1621, %v1620
  %v1623 = vrot.slane %v1504, 6
  %v1625 = vmul.f32 %v1614, %v1623
  %v1626 = vadd.f32 %v1622, %v1625
  %v1628 = vrot.slane %v1626, 4
  %v1629 = vsel %vm41, %v1628, 0
  %1631 = vmatpush.msra.mxu0 0.0
  %1632 = vmatpush.msra.mxu0 0.0
  %1633 = vmatpush.msra.mxu0 0.0
  %1634 = vmatpush.msra.mxu0 0.0
  %1635 = vmatpush.msra.mxu0 0.0
  %1636 = vmatpush.msra.mxu0 0.0
  %1637 = vmatpush.msra.mxu0 0.0
  %1638 = vmatpush.msra.mxu0 0.0
  %1639 = vmatpush.msra.mxu0 0.0
  %1640 = vmatpush.msra.mxu0 0.0
  %1641 = vmatpush.msra.mxu0 0.0
  %1642 = vmatpush.msra.mxu0 0.0
  %1643 = vmatpush.msra.mxu0 0.0
  %1644 = vmatpush.msra.mxu0 0.0
  %1645 = vmatpush.msra.mxu0 0.0
  %1646 = vmatpush.msra.mxu0 %v1269
  %1647 = vmatmul.f32.gmra.mxu0 %v1629
  %v1648 = vpop.f32.mrf.mxu0
  %v1649 = vadd.f32 0.0, %v1648
  %1650 = vdwg.mxu0
  %1651 = vmatpush.msra.mxu0 0.0
  %1652 = vmatpush.msra.mxu0 0.0
  %1653 = vmatpush.msra.mxu0 0.0
  %1654 = vmatpush.msra.mxu0 0.0
  %1655 = vmatpush.msra.mxu0 0.0
  %1656 = vmatpush.msra.mxu0 0.0
  %1657 = vmatpush.msra.mxu0 0.0
  %1658 = vmatpush.msra.mxu0 0.0
  %1659 = vmatpush.msra.mxu0 0.0
  %1660 = vmatpush.msra.mxu0 0.0
  %1661 = vmatpush.msra.mxu0 0.0
  %1662 = vmatpush.msra.mxu0 0.0
  %1663 = vmatpush.msra.mxu0 0.0
  %1664 = vmatpush.msra.mxu0 0.0
  %1665 = vmatpush.msra.mxu0 0.0
  %1666 = vmatpush.msra.mxu0 %v1292
  %1667 = vmatmul.f32.gmra.mxu0 %v1629
  %v1668 = vpop.f32.mrf.mxu0
  %v1669 = vadd.f32 0.0, %v1668
  %1670 = vdwg.mxu0
  %1671 = vmatpush.msra.mxu0 0.0
  %1672 = vmatpush.msra.mxu0 0.0
  %1673 = vmatpush.msra.mxu0 0.0
  %1674 = vmatpush.msra.mxu0 0.0
  %1675 = vmatpush.msra.mxu0 0.0
  %1676 = vmatpush.msra.mxu0 0.0
  %1677 = vmatpush.msra.mxu0 0.0
  %1678 = vmatpush.msra.mxu0 0.0
  %1679 = vmatpush.msra.mxu0 0.0
  %1680 = vmatpush.msra.mxu0 0.0
  %1681 = vmatpush.msra.mxu0 0.0
  %1682 = vmatpush.msra.mxu0 0.0
  %1683 = vmatpush.msra.mxu0 0.0
  %1684 = vmatpush.msra.mxu0 0.0
  %1685 = vmatpush.msra.mxu0 0.0
  %1686 = vmatpush.msra.mxu0 %v1315
  %1687 = vmatmul.f32.gmra.mxu0 %v1629
  %v1688 = vpop.f32.mrf.mxu0
  %v1689 = vadd.f32 %v1264, %v1688
  %1690 = vdwg.mxu0
  %v1692 = vrot.slane %v1649, 2
  %v1694 = vadd.f32 %v1186, %v1692
  %v1695 = vxor.u32 %v1694, 2147483648
  %v1696 = vmul.f32 %v1695, 1.442695
  %v1697 = vpow.pop %v1696
  %v1698 = vadd.f32 %v1697, 1.0
  %v1699 = vrcp.pop %v1698
  %v1700 = vmul.f32 %v1698, %v1699
  %v1701 = vsub.f32 1.0, %v1700
  %v1702 = vmul.f32 %v1699, %v1701
  %v1703 = vadd.f32 %v1699, %v1702
  %vm1704 = vweird.f32 %v1698
  %vm1705 = vweird.f32 %v1699
  %vm1706 = vmor %vm1704, %vm1705
  %v1707 = vsel %vm1706, %v1699, %v1703
  %v1708 = vand.u32 2147483647, %v1698
  %vm1709 = vcmp.eq.f32.partialorder %v1708, 8.507059e+37
  %v1710 = vand.u32 %v1698, 2147483648
  %v1711 = vor.u32 1.1754944e-38, %v1710
  %v1712 = vsel %vm1709, %v1711, %v1707
  %v1713 = vmul.f32 1.0, %v1712
  %v1715 = vrot.slane %v1669, 2
  %v1717 = vadd.f32 %v1219, %v1715
  %v1718 = vxor.u32 %v1717, 2147483648
  %v1719 = vmul.f32 %v1718, 1.442695
  %v1720 = vpow.pop %v1719
  %v1721 = vadd.f32 %v1720, 1.0
  %v1722 = vrcp.pop %v1721
  %v1723 = vmul.f32 %v1721, %v1722
  %v1724 = vsub.f32 1.0, %v1723
  %v1725 = vmul.f32 %v1722, %v1724
  %v1726 = vadd.f32 %v1722, %v1725
  %vm1727 = vweird.f32 %v1721
  %vm1728 = vweird.f32 %v1722
  %vm1729 = vmor %vm1727, %vm1728
  %v1730 = vsel %vm1729, %v1722, %v1726
  %v1731 = vand.u32 2147483647, %v1721
  %vm1732 = vcmp.eq.f32.partialorder %v1731, 8.507059e+37
  %v1733 = vand.u32 %v1721, 2147483648
  %v1734 = vor.u32 1.1754944e-38, %v1733
  %v1735 = vsel %vm1732, %v1734, %v1730
  %v1736 = vmul.f32 1.0, %v1735
  %v1738 = vrot.slane %v1689, 2
  %v1740 = vmul.f32 %v1713, %v1738
  %v1741 = vadd.f32 %v1252, %v1740
  %v1742 = vtanh.pop %v1741
  %v1743 = vsub.f32 1.0, %v1736
  %v1744 = vmul.f32 %v1743, %v1742
  %v1745 = vrot.slane %v1626, 6
  %v1747 = vmul.f32 %v1736, %v1745
  %v1748 = vadd.f32 %v1744, %v1747
  %v1750 = vrot.slane %v1748, 6
  %v1751 = vsel %vm41, %v1750, 0
  %1753 = vmatpush.msra.mxu0 0.0
  %1754 = vmatpush.msra.mxu0 0.0
  %1755 = vmatpush.msra.mxu0 0.0
  %1756 = vmatpush.msra.mxu0 0.0
  %1757 = vmatpush.msra.mxu0 0.0
  %1758 = vmatpush.msra.mxu0 0.0
  %1759 = vmatpush.msra.mxu0 0.0
  %1760 = vmatpush.msra.mxu0 0.0
  %1761 = vmatpush.msra.mxu0 0.0
  %1762 = vmatpush.msra.mxu0 0.0
  %1763 = vmatpush.msra.mxu0 0.0
  %1764 = vmatpush.msra.mxu0 0.0
  %1765 = vmatpush.msra.mxu0 0.0
  %1766 = vmatpush.msra.mxu0 0.0
  %1767 = vmatpush.msra.mxu0 0.0
  %1768 = vmatpush.msra.mxu0 %v1269
  %1769 = vmatmul.f32.gmra.mxu0 %v1751
  %v1770 = vpop.f32.mrf.mxu0
  %v1771 = vadd.f32 0.0, %v1770
  %1772 = vdwg.mxu0
  %1773 = vmatpush.msra.mxu0 0.0
  %1774 = vmatpush.msra.mxu0 0.0
  %1775 = vmatpush.msra.mxu0 0.0
  %1776 = vmatpush.msra.mxu0 0.0
  %1777 = vmatpush.msra.mxu0 0.0
  %1778 = vmatpush.msra.mxu0 0.0
  %1779 = vmatpush.msra.mxu0 0.0
  %1780 = vmatpush.msra.mxu0 0.0
  %1781 = vmatpush.msra.mxu0 0.0
  %1782 = vmatpush.msra.mxu0 0.0
  %1783 = vmatpush.msra.mxu0 0.0
  %1784 = vmatpush.msra.mxu0 0.0
  %1785 = vmatpush.msra.mxu0 0.0
  %1786 = vmatpush.msra.mxu0 0.0
  %1787 = vmatpush.msra.mxu0 0.0
  %1788 = vmatpush.msra.mxu0 %v1292
  %1789 = vmatmul.f32.gmra.mxu0 %v1751
  %v1790 = vpop.f32.mrf.mxu0
  %v1791 = vadd.f32 0.0, %v1790
  %1792 = vdwg.mxu0
  %1793 = vmatpush.msra.mxu0 0.0
  %1794 = vmatpush.msra.mxu0 0.0
  %1795 = vmatpush.msra.mxu0 0.0
  %1796 = vmatpush.msra.mxu0 0.0
  %1797 = vmatpush.msra.mxu0 0.0
  %1798 = vmatpush.msra.mxu0 0.0
  %1799 = vmatpush.msra.mxu0 0.0
  %1800 = vmatpush.msra.mxu0 0.0
  %1801 = vmatpush.msra.mxu0 0.0
  %1802 = vmatpush.msra.mxu0 0.0
  %1803 = vmatpush.msra.mxu0 0.0
  %1804 = vmatpush.msra.mxu0 0.0
  %1805 = vmatpush.msra.mxu0 0.0
  %1806 = vmatpush.msra.mxu0 0.0
  %1807 = vmatpush.msra.mxu0 0.0
  %1808 = vmatpush.msra.mxu0 %v1315
  %1809 = vmatmul.f32.gmra.mxu0 %v1751
  %v1810 = vpop.f32.mrf.mxu0
  %v1811 = vadd.f32 %v1264, %v1810
  %1812 = vdwg.mxu0
  %v1813 = vadd.f32 %v1189, %v1771
  %v1814 = vxor.u32 %v1813, 2147483648
  %v1815 = vmul.f32 %v1814, 1.442695
  %v1816 = vpow.pop %v1815
  %v1817 = vadd.f32 %v1816, 1.0
  %v1818 = vrcp.pop %v1817
  %v1819 = vmul.f32 %v1817, %v1818
  %v1820 = vsub.f32 1.0, %v1819
  %v1821 = vmul.f32 %v1818, %v1820
  %v1822 = vadd.f32 %v1818, %v1821
  %vm1823 = vweird.f32 %v1817
  %vm1824 = vweird.f32 %v1818
  %vm1825 = vmor %vm1823, %vm1824
  %v1826 = vsel %vm1825, %v1818, %v1822
  %v1827 = vand.u32 2147483647, %v1817
  %vm1828 = vcmp.eq.f32.partialorder %v1827, 8.507059e+37
  %v1829 = vand.u32 %v1817, 2147483648
  %v1830 = vor.u32 1.1754944e-38, %v1829
  %v1831 = vsel %vm1828, %v1830, %v1826
  %v1832 = vmul.f32 1.0, %v1831
  %v1833 = vadd.f32 %v1222, %v1791
  %v1834 = vxor.u32 %v1833, 2147483648
  %v1835 = vmul.f32 %v1834, 1.442695
  %v1836 = vpow.pop %v1835
  %v1837 = vadd.f32 %v1836, 1.0
  %v1838 = vrcp.pop %v1837
  %v1839 = vmul.f32 %v1837, %v1838
  %v1840 = vsub.f32 1.0, %v1839
  %v1841 = vmul.f32 %v1838, %v1840
  %v1842 = vadd.f32 %v1838, %v1841
  %vm1843 = vweird.f32 %v1837
  %vm1844 = vweird.f32 %v1838
  %vm1845 = vmor %vm1843, %vm1844
  %v1846 = vsel %vm1845, %v1838, %v1842
  %v1847 = vand.u32 2147483647, %v1837
  %vm1848 = vcmp.eq.f32.partialorder %v1847, 8.507059e+37
  %v1849 = vand.u32 %v1837, 2147483648
  %v1850 = vor.u32 1.1754944e-38, %v1849
  %v1851 = vsel %vm1848, %v1850, %v1846
  %v1852 = vmul.f32 1.0, %v1851
  %v1853 = vmul.f32 %v1832, %v1811
  %v1854 = vadd.f32 %v1255, %v1853
  %v1855 = vtanh.pop %v1854
  %v1856 = vsub.f32 1.0, %v1852
  %v1857 = vmul.f32 %v1856, %v1855
  %v1859 = vmul.f32 %v1852, %v1750
  %v1860 = vadd.f32 %v1857, %v1859
  %v1862 = vsel %vm41, %v1860, 0
  %1864 = vmatpush.msra.mxu0 0.0
  %1865 = vmatpush.msra.mxu0 0.0
  %1866 = vmatpush.msra.mxu0 0.0
  %1867 = vmatpush.msra.mxu0 0.0
  %1868 = vmatpush.msra.mxu0 0.0
  %1869 = vmatpush.msra.mxu0 0.0
  %1870 = vmatpush.msra.mxu0 0.0
  %1871 = vmatpush.msra.mxu0 0.0
  %1872 = vmatpush.msra.mxu0 0.0
  %1873 = vmatpush.msra.mxu0 0.0
  %1874 = vmatpush.msra.mxu0 0.0
  %1875 = vmatpush.msra.mxu0 0.0
  %1876 = vmatpush.msra.mxu0 0.0
  %1877 = vmatpush.msra.mxu0 0.0
  %1878 = vmatpush.msra.mxu0 0.0
  %1879 = vmatpush.msra.mxu0 %v1269
  %1880 = vmatmul.f32.gmra.mxu0 %v1862
  %v1881 = vpop.f32.mrf.mxu0
  %v1882 = vadd.f32 0.0, %v1881
  %1883 = vdwg.mxu0
  %1884 = vmatpush.msra.mxu0 0.0
  %1885 = vmatpush.msra.mxu0 0.0
  %1886 = vmatpush.msra.mxu0 0.0
  %1887 = vmatpush.msra.mxu0 0.0
  %1888 = vmatpush.msra.mxu0 0.0
  %1889 = vmatpush.msra.mxu0 0.0
  %1890 = vmatpush.msra.mxu0 0.0
  %1891 = vmatpush.msra.mxu0 0.0
  %1892 = vmatpush.msra.mxu0 0.0
  %1893 = vmatpush.msra.mxu0 0.0
  %1894 = vmatpush.msra.mxu0 0.0
  %1895 = vmatpush.msra.mxu0 0.0
  %1896 = vmatpush.msra.mxu0 0.0
  %1897 = vmatpush.msra.mxu0 0.0
  %1898 = vmatpush.msra.mxu0 0.0
  %1899 = vmatpush.msra.mxu0 %v1292
  %1900 = vmatmul.f32.gmra.mxu0 %v1862
  %v1901 = vpop.f32.mrf.mxu0
  %v1902 = vadd.f32 0.0, %v1901
  %1903 = vdwg.mxu0
  %1904 = vmatpush.msra.mxu0 0.0
  %1905 = vmatpush.msra.mxu0 0.0
  %1906 = vmatpush.msra.mxu0 0.0
  %1907 = vmatpush.msra.mxu0 0.0
  %1908 = vmatpush.msra.mxu0 0.0
  %1909 = vmatpush.msra.mxu0 0.0
  %1910 = vmatpush.msra.mxu0 0.0
  %1911 = vmatpush.msra.mxu0 0.0
  %1912 = vmatpush.msra.mxu0 0.0
  %1913 = vmatpush.msra.mxu0 0.0
  %1914 = vmatpush.msra.mxu0 0.0
  %1915 = vmatpush.msra.mxu0 0.0
  %1916 = vmatpush.msra.mxu0 0.0
  %1917 = vmatpush.msra.mxu0 0.0
  %1918 = vmatpush.msra.mxu0 0.0
  %1919 = vmatpush.msra.mxu0 %v1315
  %1920 = vmatmul.f32.gmra.mxu0 %v1862
  %v1921 = vpop.f32.mrf.mxu0
  %v1922 = vadd.f32 %v1264, %v1921
  %1923 = vdwg.mxu0
  %v1925 = vrot.slane %v1882, 6
  %v1927 = vadd.f32 %v1189, %v1925
  %v1928 = vxor.u32 %v1927, 2147483648
  %v1929 = vmul.f32 %v1928, 1.442695
  %v1930 = vpow.pop %v1929
  %v1931 = vadd.f32 %v1930, 1.0
  %v1932 = vrcp.pop %v1931
  %v1933 = vmul.f32 %v1931, %v1932
  %v1934 = vsub.f32 1.0, %v1933
  %v1935 = vmul.f32 %v1932, %v1934
  %v1936 = vadd.f32 %v1932, %v1935
  %vm1937 = vweird.f32 %v1931
  %vm1938 = vweird.f32 %v1932
  %vm1939 = vmor %vm1937, %vm1938
  %v1940 = vsel %vm1939, %v1932, %v1936
  %v1941 = vand.u32 2147483647, %v1931
  %vm1942 = vcmp.eq.f32.partialorder %v1941, 8.507059e+37
  %v1943 = vand.u32 %v1931, 2147483648
  %v1944 = vor.u32 1.1754944e-38, %v1943
  %v1945 = vsel %vm1942, %v1944, %v1940
  %v1946 = vmul.f32 1.0, %v1945
  %v1948 = vrot.slane %v1902, 6
  %v1950 = vadd.f32 %v1222, %v1948
  %v1951 = vxor.u32 %v1950, 2147483648
  %v1952 = vmul.f32 %v1951, 1.442695
  %v1953 = vpow.pop %v1952
  %v1954 = vadd.f32 %v1953, 1.0
  %v1955 = vrcp.pop %v1954
  %v1956 = vmul.f32 %v1954, %v1955
  %v1957 = vsub.f32 1.0, %v1956
  %v1958 = vmul.f32 %v1955, %v1957
  %v1959 = vadd.f32 %v1955, %v1958
  %vm1960 = vweird.f32 %v1954
  %vm1961 = vweird.f32 %v1955
  %vm1962 = vmor %vm1960, %vm1961
  %v1963 = vsel %vm1962, %v1955, %v1959
  %v1964 = vand.u32 2147483647, %v1954
  %vm1965 = vcmp.eq.f32.partialorder %v1964, 8.507059e+37
  %v1966 = vand.u32 %v1954, 2147483648
  %v1967 = vor.u32 1.1754944e-38, %v1966
  %v1968 = vsel %vm1965, %v1967, %v1963
  %v1969 = vmul.f32 1.0, %v1968
  %v1971 = vrot.slane %v1922, 6
  %v1973 = vmul.f32 %v1946, %v1971
  %v1974 = vadd.f32 %v1255, %v1973
  %v1975 = vtanh.pop %v1974
  %v1976 = vsub.f32 1.0, %v1969
  %v1977 = vmul.f32 %v1976, %v1975
  %v1978 = vrot.slane %v1860, 6
  %v1980 = vmul.f32 %v1969, %v1978
  %v1981 = vadd.f32 %v1977, %v1980
  %v1983 = vrot.slane %v1981, 2
  %v1984 = vsel %vm41, %v1983, 0
  %1986 = vmatpush.msra.mxu0 0.0
  %1987 = vmatpush.msra.mxu0 0.0
  %1988 = vmatpush.msra.mxu0 0.0
  %1989 = vmatpush.msra.mxu0 0.0
  %1990 = vmatpush.msra.mxu0 0.0
  %1991 = vmatpush.msra.mxu0 0.0
  %1992 = vmatpush.msra.mxu0 0.0
  %1993 = vmatpush.msra.mxu0 0.0
  %1994 = vmatpush.msra.mxu0 0.0
  %1995 = vmatpush.msra.mxu0 0.0
  %1996 = vmatpush.msra.mxu0 0.0
  %1997 = vmatpush.msra.mxu0 0.0
  %1998 = vmatpush.msra.mxu0 0.0
  %1999 = vmatpush.msra.mxu0 0.0
  %2000 = vmatpush.msra.mxu0 0.0
  %2001 = vmatpush.msra.mxu0 %v1269
  %2002 = vmatmul.f32.gmra.mxu0 %v1984
  %v2003 = vpop.f32.mrf.mxu0
  %v2004 = vadd.f32 0.0, %v2003
  %2005 = vdwg.mxu0
  %2006 = vmatpush.msra.mxu0 0.0
  %2007 = vmatpush.msra.mxu0 0.0
  %2008 = vmatpush.msra.mxu0 0.0
  %2009 = vmatpush.msra.mxu0 0.0
  %2010 = vmatpush.msra.mxu0 0.0
  %2011 = vmatpush.msra.mxu0 0.0
  %2012 = vmatpush.msra.mxu0 0.0
  %2013 = vmatpush.msra.mxu0 0.0
  %2014 = vmatpush.msra.mxu0 0.0
  %2015 = vmatpush.msra.mxu0 0.0
  %2016 = vmatpush.msra.mxu0 0.0
  %2017 = vmatpush.msra.mxu0 0.0
  %2018 = vmatpush.msra.mxu0 0.0
  %2019 = vmatpush.msra.mxu0 0.0
  %2020 = vmatpush.msra.mxu0 0.0
  %2021 = vmatpush.msra.mxu0 %v1292
  %2022 = vmatmul.f32.gmra.mxu0 %v1984
  %v2023 = vpop.f32.mrf.mxu0
  %v2024 = vadd.f32 0.0, %v2023
  %2025 = vdwg.mxu0
  %2026 = vmatpush.msra.mxu0 0.0
  %2027 = vmatpush.msra.mxu0 0.0
  %2028 = vmatpush.msra.mxu0 0.0
  %2029 = vmatpush.msra.mxu0 0.0
  %2030 = vmatpush.msra.mxu0 0.0
  %2031 = vmatpush.msra.mxu0 0.0
  %2032 = vmatpush.msra.mxu0 0.0
  %2033 = vmatpush.msra.mxu0 0.0
  %2034 = vmatpush.msra.mxu0 0.0
  %2035 = vmatpush.msra.mxu0 0.0
  %2036 = vmatpush.msra.mxu0 0.0
  %2037 = vmatpush.msra.mxu0 0.0
  %2038 = vmatpush.msra.mxu0 0.0
  %2039 = vmatpush.msra.mxu0 0.0
  %2040 = vmatpush.msra.mxu0 0.0
  %2041 = vmatpush.msra.mxu0 %v1315
  %2042 = vmatmul.f32.gmra.mxu0 %v1984
  %v2043 = vpop.f32.mrf.mxu0
  %v2044 = vadd.f32 %v1264, %v2043
  %2045 = vdwg.mxu0
  %v2047 = vrot.slane %v2004, 4
  %v2049 = vadd.f32 %v1189, %v2047
  %v2050 = vxor.u32 %v2049, 2147483648
  %v2051 = vmul.f32 %v2050, 1.442695
  %v2052 = vpow.pop %v2051
  %v2053 = vadd.f32 %v2052, 1.0
  %v2054 = vrcp.pop %v2053
  %v2055 = vmul.f32 %v2053, %v2054
  %v2056 = vsub.f32 1.0, %v2055
  %v2057 = vmul.f32 %v2054, %v2056
  %v2058 = vadd.f32 %v2054, %v2057
  %vm2059 = vweird.f32 %v2053
  %vm2060 = vweird.f32 %v2054
  %vm2061 = vmor %vm2059, %vm2060
  %v2062 = vsel %vm2061, %v2054, %v2058
  %v2063 = vand.u32 2147483647, %v2053
  %vm2064 = vcmp.eq.f32.partialorder %v2063, 8.507059e+37
  %v2065 = vand.u32 %v2053, 2147483648
  %v2066 = vor.u32 1.1754944e-38, %v2065
  %v2067 = vsel %vm2064, %v2066, %v2062
  %v2068 = vmul.f32 1.0, %v2067
  %v2070 = vrot.slane %v2024, 4
  %v2072 = vadd.f32 %v1222, %v2070
  %v2073 = vxor.u32 %v2072, 2147483648
  %v2074 = vmul.f32 %v2073, 1.442695
  %v2075 = vpow.pop %v2074
  %v2076 = vadd.f32 %v2075, 1.0
  %v2077 = vrcp.pop %v2076
  %v2078 = vmul.f32 %v2076, %v2077
  %v2079 = vsub.f32 1.0, %v2078
  %v2080 = vmul.f32 %v2077, %v2079
  %v2081 = vadd.f32 %v2077, %v2080
  %vm2082 = vweird.f32 %v2076
  %vm2083 = vweird.f32 %v2077
  %vm2084 = vmor %vm2082, %vm2083
  %v2085 = vsel %vm2084, %v2077, %v2081
  %v2086 = vand.u32 2147483647, %v2076
  %vm2087 = vcmp.eq.f32.partialorder %v2086, 8.507059e+37
  %v2088 = vand.u32 %v2076, 2147483648
  %v2089 = vor.u32 1.1754944e-38, %v2088
  %v2090 = vsel %vm2087, %v2089, %v2085
  %v2091 = vmul.f32 1.0, %v2090
  %v2093 = vrot.slane %v2044, 4
  %v2095 = vmul.f32 %v2068, %v2093
  %v2096 = vadd.f32 %v1255, %v2095
  %v2097 = vtanh.pop %v2096
  %v2098 = vsub.f32 1.0, %v2091
  %v2099 = vmul.f32 %v2098, %v2097
  %v2100 = vrot.slane %v1981, 6
  %v2102 = vmul.f32 %v2091, %v2100
  %v2103 = vadd.f32 %v2099, %v2102
  %v2105 = vrot.slane %v2103, 4
  %v2106 = vsel %vm41, %v2105, 0
  %2108 = vmatpush.msra.mxu0 0.0
  %2109 = vmatpush.msra.mxu0 0.0
  %2110 = vmatpush.msra.mxu0 0.0
  %2111 = vmatpush.msra.mxu0 0.0
  %2112 = vmatpush.msra.mxu0 0.0
  %2113 = vmatpush.msra.mxu0 0.0
  %2114 = vmatpush.msra.mxu0 0.0
  %2115 = vmatpush.msra.mxu0 0.0
  %2116 = vmatpush.msra.mxu0 0.0
  %2117 = vmatpush.msra.mxu0 0.0
  %2118 = vmatpush.msra.mxu0 0.0
  %2119 = vmatpush.msra.mxu0 0.0
  %2120 = vmatpush.msra.mxu0 0.0
  %2121 = vmatpush.msra.mxu0 0.0
  %2122 = vmatpush.msra.mxu0 0.0
  %2123 = vmatpush.msra.mxu0 %v1269
  %2124 = vmatmul.f32.gmra.mxu0 %v2106
  %v2125 = vpop.f32.mrf.mxu0
  %v2126 = vadd.f32 0.0, %v2125
  %2127 = vdwg.mxu0
  %2128 = vmatpush.msra.mxu0 0.0
  %2129 = vmatpush.msra.mxu0 0.0
  %2130 = vmatpush.msra.mxu0 0.0
  %2131 = vmatpush.msra.mxu0 0.0
  %2132 = vmatpush.msra.mxu0 0.0
  %2133 = vmatpush.msra.mxu0 0.0
  %2134 = vmatpush.msra.mxu0 0.0
  %2135 = vmatpush.msra.mxu0 0.0
  %2136 = vmatpush.msra.mxu0 0.0
  %2137 = vmatpush.msra.mxu0 0.0
  %2138 = vmatpush.msra.mxu0 0.0
  %2139 = vmatpush.msra.mxu0 0.0
  %2140 = vmatpush.msra.mxu0 0.0
  %2141 = vmatpush.msra.mxu0 0.0
  %2142 = vmatpush.msra.mxu0 0.0
  %2143 = vmatpush.msra.mxu0 %v1292
  %2144 = vmatmul.f32.gmra.mxu0 %v2106
  %v2145 = vpop.f32.mrf.mxu0
  %v2146 = vadd.f32 0.0, %v2145
  %2147 = vdwg.mxu0
  %2148 = vmatpush.msra.mxu0 0.0
  %2149 = vmatpush.msra.mxu0 0.0
  %2150 = vmatpush.msra.mxu0 0.0
  %2151 = vmatpush.msra.mxu0 0.0
  %2152 = vmatpush.msra.mxu0 0.0
  %2153 = vmatpush.msra.mxu0 0.0
  %2154 = vmatpush.msra.mxu0 0.0
  %2155 = vmatpush.msra.mxu0 0.0
  %2156 = vmatpush.msra.mxu0 0.0
  %2157 = vmatpush.msra.mxu0 0.0
  %2158 = vmatpush.msra.mxu0 0.0
  %2159 = vmatpush.msra.mxu0 0.0
  %2160 = vmatpush.msra.mxu0 0.0
  %2161 = vmatpush.msra.mxu0 0.0
  %2162 = vmatpush.msra.mxu0 0.0
  %2163 = vmatpush.msra.mxu0 %v1315
  %2164 = vmatmul.f32.gmra.mxu0 %v2106
  %v2165 = vpop.f32.mrf.mxu0
  %v2166 = vadd.f32 %v1264, %v2165
  %2167 = vdwg.mxu0
  %v2169 = vrot.slane %v2126, 2
  %v2171 = vadd.f32 %v1189, %v2169
  %v2172 = vxor.u32 %v2171, 2147483648
  %v2173 = vmul.f32 %v2172, 1.442695
  %v2174 = vpow.pop %v2173
  %v2175 = vadd.f32 %v2174, 1.0
  %v2176 = vrcp.pop %v2175
  %v2177 = vmul.f32 %v2175, %v2176
  %v2178 = vsub.f32 1.0, %v2177
  %v2179 = vmul.f32 %v2176, %v2178
  %v2180 = vadd.f32 %v2176, %v2179
  %vm2181 = vweird.f32 %v2175
  %vm2182 = vweird.f32 %v2176
  %vm2183 = vmor %vm2181, %vm2182
  %v2184 = vsel %vm2183, %v2176, %v2180
  %v2185 = vand.u32 2147483647, %v2175
  %vm2186 = vcmp.eq.f32.partialorder %v2185, 8.507059e+37
  %v2187 = vand.u32 %v2175, 2147483648
  %v2188 = vor.u32 1.1754944e-38, %v2187
  %v2189 = vsel %vm2186, %v2188, %v2184
  %v2190 = vmul.f32 1.0, %v2189
  %v2192 = vrot.slane %v2146, 2
  %v2194 = vadd.f32 %v1222, %v2192
  %v2195 = vxor.u32 %v2194, 2147483648
  %v2196 = vmul.f32 %v2195, 1.442695
  %v2197 = vpow.pop %v2196
  %v2198 = vadd.f32 %v2197, 1.0
  %v2199 = vrcp.pop %v2198
  %v2200 = vmul.f32 %v2198, %v2199
  %v2201 = vsub.f32 1.0, %v2200
  %v2202 = vmul.f32 %v2199, %v2201
  %v2203 = vadd.f32 %v2199, %v2202
  %vm2204 = vweird.f32 %v2198
  %vm2205 = vweird.f32 %v2199
  %vm2206 = vmor %vm2204, %vm2205
  %v2207 = vsel %vm2206, %v2199, %v2203
  %v2208 = vand.u32 2147483647, %v2198
  %vm2209 = vcmp.eq.f32.partialorder %v2208, 8.507059e+37
  %v2210 = vand.u32 %v2198, 2147483648
  %v2211 = vor.u32 1.1754944e-38, %v2210
  %v2212 = vsel %vm2209, %v2211, %v2207
  %v2213 = vmul.f32 1.0, %v2212
  %v2215 = vrot.slane %v2166, 2
  %v2217 = vmul.f32 %v2190, %v2215
  %v2218 = vadd.f32 %v1255, %v2217
  %v2219 = vtanh.pop %v2218
  %v2220 = vsub.f32 1.0, %v2213
  %v2221 = vmul.f32 %v2220, %v2219
  %v2222 = vrot.slane %v2103, 6
  %v2224 = vmul.f32 %v2213, %v2222
  %v2225 = vadd.f32 %v2221, %v2224
  %2226 = vrot.lane.b32.xlu0 %v1506, 4
  %v2227 = vpop.permute.xlu0 %2226
  %2229 = vrot.lane.b32.xlu0 %v1628, 8
  %v2230 = vpop.permute.xlu0 %2229
  %2232 = vrot.lane.b32.xlu0 %v1750, 12
  %v2233 = vpop.permute.xlu0 %2232
  %2235 = vrot.lane.b32.xlu0 %v1860, 16
  %v2236 = vpop.permute.xlu0 %2235
  %2238 = vrot.lane.b32.xlu0 %v1983, 20
  %v2239 = vpop.permute.xlu0 %2238
  %2241 = vrot.lane.b32.xlu0 %v2105, 24
  %v2242 = vpop.permute.xlu0 %2241
  %v2245 = vrot.slane %v2225, 6
  %2246 = vrot.lane.b32.xlu0 %v2245, 28
  %v2247 = vpop.permute.xlu0 %2246
  %v2249 = vsel %vm41, %v1383, %v2227
  %vm2250 = vcmask 64512
  %v2251 = vsel %vm2250, %v2249, %v2230
  %vm2252 = vcmask 97280
  %v2253 = vsel %vm2252, %v2251, %v2233
  %vm2254 = vcmask 130048
  %v2255 = vsel %vm2254, %v2253, %v2236
  %vm2256 = vcmask 162816
  %v2257 = vsel %vm2256, %v2255, %v2239
  %vm2258 = vcmask 195584
  %v2259 = vsel %vm2258, %v2257, %v2242
  %vm2260 = vcmask 228352
  %v2261 = vsel %vm2260, %v2259, %v2247
  %vm2262 = vcmask 254976
  %2263 = vst.msk [vmem:[%s10] sm:$0x3] %vm2262, %v2261
  // Predicated region
  $region38: #{netd_forward.1} parent=0 // pred_check
    _
  $region39: #{netd_forward.1} parent=0 // pred_check_branch
    %2265 = sbr.rel (0) target = $region41
  $region40: #{netd_forward.1} parent=0 // pred_region
    _
  $region41: #{netd_forward.1} parent=0 // pred_fallthru
    _
  // Predicated region
  $region42: #{netd_forward.1} parent=0 // pred_check
    _
  $region43: #{netd_forward.1} parent=0 // pred_check_branch
    %2267 = sbr.rel (0) target = $region45
  $region44: #{netd_forward.1} parent=0 // pred_region
    _
  $region45: #{netd_forward.1} parent=0 // pred_fallthru
    _
  // Predicated region
  $region46: #{netd_forward.1} parent=0 // pred_check
    _
  $region47: #{netd_forward.1} parent=0 // pred_check_branch
    %2269 = sbr.rel (0) target = $region49
  $region48: #{netd_forward.1} parent=0 // pred_region
    _
  $region49: #{netd_forward.1} parent=0 // pred_fallthru
    _
  // Predicated region
  $region50: #{netd_forward.1} parent=0 // pred_check
    _
  $region51: #{netd_forward.1} parent=0 // pred_check_branch
    %2271 = sbr.rel (0) target = $region53
  $region52: #{netd_forward.1} parent=0 // pred_region
    _
  $region53: #{netd_forward.1} parent=0 // pred_fallthru
    _

</llo_original>
